<compile_context>
chip_gen: v5e
topology: v5e:2x2
jax: 0.10.0
libtpu: 0.0.40
codegen_flags: <defaults>
</compile_context>

<pallas_src>
import functools

import jax
import jax.numpy as jnp
from jax.experimental import pallas as pl
from jax.experimental.pallas import tpu as pltpu

NUM_BASES = 30
HIDDEN = 16
F_PAD = 128          # lane width; every feature dim is zero-padded to this


# ---------------------------------------------------------------------------
# small helpers
# ---------------------------------------------------------------------------
def _pad_to(x, shape):
    pads = [(0, t - s) for s, t in zip(x.shape, shape)]
    return jnp.pad(x, pads)


def _pad_last(x, size):
    return _pad_to(x, x.shape[:-1] + (size,))


def _pick_tm(n, budget_bytes=12 * 1024 * 1024):
    # Largest node tile that divides N, is a multiple of 8, and keeps the
    # double-buffered bf16 A stream (2 * tm * N * 2B) plus the resident
    # [N, 128] bf16 operand inside `budget_bytes`.  A large tm also minimizes
    # how often the resident operand / W blocks are re-fetched.
    resident = 2 * n * F_PAD * 2
    for tm in (1024, 512, 256, 128, 64, 32, 16, 8):
        if n % tm == 0 and 2 * tm * n * 2 + resident <= budget_bytes:
            return tm
    return n


def _pick_col_tile(cols, cap=16384):
    for tc in (16384, 8192, 4096, 2048, 1024, 512, 256, 128):
        if tc <= cap and cols % tc == 0:
            return tc
    return cols


# ---------------------------------------------------------------------------
# Kernel 1: basis mix  M_stack[r] = sum_b comp[r, b] * stack[b]
# (tiled over the flattened trailing axes -> never holds the full stack in VMEM)
# ---------------------------------------------------------------------------
def _mix_kernel(comp_ref, stack_ref, out_ref):
    out_ref[...] = jnp.dot(comp_ref[...], stack_ref[...],
                           preferred_element_type=jnp.float32
                           ).astype(out_ref.dtype)


def mix_relations(comp, stack):
    """comp: [R, B] f32, stack: [B, D1, D2] f32  ->  [R, D1, D2] bf16."""
    R, B = comp.shape
    _, d1, d2 = stack.shape
    cols = d1 * d2
    flat = stack.reshape(B, cols).astype(jnp.float32)
    tc = _pick_col_tile(cols)
    out = pl.pallas_call(
        _mix_kernel,
        out_shape=jax.ShapeDtypeStruct((R, cols), jnp.bfloat16),
        grid_spec=pltpu.PrefetchScalarGridSpec(
            num_scalar_prefetch=0,
            grid=(cols // tc,),
            in_specs=[
                pl.BlockSpec((R, B), lambda j: (0, 0)),
                pl.BlockSpec((B, tc), lambda j: (0, j)),
            ],
            out_specs=pl.BlockSpec((R, tc), lambda j: (0, j)),
        ),
        compiler_params=pltpu.CompilerParams(
            dimension_semantics=("parallel",)),
    )(comp.astype(jnp.float32), flat)
    return out.reshape(R, d1, d2)


# ---------------------------------------------------------------------------
# Kernel 2: layer-1 aggregation (featureless, X = Identity)
#   h = relu( S + sum_r A_r @ W1_r )        output stored directly as bf16
#   grid = (node tiles [parallel], relations [arbitrary/reduction])
# ---------------------------------------------------------------------------
def _agg_featureless_kernel(a_ref, w_ref, s_ref, out_ref, acc_ref):
    r = pl.program_id(1)

    @pl.when(r == 0)
    def _():
        acc_ref[...] = s_ref[...]          # I @ root + bias, once per node tile

    # message passing for relation r on this node tile:  A_r[tile, :] @ W1_r
    acc_ref[...] += jnp.dot(a_ref[...], w_ref[...],
                            preferred_element_type=jnp.float32)

    @pl.when(r == pl.num_programs(1) - 1)
    def _():
        out_ref[...] = jnp.maximum(acc_ref[...], 0.0).astype(out_ref.dtype)


def aggregate_featureless(a_norm, w_stack, self_term, *, tm,
                          vmem_limit_bytes=64 * 1024 * 1024):
    R, n, _ = a_norm.shape
    f = w_stack.shape[-1]
    return pl.pallas_call(
        _agg_featureless_kernel,
        out_shape=jax.ShapeDtypeStruct((n, f), jnp.bfloat16),
        grid_spec=pltpu.PrefetchScalarGridSpec(
            num_scalar_prefetch=0,
            grid=(n // tm, R),
            in_specs=[
                pl.BlockSpec((pl.Squeezed(), tm, n), lambda i, r: (r, i, 0)),
                pl.BlockSpec((pl.Squeezed(), n, f), lambda i, r: (r, 0, 0)),
                pl.BlockSpec((tm, f), lambda i, r: (i, 0)),
            ],
            out_specs=pl.BlockSpec((tm, f), lambda i, r: (i, 0)),
            scratch_shapes=[pltpu.VMEM((tm, f), jnp.float32)]),
        compiler_params=pltpu.CompilerParams(
            dimension_semantics=("parallel", "arbitrary"),
            vmem_limit_bytes=vmem_limit_bytes),
    )(a_norm, w_stack, self_term)


# ---------------------------------------------------------------------------
# Kernel 3: layer-2 aggregation (dense features h)
#   out = log_softmax( h @ root + bias + sum_r (A_r @ h) @ W2_r )
#   h is kept resident in VMEM (constant block index); the self/root term is
#   fused at r == 0; masked log-softmax is fused at r == last.
# ---------------------------------------------------------------------------
def _agg_features_kernel(a_ref, hfull_ref, htile_ref, w_ref, root_ref,
                         bias_ref, out_ref, acc_ref, *, valid_cols):
    r = pl.program_id(1)

    @pl.when(r == 0)
    def _():
        acc_ref[...] = (jnp.dot(htile_ref[...], root_ref[...],
                                preferred_element_type=jnp.float32)
                        + bias_ref[...])

    # (A_r[tile, :] @ h) @ W2_r  -- both MXU matmuls, f32 accumulation
    msgs = jnp.dot(a_ref[...], hfull_ref[...],
                   preferred_element_type=jnp.float32)
    acc_ref[...] += jnp.dot(msgs, w_ref[...].astype(jnp.float32),
                            preferred_element_type=jnp.float32)

    @pl.when(r == pl.num_programs(1) - 1)
    def _():
        z = acc_ref[...]
        # masked log-softmax: padded lanes must not pollute the denominator
        col = jax.lax.broadcasted_iota(jnp.int32, z.shape, 1)
        valid = col < valid_cols
        zm = jnp.where(valid, z, -jnp.inf)
        mx = jnp.max(zm, axis=1, keepdims=True)
        p = jnp.where(valid, jnp.exp(z - mx), 0.0)
        lse = jnp.log(jnp.sum(p, axis=1, keepdims=True)) + mx
        out_ref[...] = jnp.where(valid, z - lse, 0.0)


def aggregate_with_features(a_norm, h, w_stack, root, bias, *, tm, valid_cols,
                            vmem_limit_bytes=64 * 1024 * 1024):
    R, n, _ = a_norm.shape
    f = w_stack.shape[-1]
    kernel = functools.partial(_agg_features_kernel, valid_cols=valid_cols)
    return pl.pallas_call(
        kernel,
        out_shape=jax.ShapeDtypeStruct((n, f), jnp.float32),
        grid_spec=pltpu.PrefetchScalarGridSpec(
            num_scalar_prefetch=0,
            grid=(n // tm, R),
            in_specs=[
                pl.BlockSpec((pl.Squeezed(), tm, n), lambda i, r: (r, i, 0)),  # A_r tile
                pl.BlockSpec((n, f), lambda i, r: (0, 0)),                     # h (resident)
                pl.BlockSpec((tm, f), lambda i, r: (i, 0)),                    # h tile (self term)
                pl.BlockSpec((pl.Squeezed(), f, f), lambda i, r: (r, 0, 0)),   # W2_r
                pl.BlockSpec((f, f), lambda i, r: (0, 0)),                     # root
                pl.BlockSpec((1, f), lambda i, r: (0, 0)),                     # bias
            ],
            out_specs=pl.BlockSpec((tm, f), lambda i, r: (i, 0)),
            scratch_shapes=[pltpu.VMEM((tm, f), jnp.float32)]),
        compiler_params=pltpu.CompilerParams(
            dimension_semantics=("parallel", "arbitrary"),
            vmem_limit_bytes=vmem_limit_bytes),
    )(a_norm, h, h, w_stack, root, bias)


# ---------------------------------------------------------------------------
# graph -> dense normalized adjacency (FastRGCNConv 'mean' normalization)
# ---------------------------------------------------------------------------
def build_norm_adj(edge_index, edge_type, num_nodes, num_relations):
    # TODO(synk): the per-edge scatter-add has no clean TPU Pallas equivalent;
    # the dense normalized adjacency is built with a JAX scatter instead.
    src, dst = edge_index[0], edge_index[1]
    a = jnp.zeros((num_relations, num_nodes, num_nodes), jnp.float32)
    a = a.at[edge_type, dst, src].add(1.0)
    deg = jnp.sum(a, axis=2, keepdims=True)          # per-(target, relation) in-degree
    return a / jnp.maximum(deg, 1.0)


# ---------------------------------------------------------------------------
# model
# ---------------------------------------------------------------------------
def init_params(key, num_nodes, out_channels, num_relations):
    ks = jax.random.split(key, 8)
    return {
        "bases1": jax.random.normal(ks[0], (NUM_BASES, num_nodes, HIDDEN),
                                    jnp.float32) * 0.1,
        "comp1": jax.random.normal(ks[1], (num_relations, NUM_BASES),
                                   jnp.float32) * 0.1,
        "root1": jax.random.normal(ks[2], (num_nodes, HIDDEN), jnp.float32) * 0.1,
        "bias1": jax.random.normal(ks[3], (HIDDEN,), jnp.float32) * 0.1,
        "bases2": jax.random.normal(ks[4], (NUM_BASES, HIDDEN, out_channels),
                                    jnp.float32) * 0.1,
        "comp2": jax.random.normal(ks[5], (num_relations, NUM_BASES),
                                   jnp.float32) * 0.1,
        "root2": jax.random.normal(ks[6], (HIDDEN, out_channels),
                                   jnp.float32) * 0.1,
        "bias2": jax.random.normal(ks[7], (out_channels,), jnp.float32) * 0.1,
    }


def rgcn_forward(params, edge_index, edge_type, num_nodes, num_relations, *, tm=None):
    n = num_nodes
    tm = _pick_tm(n) if tm is None else tm
    out_channels = params["bias2"].shape[0]

    a_norm = build_norm_adj(edge_index, edge_type, n, num_relations)
    a_bf16 = a_norm.astype(jnp.bfloat16)   # halves HBM traffic of the dominant A stream

    # ---- conv1 (featureless: X = Identity -> no identity matmuls anywhere) ----
    bases1 = _pad_last(params["bases1"], F_PAD)                       # [B, N, 128]
    w1 = mix_relations(params["comp1"], bases1)                       # [R, N, 128] bf16
    s1 = (_pad_last(params["root1"], F_PAD)                           # I @ root = root
          + _pad_last(params["bias1"][None, :], F_PAD)).astype(jnp.float32)
    h = aggregate_featureless(a_bf16, w1, s1, tm=tm)                  # [N, 128] bf16
    # padded lanes of h are exactly zero (zero-padded weights + relu(0) = 0)

    # ---- conv2 + log_softmax(dim=1) ----
    bases2 = _pad_to(params["bases2"], (NUM_BASES, F_PAD, F_PAD))
    w2 = mix_relations(params["comp2"], bases2)                       # [R, 128, 128] bf16
    root2 = _pad_to(params["root2"], (F_PAD, F_PAD)).astype(jnp.bfloat16)
    bias2 = _pad_last(params["bias2"][None, :], F_PAD).astype(jnp.float32)
    out = aggregate_with_features(a_bf16, h, w2, root2, bias2, tm=tm,
                                  valid_cols=out_channels)            # [N, 128] f32
    return out[:, :out_channels]


# ---------------------------------------------------------------------------
# pure-JAX f32 reference (PyTorch semantics) for correctness checking
# ---------------------------------------------------------------------------
def _ref_forward(params, edge_index, edge_type, num_nodes, num_relations):
    a_norm = build_norm_adj(edge_index, edge_type, num_nodes, num_relations)

    def layer(x, bases, comp, root, bias):
        w = jnp.einsum("rb,bio->rio", comp, bases)
        msg = jnp.einsum("rij,jf,rfo->io", a_norm, x, w)
        return msg + x @ root + bias

    x1 = jnp.eye(num_nodes, dtype=jnp.float32)
    h = jax.nn.relu(layer(x1, params["bases1"], params["comp1"],
                          params["root1"], params["bias1"]))
    o = layer(h, params["bases2"], params["comp2"],
              params["root2"], params["bias2"])
    return jax.nn.log_softmax(o, axis=1)


if __name__ == "__main__":
    num_nodes = 128
    out_channels = 4
    num_relations = 3
    num_edges = 400

    key = jax.random.PRNGKey(0)
    k_param, k_src, k_dst, k_type = jax.random.split(key, 4)

    params = init_params(k_param, num_nodes, out_channels, num_relations)
    src = jax.random.randint(k_src, (num_edges,), 0, num_nodes, jnp.int32)
    dst = jax.random.randint(k_dst, (num_edges,), 0, num_nodes, jnp.int32)
    edge_index = jnp.stack([src, dst], axis=0)            # [2, E]
    edge_type = jax.random.randint(k_type, (num_edges,), 0, num_relations,
                                   jnp.int32)

    # tm=64 -> 2 node tiles: exercises the (parallel, arbitrary) grid at toy size.
    out = rgcn_forward(params, edge_index, edge_type, num_nodes, num_relations,
                       tm=64)
    out = jax.block_until_ready(out)

    ref = _ref_forward(params, edge_index, edge_type, num_nodes, num_relations)
    assert out.shape == (num_nodes, out_channels)
    max_err = jnp.max(jnp.abs(out - ref))
    assert jnp.allclose(out, ref, atol=2e-2), f"mismatch vs reference: {max_err}"

    print("KERNEL_OK")
</pallas_src>

<mosaic_0001>
module attributes {stable_mosaic.version = 11 : i64} {
  func.func @_mix_kernel(%arg0: i32, %arg1: memref<3x30xf32, #tpu.memory_space<vmem>>, %arg2: memref<30x16384xf32, #tpu.memory_space<vmem>>, %arg3: memref<3x16384xbf16, #tpu.memory_space<vmem>>) attributes {dimension_semantics = [#tpu.dimension_semantics<parallel>], iteration_bounds = array<i64: 1>, scalar_prefetch = 0 : i64, scratch_operands = 0 : i64, tpu.core_type = #tpu.core_type<tc>, window_params = [{pipeline_mode = #tpu.pipeline_mode<synchronous>, transform_indices = @transform_0, window_bounds = array<i64: 3, 30>}, {transform_indices = @transform_1, window_bounds = array<i64: 30, 16384>}, {transform_indices = @transform_2, window_bounds = array<i64: 3, 16384>}]} {
    %c0 = arith.constant 0 : index
    %c0_0 = arith.constant 0 : index
    %0 = vector.load %arg1[%c0, %c0_0] : memref<3x30xf32, #tpu.memory_space<vmem>>, vector<3x30xf32>
    %c0_1 = arith.constant 0 : index
    %c0_2 = arith.constant 0 : index
    %1 = vector.load %arg2[%c0_1, %c0_2] : memref<30x16384xf32, #tpu.memory_space<vmem>>, vector<30x16384xf32>
    %cst = arith.constant dense<0.000000e+00> : vector<3x16384xf32>
    %2 = tpu.matmul %0, %1, %cst {dimension_numbers = #tpu.dot_dimension_numbers<[1], [0], [0], [1], [0, 0, 1, 1], [], []>} : vector<3x30xf32>, vector<30x16384xf32>, vector<3x16384xf32> -> vector<3x16384xf32>
    %3 = arith.truncf %2 : vector<3x16384xf32> to vector<3x16384xbf16>
    %c0_3 = arith.constant 0 : index
    %c0_4 = arith.constant 0 : index
    %4 = vector.load %arg3[%c0_3, %c0_4] : memref<3x16384xbf16, #tpu.memory_space<vmem>>, vector<3x16384xbf16>
    tpu.vector_store %arg3[%c0_3, %c0_4], %3 {strides = array<i32>} : memref<3x16384xbf16, #tpu.memory_space<vmem>>, vector<3x16384xbf16>,
    return
  }
  func.func @transform_0(%arg0: i32) -> (i32, i32) {
    %c0_i32 = arith.constant 0 : i32
    %c0_i32_0 = arith.constant 0 : i32
    %c0_i32_1 = arith.constant 0 : i32
    return %c0_i32, %c0_i32_0 : i32, i32
  }
  func.func @transform_1(%arg0: i32) -> (i32, i32) {
    %c0_i32 = arith.constant 0 : i32
    %c0_i32_0 = arith.constant 0 : i32
    return %c0_i32, %arg0 : i32, i32
  }
  func.func @transform_2(%arg0: i32) -> (i32, i32) {
    %c0_i32 = arith.constant 0 : i32
    %c0_i32_0 = arith.constant 0 : i32
    return %c0_i32, %arg0 : i32, i32
  }
}

</mosaic_0001>

<llo_original>
// kernel: tpu_custom_call.1
$region0: #{tpu_custom_call.1}
  #allocation0 [shape = 'u32[]', space=smem, size = 0x4, offset = 0x4, fixed_abs, tag = 'smem constant byte address 0x4 - core index']
  #allocation1 [shape = 'u32[72,128]{1,0:T(1,128)}', space=vmem, size = 0x9000, scoped, tag = 'internal scratch']
  %s0 = inlined_call_operand.hbm [shape: f32[3,30], index: 0, kind: input, shape index: {}]
  %s1 = inlined_call_operand.hbm [shape: f32[30,16384], index: 1, kind: input, shape index: {}]
  %s2 = inlined_call_operand.hbm [shape: bf16[3,16384], index: 2, kind: output, shape index: {}]
  %s3 = sld [smem:[#allocation0]]
  $region26: #{tpu_custom_call.1} parent=0
    _
  %s5 = ssub.s32 1, %s3
  %s6 = scalar_select 0, %s5, %s3
  $region1: #{tpu_custom_call.1} parent=0
    #allocation2 [shape = 'u8[2048]{0}', space=vmem, size = 0x800, scoped, tag = 'input window, operand 0, single buffered']
    #allocation3 [shape = 's32[1]{0}', space=sflag, size = 0x4, scoped, tag = 'scoped memory for tpu_custom_call.1']
    #allocation4 [shape = 's32[1]{0}', space=sflag, size = 0x4, scoped, tag = 'scoped memory for tpu_custom_call.1']
    #allocation5 [shape = 'u8[2097152]{0}', space=vmem, size = 0x200000, scoped, tag = 'input window, operand 1, single buffered']
    #allocation6 [shape = 's32[1]{0}', space=sflag, size = 0x4, scoped, tag = 'scoped memory for tpu_custom_call.1']
    #allocation7 [shape = 'u8[131072]{0}', space=vmem, size = 0x20000, scoped, tag = 'output window, operand 0, single buffered']
    %7 = vsyncpa [#allocation3], 0
    %8 = vsyncpa [#allocation6], 0
    %9 = vsyncpa [#allocation4], 0
    // Predicated region
    $region2: #{tpu_custom_call.1} parent=1 // pred_check
      _
    $region3: #{tpu_custom_call.1} parent=1 // pred_check_branch
      %11 = sbr.rel (0) target = $region5
    $region4: #{tpu_custom_call.1} parent=1 // pred_region
      %13 = vsyncadd [#allocation3], 0
      %s15 = sshll.u32 %s0, 4
      %s16 = int_to_ptr.hbm [resolvable:$true] %s15
      %s17 = sshll.u32 [#allocation2], 4
      %s18 = int_to_ptr.vmem [resolvable:$true] %s17
      %20 = dma.hbm_to_vmem [thread:$0]  %s16, 64, %s18, [#allocation3]
    $region5: #{tpu_custom_call.1} parent=1 // pred_fallthru
      _
    // Predicated region
    $region6: #{tpu_custom_call.1} parent=1 // pred_check
      _
    $region7: #{tpu_custom_call.1} parent=1 // pred_check_branch
      %22 = sbr.rel (0) target = $region9
    $region8: #{tpu_custom_call.1} parent=1 // pred_region
      %24 = vsyncadd [#allocation6], 0
      %s25 = sshll.u32 %s1, 4
      %s26 = int_to_ptr.hbm [resolvable:$true] %s25
      %s27 = sshll.u32 [#allocation5], 4
      %s28 = int_to_ptr.vmem [resolvable:$true] %s27
      %33 = dma.hbm_to_vmem [thread:$0]  %s26, 65536, %s28, [#allocation6], 16384, 16384, 1024
    $region9: #{tpu_custom_call.1} parent=1 // pred_fallthru
      _
    // Predicated region
    $region10: #{tpu_custom_call.1} parent=1 // pred_check
      _
    $region11: #{tpu_custom_call.1} parent=1 // pred_check_branch
      %35 = sbr.rel (0) target = $region13
    $region12: #{tpu_custom_call.1} parent=1 // pred_region
      %37 = dma.done [#allocation3], 64
    $region13: #{tpu_custom_call.1} parent=1 // pred_fallthru
      _
    // Predicated region
    $region14: #{tpu_custom_call.1} parent=1 // pred_check
      _
    $region15: #{tpu_custom_call.1} parent=1 // pred_check_branch
      %39 = sbr.rel (0) target = $region17
    $region16: #{tpu_custom_call.1} parent=1 // pred_region
      %41 = dma.done [#allocation6], 65536
    $region17: #{tpu_custom_call.1} parent=1 // pred_fallthru
      _
    %v42 = vld [vmem:[#allocation2] sm:$0x7]
    %v43 = vld [vmem:[#allocation5] sm:$0xff]
    %v44 = vld [vmem:[#allocation5 + $0x8] sm:$0xff]
    %v45 = vld [vmem:[#allocation5 + $0x10] sm:$0xff]
    %v46 = vld [vmem:[#allocation5 + $0x18] sm:$0xff]
    %v47 = vld [vmem:[#allocation5 + $0x20] sm:$0xff]
    %v48 = vld [vmem:[#allocation5 + $0x28] sm:$0xff]
    %v49 = vld [vmem:[#allocation5 + $0x30] sm:$0xff]
    %v50 = vld [vmem:[#allocation5 + $0x38] sm:$0xff]
    %v51 = vld [vmem:[#allocation5 + $0x40] sm:$0xff]
    %v52 = vld [vmem:[#allocation5 + $0x48] sm:$0xff]
    %v53 = vld [vmem:[#allocation5 + $0x50] sm:$0xff]
    %v54 = vld [vmem:[#allocation5 + $0x58] sm:$0xff]
    %v55 = vld [vmem:[#allocation5 + $0x60] sm:$0xff]
    %v56 = vld [vmem:[#allocation5 + $0x68] sm:$0xff]
    %v57 = vld [vmem:[#allocation5 + $0x70] sm:$0xff]
    %v58 = vld [vmem:[#allocation5 + $0x78] sm:$0xff]
    %v59 = vld [vmem:[#allocation5 + $0x80] sm:$0xff]
    %v60 = vld [vmem:[#allocation5 + $0x88] sm:$0xff]
    %v61 = vld [vmem:[#allocation5 + $0x90] sm:$0xff]
    %v62 = vld [vmem:[#allocation5 + $0x98] sm:$0xff]
    %v63 = vld [vmem:[#allocation5 + $0xa0] sm:$0xff]
    %v64 = vld [vmem:[#allocation5 + $0xa8] sm:$0xff]
    %v65 = vld [vmem:[#allocation5 + $0xb0] sm:$0xff]
    %v66 = vld [vmem:[#allocation5 + $0xb8] sm:$0xff]
    %v67 = vld [vmem:[#allocation5 + $0xc0] sm:$0xff]
    %v68 = vld [vmem:[#allocation5 + $0xc8] sm:$0xff]
    %v69 = vld [vmem:[#allocation5 + $0xd0] sm:$0xff]
    %v70 = vld [vmem:[#allocation5 + $0xd8] sm:$0xff]
    %v71 = vld [vmem:[#allocation5 + $0xe0] sm:$0xff]
    %v72 = vld [vmem:[#allocation5 + $0xe8] sm:$0xff]
    %v73 = vld [vmem:[#allocation5 + $0xf0] sm:$0xff]
    %v74 = vld [vmem:[#allocation5 + $0xf8] sm:$0xff]
    %v75 = vld [vmem:[#allocation5 + $0x100] sm:$0xff]
    %v76 = vld [vmem:[#allocation5 + $0x108] sm:$0xff]
    %v77 = vld [vmem:[#allocation5 + $0x110] sm:$0xff]
    %v78 = vld [vmem:[#allocation5 + $0x118] sm:$0xff]
    %v79 = vld [vmem:[#allocation5 + $0x120] sm:$0xff]
    %v80 = vld [vmem:[#allocation5 + $0x128] sm:$0xff]
    %v81 = vld [vmem:[#allocation5 + $0x130] sm:$0xff]
    %v82 = vld [vmem:[#allocation5 + $0x138] sm:$0xff]
    %v83 = vld [vmem:[#allocation5 + $0x140] sm:$0xff]
    %v84 = vld [vmem:[#allocation5 + $0x148] sm:$0xff]
    %v85 = vld [vmem:[#allocation5 + $0x150] sm:$0xff]
    %v86 = vld [vmem:[#allocation5 + $0x158] sm:$0xff]
    %v87 = vld [vmem:[#allocation5 + $0x160] sm:$0xff]
    %v88 = vld [vmem:[#allocation5 + $0x168] sm:$0xff]
    %v89 = vld [vmem:[#allocation5 + $0x170] sm:$0xff]
    %v90 = vld [vmem:[#allocation5 + $0x178] sm:$0xff]
    %v91 = vld [vmem:[#allocation5 + $0x180] sm:$0xff]
    %v92 = vld [vmem:[#allocation5 + $0x188] sm:$0xff]
    %v93 = vld [vmem:[#allocation5 + $0x190] sm:$0xff]
    %v94 = vld [vmem:[#allocation5 + $0x198] sm:$0xff]
    %v95 = vld [vmem:[#allocation5 + $0x1a0] sm:$0xff]
    %v96 = vld [vmem:[#allocation5 + $0x1a8] sm:$0xff]
    %v97 = vld [vmem:[#allocation5 + $0x1b0] sm:$0xff]
    %v98 = vld [vmem:[#allocation5 + $0x1b8] sm:$0xff]
    %v99 = vld [vmem:[#allocation5 + $0x1c0] sm:$0xff]
    %v100 = vld [vmem:[#allocation5 + $0x1c8] sm:$0xff]
    %v101 = vld [vmem:[#allocation5 + $0x1d0] sm:$0xff]
    %v102 = vld [vmem:[#allocation5 + $0x1d8] sm:$0xff]
    %v103 = vld [vmem:[#allocation5 + $0x1e0] sm:$0xff]
    %v104 = vld [vmem:[#allocation5 + $0x1e8] sm:$0xff]
    %v105 = vld [vmem:[#allocation5 + $0x1f0] sm:$0xff]
    %v106 = vld [vmem:[#allocation5 + $0x1f8] sm:$0xff]
    %v107 = vld [vmem:[#allocation5 + $0x200] sm:$0xff]
    %v108 = vld [vmem:[#allocation5 + $0x208] sm:$0xff]
    %v109 = vld [vmem:[#allocation5 + $0x210] sm:$0xff]
    %v110 = vld [vmem:[#allocation5 + $0x218] sm:$0xff]
    %v111 = vld [vmem:[#allocation5 + $0x220] sm:$0xff]
    %v112 = vld [vmem:[#allocation5 + $0x228] sm:$0xff]
    %v113 = vld [vmem:[#allocation5 + $0x230] sm:$0xff]
    %v114 = vld [vmem:[#allocation5 + $0x238] sm:$0xff]
    %v115 = vld [vmem:[#allocation5 + $0x240] sm:$0xff]
    %v116 = vld [vmem:[#allocation5 + $0x248] sm:$0xff]
    %v117 = vld [vmem:[#allocation5 + $0x250] sm:$0xff]
    %v118 = vld [vmem:[#allocation5 + $0x258] sm:$0xff]
    %v119 = vld [vmem:[#allocation5 + $0x260] sm:$0xff]
    %v120 = vld [vmem:[#allocation5 + $0x268] sm:$0xff]
    %v121 = vld [vmem:[#allocation5 + $0x270] sm:$0xff]
    %v122 = vld [vmem:[#allocation5 + $0x278] sm:$0xff]
    %v123 = vld [vmem:[#allocation5 + $0x280] sm:$0xff]
    %v124 = vld [vmem:[#allocation5 + $0x288] sm:$0xff]
    %v125 = vld [vmem:[#allocation5 + $0x290] sm:$0xff]
    %v126 = vld [vmem:[#allocation5 + $0x298] sm:$0xff]
    %v127 = vld [vmem:[#allocation5 + $0x2a0] sm:$0xff]
    %v128 = vld [vmem:[#allocation5 + $0x2a8] sm:$0xff]
    %v129 = vld [vmem:[#allocation5 + $0x2b0] sm:$0xff]
    %v130 = vld [vmem:[#allocation5 + $0x2b8] sm:$0xff]
    %v131 = vld [vmem:[#allocation5 + $0x2c0] sm:$0xff]
    %v132 = vld [vmem:[#allocation5 + $0x2c8] sm:$0xff]
    %v133 = vld [vmem:[#allocation5 + $0x2d0] sm:$0xff]
    %v134 = vld [vmem:[#allocation5 + $0x2d8] sm:$0xff]
    %v135 = vld [vmem:[#allocation5 + $0x2e0] sm:$0xff]
    %v136 = vld [vmem:[#allocation5 + $0x2e8] sm:$0xff]
    %v137 = vld [vmem:[#allocation5 + $0x2f0] sm:$0xff]
    %v138 = vld [vmem:[#allocation5 + $0x2f8] sm:$0xff]
    %v139 = vld [vmem:[#allocation5 + $0x300] sm:$0xff]
    %v140 = vld [vmem:[#allocation5 + $0x308] sm:$0xff]
    %v141 = vld [vmem:[#allocation5 + $0x310] sm:$0xff]
    %v142 = vld [vmem:[#allocation5 + $0x318] sm:$0xff]
    %v143 = vld [vmem:[#allocation5 + $0x320] sm:$0xff]
    %v144 = vld [vmem:[#allocation5 + $0x328] sm:$0xff]
    %v145 = vld [vmem:[#allocation5 + $0x330] sm:$0xff]
    %v146 = vld [vmem:[#allocation5 + $0x338] sm:$0xff]
    %v147 = vld [vmem:[#allocation5 + $0x340] sm:$0xff]
    %v148 = vld [vmem:[#allocation5 + $0x348] sm:$0xff]
    %v149 = vld [vmem:[#allocation5 + $0x350] sm:$0xff]
    %v150 = vld [vmem:[#allocation5 + $0x358] sm:$0xff]
    %v151 = vld [vmem:[#allocation5 + $0x360] sm:$0xff]
    %v152 = vld [vmem:[#allocation5 + $0x368] sm:$0xff]
    %v153 = vld [vmem:[#allocation5 + $0x370] sm:$0xff]
    %v154 = vld [vmem:[#allocation5 + $0x378] sm:$0xff]
    %v155 = vld [vmem:[#allocation5 + $0x380] sm:$0xff]
    %v156 = vld [vmem:[#allocation5 + $0x388] sm:$0xff]
    %v157 = vld [vmem:[#allocation5 + $0x390] sm:$0xff]
    %v158 = vld [vmem:[#allocation5 + $0x398] sm:$0xff]
    %v159 = vld [vmem:[#allocation5 + $0x3a0] sm:$0xff]
    %v160 = vld [vmem:[#allocation5 + $0x3a8] sm:$0xff]
    %v161 = vld [vmem:[#allocation5 + $0x3b0] sm:$0xff]
    %v162 = vld [vmem:[#allocation5 + $0x3b8] sm:$0xff]
    %v163 = vld [vmem:[#allocation5 + $0x3c0] sm:$0xff]
    %v164 = vld [vmem:[#allocation5 + $0x3c8] sm:$0xff]
    %v165 = vld [vmem:[#allocation5 + $0x3d0] sm:$0xff]
    %v166 = vld [vmem:[#allocation5 + $0x3d8] sm:$0xff]
    %v167 = vld [vmem:[#allocation5 + $0x3e0] sm:$0xff]
    %v168 = vld [vmem:[#allocation5 + $0x3e8] sm:$0xff]
    %v169 = vld [vmem:[#allocation5 + $0x3f0] sm:$0xff]
    %v170 = vld [vmem:[#allocation5 + $0x3f8] sm:$0xff]
    %v171 = vld [vmem:[#allocation5 + $0x400] sm:$0xff]
    %v172 = vld [vmem:[#allocation5 + $0x408] sm:$0xff]
    %v173 = vld [vmem:[#allocation5 + $0x410] sm:$0xff]
    %v174 = vld [vmem:[#allocation5 + $0x418] sm:$0xff]
    %v175 = vld [vmem:[#allocation5 + $0x420] sm:$0xff]
    %v176 = vld [vmem:[#allocation5 + $0x428] sm:$0xff]
    %v177 = vld [vmem:[#allocation5 + $0x430] sm:$0xff]
    %v178 = vld [vmem:[#allocation5 + $0x438] sm:$0xff]
    %v179 = vld [vmem:[#allocation5 + $0x440] sm:$0xff]
    %v180 = vld [vmem:[#allocation5 + $0x448] sm:$0xff]
    %v181 = vld [vmem:[#allocation5 + $0x450] sm:$0xff]
    %v182 = vld [vmem:[#allocation5 + $0x458] sm:$0xff]
    %v183 = vld [vmem:[#allocation5 + $0x460] sm:$0xff]
    %v184 = vld [vmem:[#allocation5 + $0x468] sm:$0xff]
    %v185 = vld [vmem:[#allocation5 + $0x470] sm:$0xff]
    %v186 = vld [vmem:[#allocation5 + $0x478] sm:$0xff]
    %v187 = vld [vmem:[#allocation5 + $0x480] sm:$0xff]
    %v188 = vld [vmem:[#allocation5 + $0x488] sm:$0xff]
    %v189 = vld [vmem:[#allocation5 + $0x490] sm:$0xff]
    %v190 = vld [vmem:[#allocation5 + $0x498] sm:$0xff]
    %v191 = vld [vmem:[#allocation5 + $0x4a0] sm:$0xff]
    %v192 = vld [vmem:[#allocation5 + $0x4a8] sm:$0xff]
    %v193 = vld [vmem:[#allocation5 + $0x4b0] sm:$0xff]
    %v194 = vld [vmem:[#allocation5 + $0x4b8] sm:$0xff]
    %v195 = vld [vmem:[#allocation5 + $0x4c0] sm:$0xff]
    %v196 = vld [vmem:[#allocation5 + $0x4c8] sm:$0xff]
    %v197 = vld [vmem:[#allocation5 + $0x4d0] sm:$0xff]
    %v198 = vld [vmem:[#allocation5 + $0x4d8] sm:$0xff]
    %v199 = vld [vmem:[#allocation5 + $0x4e0] sm:$0xff]
    %v200 = vld [vmem:[#allocation5 + $0x4e8] sm:$0xff]
    %v201 = vld [vmem:[#allocation5 + $0x4f0] sm:$0xff]
    %v202 = vld [vmem:[#allocation5 + $0x4f8] sm:$0xff]
    %v203 = vld [vmem:[#allocation5 + $0x500] sm:$0xff]
    %v204 = vld [vmem:[#allocation5 + $0x508] sm:$0xff]
    %v205 = vld [vmem:[#allocation5 + $0x510] sm:$0xff]
    %v206 = vld [vmem:[#allocation5 + $0x518] sm:$0xff]
    %v207 = vld [vmem:[#allocation5 + $0x520] sm:$0xff]
    %v208 = vld [vmem:[#allocation5 + $0x528] sm:$0xff]
    %v209 = vld [vmem:[#allocation5 + $0x530] sm:$0xff]
    %v210 = vld [vmem:[#allocation5 + $0x538] sm:$0xff]
    %v211 = vld [vmem:[#allocation5 + $0x540] sm:$0xff]
    %v212 = vld [vmem:[#allocation5 + $0x548] sm:$0xff]
    %v213 = vld [vmem:[#allocation5 + $0x550] sm:$0xff]
    %v214 = vld [vmem:[#allocation5 + $0x558] sm:$0xff]
    %v215 = vld [vmem:[#allocation5 + $0x560] sm:$0xff]
    %v216 = vld [vmem:[#allocation5 + $0x568] sm:$0xff]
    %v217 = vld [vmem:[#allocation5 + $0x570] sm:$0xff]
    %v218 = vld [vmem:[#allocation5 + $0x578] sm:$0xff]
    %v219 = vld [vmem:[#allocation5 + $0x580] sm:$0xff]
    %v220 = vld [vmem:[#allocation5 + $0x588] sm:$0xff]
    %v221 = vld [vmem:[#allocation5 + $0x590] sm:$0xff]
    %v222 = vld [vmem:[#allocation5 + $0x598] sm:$0xff]
    %v223 = vld [vmem:[#allocation5 + $0x5a0] sm:$0xff]
    %v224 = vld [vmem:[#allocation5 + $0x5a8] sm:$0xff]
    %v225 = vld [vmem:[#allocation5 + $0x5b0] sm:$0xff]
    %v226 = vld [vmem:[#allocation5 + $0x5b8] sm:$0xff]
    %v227 = vld [vmem:[#allocation5 + $0x5c0] sm:$0xff]
    %v228 = vld [vmem:[#allocation5 + $0x5c8] sm:$0xff]
    %v229 = vld [vmem:[#allocation5 + $0x5d0] sm:$0xff]
    %v230 = vld [vmem:[#allocation5 + $0x5d8] sm:$0xff]
    %v231 = vld [vmem:[#allocation5 + $0x5e0] sm:$0xff]
    %v232 = vld [vmem:[#allocation5 + $0x5e8] sm:$0xff]
    %v233 = vld [vmem:[#allocation5 + $0x5f0] sm:$0xff]
    %v234 = vld [vmem:[#allocation5 + $0x5f8] sm:$0xff]
    %v235 = vld [vmem:[#allocation5 + $0x600] sm:$0xff]
    %v236 = vld [vmem:[#allocation5 + $0x608] sm:$0xff]
    %v237 = vld [vmem:[#allocation5 + $0x610] sm:$0xff]
    %v238 = vld [vmem:[#allocation5 + $0x618] sm:$0xff]
    %v239 = vld [vmem:[#allocation5 + $0x620] sm:$0xff]
    %v240 = vld [vmem:[#allocation5 + $0x628] sm:$0xff]
    %v241 = vld [vmem:[#allocation5 + $0x630] sm:$0xff]
    %v242 = vld [vmem:[#allocation5 + $0x638] sm:$0xff]
    %v243 = vld [vmem:[#allocation5 + $0x640] sm:$0xff]
    %v244 = vld [vmem:[#allocation5 + $0x648] sm:$0xff]
    %v245 = vld [vmem:[#allocation5 + $0x650] sm:$0xff]
    %v246 = vld [vmem:[#allocation5 + $0x658] sm:$0xff]
    %v247 = vld [vmem:[#allocation5 + $0x660] sm:$0xff]
    %v248 = vld [vmem:[#allocation5 + $0x668] sm:$0xff]
    %v249 = vld [vmem:[#allocation5 + $0x670] sm:$0xff]
    %v250 = vld [vmem:[#allocation5 + $0x678] sm:$0xff]
    %v251 = vld [vmem:[#allocation5 + $0x680] sm:$0xff]
    %v252 = vld [vmem:[#allocation5 + $0x688] sm:$0xff]
    %v253 = vld [vmem:[#allocation5 + $0x690] sm:$0xff]
    %v254 = vld [vmem:[#allocation5 + $0x698] sm:$0xff]
    %v255 = vld [vmem:[#allocation5 + $0x6a0] sm:$0xff]
    %v256 = vld [vmem:[#allocation5 + $0x6a8] sm:$0xff]
    %v257 = vld [vmem:[#allocation5 + $0x6b0] sm:$0xff]
    %v258 = vld [vmem:[#allocation5 + $0x6b8] sm:$0xff]
    %v259 = vld [vmem:[#allocation5 + $0x6c0] sm:$0xff]
    %v260 = vld [vmem:[#allocation5 + $0x6c8] sm:$0xff]
    %v261 = vld [vmem:[#allocation5 + $0x6d0] sm:$0xff]
    %v262 = vld [vmem:[#allocation5 + $0x6d8] sm:$0xff]
    %v263 = vld [vmem:[#allocation5 + $0x6e0] sm:$0xff]
    %v264 = vld [vmem:[#allocation5 + $0x6e8] sm:$0xff]
    %v265 = vld [vmem:[#allocation5 + $0x6f0] sm:$0xff]
    %v266 = vld [vmem:[#allocation5 + $0x6f8] sm:$0xff]
    %v267 = vld [vmem:[#allocation5 + $0x700] sm:$0xff]
    %v268 = vld [vmem:[#allocation5 + $0x708] sm:$0xff]
    %v269 = vld [vmem:[#allocation5 + $0x710] sm:$0xff]
    %v270 = vld [vmem:[#allocation5 + $0x718] sm:$0xff]
    %v271 = vld [vmem:[#allocation5 + $0x720] sm:$0xff]
    %v272 = vld [vmem:[#allocation5 + $0x728] sm:$0xff]
    %v273 = vld [vmem:[#allocation5 + $0x730] sm:$0xff]
    %v274 = vld [vmem:[#allocation5 + $0x738] sm:$0xff]
    %v275 = vld [vmem:[#allocation5 + $0x740] sm:$0xff]
    %v276 = vld [vmem:[#allocation5 + $0x748] sm:$0xff]
    %v277 = vld [vmem:[#allocation5 + $0x750] sm:$0xff]
    %v278 = vld [vmem:[#allocation5 + $0x758] sm:$0xff]
    %v279 = vld [vmem:[#allocation5 + $0x760] sm:$0xff]
    %v280 = vld [vmem:[#allocation5 + $0x768] sm:$0xff]
    %v281 = vld [vmem:[#allocation5 + $0x770] sm:$0xff]
    %v282 = vld [vmem:[#allocation5 + $0x778] sm:$0xff]
    %v283 = vld [vmem:[#allocation5 + $0x780] sm:$0xff]
    %v284 = vld [vmem:[#allocation5 + $0x788] sm:$0xff]
    %v285 = vld [vmem:[#allocation5 + $0x790] sm:$0xff]
    %v286 = vld [vmem:[#allocation5 + $0x798] sm:$0xff]
    %v287 = vld [vmem:[#allocation5 + $0x7a0] sm:$0xff]
    %v288 = vld [vmem:[#allocation5 + $0x7a8] sm:$0xff]
    %v289 = vld [vmem:[#allocation5 + $0x7b0] sm:$0xff]
    %v290 = vld [vmem:[#allocation5 + $0x7b8] sm:$0xff]
    %v291 = vld [vmem:[#allocation5 + $0x7c0] sm:$0xff]
    %v292 = vld [vmem:[#allocation5 + $0x7c8] sm:$0xff]
    %v293 = vld [vmem:[#allocation5 + $0x7d0] sm:$0xff]
    %v294 = vld [vmem:[#allocation5 + $0x7d8] sm:$0xff]
    %v295 = vld [vmem:[#allocation5 + $0x7e0] sm:$0xff]
    %v296 = vld [vmem:[#allocation5 + $0x7e8] sm:$0xff]
    %v297 = vld [vmem:[#allocation5 + $0x7f0] sm:$0xff]
    %v298 = vld [vmem:[#allocation5 + $0x7f8] sm:$0xff]
    %v299 = vld [vmem:[#allocation5 + $0x800] sm:$0xff]
    %v300 = vld [vmem:[#allocation5 + $0x808] sm:$0xff]
    %v301 = vld [vmem:[#allocation5 + $0x810] sm:$0xff]
    %v302 = vld [vmem:[#allocation5 + $0x818] sm:$0xff]
    %v303 = vld [vmem:[#allocation5 + $0x820] sm:$0xff]
    %v304 = vld [vmem:[#allocation5 + $0x828] sm:$0xff]
    %v305 = vld [vmem:[#allocation5 + $0x830] sm:$0xff]
    %v306 = vld [vmem:[#allocation5 + $0x838] sm:$0xff]
    %v307 = vld [vmem:[#allocation5 + $0x840] sm:$0xff]
    %v308 = vld [vmem:[#allocation5 + $0x848] sm:$0xff]
    %v309 = vld [vmem:[#allocation5 + $0x850] sm:$0xff]
    %v310 = vld [vmem:[#allocation5 + $0x858] sm:$0xff]
    %v311 = vld [vmem:[#allocation5 + $0x860] sm:$0xff]
    %v312 = vld [vmem:[#allocation5 + $0x868] sm:$0xff]
    %v313 = vld [vmem:[#allocation5 + $0x870] sm:$0xff]
    %v314 = vld [vmem:[#allocation5 + $0x878] sm:$0xff]
    %v315 = vld [vmem:[#allocation5 + $0x880] sm:$0xff]
    %v316 = vld [vmem:[#allocation5 + $0x888] sm:$0xff]
    %v317 = vld [vmem:[#allocation5 + $0x890] sm:$0xff]
    %v318 = vld [vmem:[#allocation5 + $0x898] sm:$0xff]
    %v319 = vld [vmem:[#allocation5 + $0x8a0] sm:$0xff]
    %v320 = vld [vmem:[#allocation5 + $0x8a8] sm:$0xff]
    %v321 = vld [vmem:[#allocation5 + $0x8b0] sm:$0xff]
    %v322 = vld [vmem:[#allocation5 + $0x8b8] sm:$0xff]
    %v323 = vld [vmem:[#allocation5 + $0x8c0] sm:$0xff]
    %v324 = vld [vmem:[#allocation5 + $0x8c8] sm:$0xff]
    %v325 = vld [vmem:[#allocation5 + $0x8d0] sm:$0xff]
    %v326 = vld [vmem:[#allocation5 + $0x8d8] sm:$0xff]
    %v327 = vld [vmem:[#allocation5 + $0x8e0] sm:$0xff]
    %v328 = vld [vmem:[#allocation5 + $0x8e8] sm:$0xff]
    %v329 = vld [vmem:[#allocation5 + $0x8f0] sm:$0xff]
    %v330 = vld [vmem:[#allocation5 + $0x8f8] sm:$0xff]
    %v331 = vld [vmem:[#allocation5 + $0x900] sm:$0xff]
    %v332 = vld [vmem:[#allocation5 + $0x908] sm:$0xff]
    %v333 = vld [vmem:[#allocation5 + $0x910] sm:$0xff]
    %v334 = vld [vmem:[#allocation5 + $0x918] sm:$0xff]
    %v335 = vld [vmem:[#allocation5 + $0x920] sm:$0xff]
    %v336 = vld [vmem:[#allocation5 + $0x928] sm:$0xff]
    %v337 = vld [vmem:[#allocation5 + $0x930] sm:$0xff]
    %v338 = vld [vmem:[#allocation5 + $0x938] sm:$0xff]
    %v339 = vld [vmem:[#allocation5 + $0x940] sm:$0xff]
    %v340 = vld [vmem:[#allocation5 + $0x948] sm:$0xff]
    %v341 = vld [vmem:[#allocation5 + $0x950] sm:$0xff]
    %v342 = vld [vmem:[#allocation5 + $0x958] sm:$0xff]
    %v343 = vld [vmem:[#allocation5 + $0x960] sm:$0xff]
    %v344 = vld [vmem:[#allocation5 + $0x968] sm:$0xff]
    %v345 = vld [vmem:[#allocation5 + $0x970] sm:$0xff]
    %v346 = vld [vmem:[#allocation5 + $0x978] sm:$0xff]
    %v347 = vld [vmem:[#allocation5 + $0x980] sm:$0xff]
    %v348 = vld [vmem:[#allocation5 + $0x988] sm:$0xff]
    %v349 = vld [vmem:[#allocation5 + $0x990] sm:$0xff]
    %v350 = vld [vmem:[#allocation5 + $0x998] sm:$0xff]
    %v351 = vld [vmem:[#allocation5 + $0x9a0] sm:$0xff]
    %v352 = vld [vmem:[#allocation5 + $0x9a8] sm:$0xff]
    %v353 = vld [vmem:[#allocation5 + $0x9b0] sm:$0xff]
    %v354 = vld [vmem:[#allocation5 + $0x9b8] sm:$0xff]
    %v355 = vld [vmem:[#allocation5 + $0x9c0] sm:$0xff]
    %v356 = vld [vmem:[#allocation5 + $0x9c8] sm:$0xff]
    %v357 = vld [vmem:[#allocation5 + $0x9d0] sm:$0xff]
    %v358 = vld [vmem:[#allocation5 + $0x9d8] sm:$0xff]
    %v359 = vld [vmem:[#allocation5 + $0x9e0] sm:$0xff]
    %v360 = vld [vmem:[#allocation5 + $0x9e8] sm:$0xff]
    %v361 = vld [vmem:[#allocation5 + $0x9f0] sm:$0xff]
    %v362 = vld [vmem:[#allocation5 + $0x9f8] sm:$0xff]
    %v363 = vld [vmem:[#allocation5 + $0xa00] sm:$0xff]
    %v364 = vld [vmem:[#allocation5 + $0xa08] sm:$0xff]
    %v365 = vld [vmem:[#allocation5 + $0xa10] sm:$0xff]
    %v366 = vld [vmem:[#allocation5 + $0xa18] sm:$0xff]
    %v367 = vld [vmem:[#allocation5 + $0xa20] sm:$0xff]
    %v368 = vld [vmem:[#allocation5 + $0xa28] sm:$0xff]
    %v369 = vld [vmem:[#allocation5 + $0xa30] sm:$0xff]
    %v370 = vld [vmem:[#allocation5 + $0xa38] sm:$0xff]
    %v371 = vld [vmem:[#allocation5 + $0xa40] sm:$0xff]
    %v372 = vld [vmem:[#allocation5 + $0xa48] sm:$0xff]
    %v373 = vld [vmem:[#allocation5 + $0xa50] sm:$0xff]
    %v374 = vld [vmem:[#allocation5 + $0xa58] sm:$0xff]
    %v375 = vld [vmem:[#allocation5 + $0xa60] sm:$0xff]
    %v376 = vld [vmem:[#allocation5 + $0xa68] sm:$0xff]
    %v377 = vld [vmem:[#allocation5 + $0xa70] sm:$0xff]
    %v378 = vld [vmem:[#allocation5 + $0xa78] sm:$0xff]
    %v379 = vld [vmem:[#allocation5 + $0xa80] sm:$0xff]
    %v380 = vld [vmem:[#allocation5 + $0xa88] sm:$0xff]
    %v381 = vld [vmem:[#allocation5 + $0xa90] sm:$0xff]
    %v382 = vld [vmem:[#allocation5 + $0xa98] sm:$0xff]
    %v383 = vld [vmem:[#allocation5 + $0xaa0] sm:$0xff]
    %v384 = vld [vmem:[#allocation5 + $0xaa8] sm:$0xff]
    %v385 = vld [vmem:[#allocation5 + $0xab0] sm:$0xff]
    %v386 = vld [vmem:[#allocation5 + $0xab8] sm:$0xff]
    %v387 = vld [vmem:[#allocation5 + $0xac0] sm:$0xff]
    %v388 = vld [vmem:[#allocation5 + $0xac8] sm:$0xff]
    %v389 = vld [vmem:[#allocation5 + $0xad0] sm:$0xff]
    %v390 = vld [vmem:[#allocation5 + $0xad8] sm:$0xff]
    %v391 = vld [vmem:[#allocation5 + $0xae0] sm:$0xff]
    %v392 = vld [vmem:[#allocation5 + $0xae8] sm:$0xff]
    %v393 = vld [vmem:[#allocation5 + $0xaf0] sm:$0xff]
    %v394 = vld [vmem:[#allocation5 + $0xaf8] sm:$0xff]
    %v395 = vld [vmem:[#allocation5 + $0xb00] sm:$0xff]
    %v396 = vld [vmem:[#allocation5 + $0xb08] sm:$0xff]
    %v397 = vld [vmem:[#allocation5 + $0xb10] sm:$0xff]
    %v398 = vld [vmem:[#allocation5 + $0xb18] sm:$0xff]
    %v399 = vld [vmem:[#allocation5 + $0xb20] sm:$0xff]
    %v400 = vld [vmem:[#allocation5 + $0xb28] sm:$0xff]
    %v401 = vld [vmem:[#allocation5 + $0xb30] sm:$0xff]
    %v402 = vld [vmem:[#allocation5 + $0xb38] sm:$0xff]
    %v403 = vld [vmem:[#allocation5 + $0xb40] sm:$0xff]
    %v404 = vld [vmem:[#allocation5 + $0xb48] sm:$0xff]
    %v405 = vld [vmem:[#allocation5 + $0xb50] sm:$0xff]
    %v406 = vld [vmem:[#allocation5 + $0xb58] sm:$0xff]
    %v407 = vld [vmem:[#allocation5 + $0xb60] sm:$0xff]
    %v408 = vld [vmem:[#allocation5 + $0xb68] sm:$0xff]
    %v409 = vld [vmem:[#allocation5 + $0xb70] sm:$0xff]
    %v410 = vld [vmem:[#allocation5 + $0xb78] sm:$0xff]
    %v411 = vld [vmem:[#allocation5 + $0xb80] sm:$0xff]
    %v412 = vld [vmem:[#allocation5 + $0xb88] sm:$0xff]
    %v413 = vld [vmem:[#allocation5 + $0xb90] sm:$0xff]
    %v414 = vld [vmem:[#allocation5 + $0xb98] sm:$0xff]
    %v415 = vld [vmem:[#allocation5 + $0xba0] sm:$0xff]
    %v416 = vld [vmem:[#allocation5 + $0xba8] sm:$0xff]
    %v417 = vld [vmem:[#allocation5 + $0xbb0] sm:$0xff]
    %v418 = vld [vmem:[#allocation5 + $0xbb8] sm:$0xff]
    %v419 = vld [vmem:[#allocation5 + $0xbc0] sm:$0xff]
    %v420 = vld [vmem:[#allocation5 + $0xbc8] sm:$0xff]
    %v421 = vld [vmem:[#allocation5 + $0xbd0] sm:$0xff]
    %v422 = vld [vmem:[#allocation5 + $0xbd8] sm:$0xff]
    %v423 = vld [vmem:[#allocation5 + $0xbe0] sm:$0xff]
    %v424 = vld [vmem:[#allocation5 + $0xbe8] sm:$0xff]
    %v425 = vld [vmem:[#allocation5 + $0xbf0] sm:$0xff]
    %v426 = vld [vmem:[#allocation5 + $0xbf8] sm:$0xff]
    %v427 = vld [vmem:[#allocation5 + $0xc00] sm:$0x3f]
    %v428 = vld [vmem:[#allocation5 + $0xc08] sm:$0x3f]
    %v429 = vld [vmem:[#allocation5 + $0xc10] sm:$0x3f]
    %v430 = vld [vmem:[#allocation5 + $0xc18] sm:$0x3f]
    %v431 = vld [vmem:[#allocation5 + $0xc20] sm:$0x3f]
    %v432 = vld [vmem:[#allocation5 + $0xc28] sm:$0x3f]
    %v433 = vld [vmem:[#allocation5 + $0xc30] sm:$0x3f]
    %v434 = vld [vmem:[#allocation5 + $0xc38] sm:$0x3f]
    %v435 = vld [vmem:[#allocation5 + $0xc40] sm:$0x3f]
    %v436 = vld [vmem:[#allocation5 + $0xc48] sm:$0x3f]
    %v437 = vld [vmem:[#allocation5 + $0xc50] sm:$0x3f]
    %v438 = vld [vmem:[#allocation5 + $0xc58] sm:$0x3f]
    %v439 = vld [vmem:[#allocation5 + $0xc60] sm:$0x3f]
    %v440 = vld [vmem:[#allocation5 + $0xc68] sm:$0x3f]
    %v441 = vld [vmem:[#allocation5 + $0xc70] sm:$0x3f]
    %v442 = vld [vmem:[#allocation5 + $0xc78] sm:$0x3f]
    %v443 = vld [vmem:[#allocation5 + $0xc80] sm:$0x3f]
    %v444 = vld [vmem:[#allocation5 + $0xc88] sm:$0x3f]
    %v445 = vld [vmem:[#allocation5 + $0xc90] sm:$0x3f]
    %v446 = vld [vmem:[#allocation5 + $0xc98] sm:$0x3f]
    %v447 = vld [vmem:[#allocation5 + $0xca0] sm:$0x3f]
    %v448 = vld [vmem:[#allocation5 + $0xca8] sm:$0x3f]
    %v449 = vld [vmem:[#allocation5 + $0xcb0] sm:$0x3f]
    %v450 = vld [vmem:[#allocation5 + $0xcb8] sm:$0x3f]
    %v451 = vld [vmem:[#allocation5 + $0xcc0] sm:$0x3f]
    %v452 = vld [vmem:[#allocation5 + $0xcc8] sm:$0x3f]
    %v453 = vld [vmem:[#allocation5 + $0xcd0] sm:$0x3f]
    %v454 = vld [vmem:[#allocation5 + $0xcd8] sm:$0x3f]
    %v455 = vld [vmem:[#allocation5 + $0xce0] sm:$0x3f]
    %v456 = vld [vmem:[#allocation5 + $0xce8] sm:$0x3f]
    %v457 = vld [vmem:[#allocation5 + $0xcf0] sm:$0x3f]
    %v458 = vld [vmem:[#allocation5 + $0xcf8] sm:$0x3f]
    %v459 = vld [vmem:[#allocation5 + $0xd00] sm:$0x3f]
    %v460 = vld [vmem:[#allocation5 + $0xd08] sm:$0x3f]
    %v461 = vld [vmem:[#allocation5 + $0xd10] sm:$0x3f]
    %v462 = vld [vmem:[#allocation5 + $0xd18] sm:$0x3f]
    %v463 = vld [vmem:[#allocation5 + $0xd20] sm:$0x3f]
    %v464 = vld [vmem:[#allocation5 + $0xd28] sm:$0x3f]
    %v465 = vld [vmem:[#allocation5 + $0xd30] sm:$0x3f]
    %v466 = vld [vmem:[#allocation5 + $0xd38] sm:$0x3f]
    %v467 = vld [vmem:[#allocation5 + $0xd40] sm:$0x3f]
    %v468 = vld [vmem:[#allocation5 + $0xd48] sm:$0x3f]
    %v469 = vld [vmem:[#allocation5 + $0xd50] sm:$0x3f]
    %v470 = vld [vmem:[#allocation5 + $0xd58] sm:$0x3f]
    %v471 = vld [vmem:[#allocation5 + $0xd60] sm:$0x3f]
    %v472 = vld [vmem:[#allocation5 + $0xd68] sm:$0x3f]
    %v473 = vld [vmem:[#allocation5 + $0xd70] sm:$0x3f]
    %v474 = vld [vmem:[#allocation5 + $0xd78] sm:$0x3f]
    %v475 = vld [vmem:[#allocation5 + $0xd80] sm:$0x3f]
    %v476 = vld [vmem:[#allocation5 + $0xd88] sm:$0x3f]
    %v477 = vld [vmem:[#allocation5 + $0xd90] sm:$0x3f]
    %v478 = vld [vmem:[#allocation5 + $0xd98] sm:$0x3f]
    %v479 = vld [vmem:[#allocation5 + $0xda0] sm:$0x3f]
    %v480 = vld [vmem:[#allocation5 + $0xda8] sm:$0x3f]
    %v481 = vld [vmem:[#allocation5 + $0xdb0] sm:$0x3f]
    %v482 = vld [vmem:[#allocation5 + $0xdb8] sm:$0x3f]
    %v483 = vld [vmem:[#allocation5 + $0xdc0] sm:$0x3f]
    %v484 = vld [vmem:[#allocation5 + $0xdc8] sm:$0x3f]
    %v485 = vld [vmem:[#allocation5 + $0xdd0] sm:$0x3f]
    %v486 = vld [vmem:[#allocation5 + $0xdd8] sm:$0x3f]
    %v487 = vld [vmem:[#allocation5 + $0xde0] sm:$0x3f]
    %v488 = vld [vmem:[#allocation5 + $0xde8] sm:$0x3f]
    %v489 = vld [vmem:[#allocation5 + $0xdf0] sm:$0x3f]
    %v490 = vld [vmem:[#allocation5 + $0xdf8] sm:$0x3f]
    %v491 = vld [vmem:[#allocation5 + $0xe00] sm:$0x3f]
    %v492 = vld [vmem:[#allocation5 + $0xe08] sm:$0x3f]
    %v493 = vld [vmem:[#allocation5 + $0xe10] sm:$0x3f]
    %v494 = vld [vmem:[#allocation5 + $0xe18] sm:$0x3f]
    %v495 = vld [vmem:[#allocation5 + $0xe20] sm:$0x3f]
    %v496 = vld [vmem:[#allocation5 + $0xe28] sm:$0x3f]
    %v497 = vld [vmem:[#allocation5 + $0xe30] sm:$0x3f]
    %v498 = vld [vmem:[#allocation5 + $0xe38] sm:$0x3f]
    %v499 = vld [vmem:[#allocation5 + $0xe40] sm:$0x3f]
    %v500 = vld [vmem:[#allocation5 + $0xe48] sm:$0x3f]
    %v501 = vld [vmem:[#allocation5 + $0xe50] sm:$0x3f]
    %v502 = vld [vmem:[#allocation5 + $0xe58] sm:$0x3f]
    %v503 = vld [vmem:[#allocation5 + $0xe60] sm:$0x3f]
    %v504 = vld [vmem:[#allocation5 + $0xe68] sm:$0x3f]
    %v505 = vld [vmem:[#allocation5 + $0xe70] sm:$0x3f]
    %v506 = vld [vmem:[#allocation5 + $0xe78] sm:$0x3f]
    %v507 = vld [vmem:[#allocation5 + $0xe80] sm:$0x3f]
    %v508 = vld [vmem:[#allocation5 + $0xe88] sm:$0x3f]
    %v509 = vld [vmem:[#allocation5 + $0xe90] sm:$0x3f]
    %v510 = vld [vmem:[#allocation5 + $0xe98] sm:$0x3f]
    %v511 = vld [vmem:[#allocation5 + $0xea0] sm:$0x3f]
    %v512 = vld [vmem:[#allocation5 + $0xea8] sm:$0x3f]
    %v513 = vld [vmem:[#allocation5 + $0xeb0] sm:$0x3f]
    %v514 = vld [vmem:[#allocation5 + $0xeb8] sm:$0x3f]
    %v515 = vld [vmem:[#allocation5 + $0xec0] sm:$0x3f]
    %v516 = vld [vmem:[#allocation5 + $0xec8] sm:$0x3f]
    %v517 = vld [vmem:[#allocation5 + $0xed0] sm:$0x3f]
    %v518 = vld [vmem:[#allocation5 + $0xed8] sm:$0x3f]
    %v519 = vld [vmem:[#allocation5 + $0xee0] sm:$0x3f]
    %v520 = vld [vmem:[#allocation5 + $0xee8] sm:$0x3f]
    %v521 = vld [vmem:[#allocation5 + $0xef0] sm:$0x3f]
    %v522 = vld [vmem:[#allocation5 + $0xef8] sm:$0x3f]
    %v523 = vld [vmem:[#allocation5 + $0xf00] sm:$0x3f]
    %v524 = vld [vmem:[#allocation5 + $0xf08] sm:$0x3f]
    %v525 = vld [vmem:[#allocation5 + $0xf10] sm:$0x3f]
    %v526 = vld [vmem:[#allocation5 + $0xf18] sm:$0x3f]
    %v527 = vld [vmem:[#allocation5 + $0xf20] sm:$0x3f]
    %v528 = vld [vmem:[#allocation5 + $0xf28] sm:$0x3f]
    %v529 = vld [vmem:[#allocation5 + $0xf30] sm:$0x3f]
    %v530 = vld [vmem:[#allocation5 + $0xf38] sm:$0x3f]
    %v531 = vld [vmem:[#allocation5 + $0xf40] sm:$0x3f]
    %v532 = vld [vmem:[#allocation5 + $0xf48] sm:$0x3f]
    %v533 = vld [vmem:[#allocation5 + $0xf50] sm:$0x3f]
    %v534 = vld [vmem:[#allocation5 + $0xf58] sm:$0x3f]
    %v535 = vld [vmem:[#allocation5 + $0xf60] sm:$0x3f]
    %v536 = vld [vmem:[#allocation5 + $0xf68] sm:$0x3f]
    %v537 = vld [vmem:[#allocation5 + $0xf70] sm:$0x3f]
    %v538 = vld [vmem:[#allocation5 + $0xf78] sm:$0x3f]
    %v539 = vld [vmem:[#allocation5 + $0xf80] sm:$0x3f]
    %v540 = vld [vmem:[#allocation5 + $0xf88] sm:$0x3f]
    %v541 = vld [vmem:[#allocation5 + $0xf90] sm:$0x3f]
    %v542 = vld [vmem:[#allocation5 + $0xf98] sm:$0x3f]
    %v543 = vld [vmem:[#allocation5 + $0xfa0] sm:$0x3f]
    %v544 = vld [vmem:[#allocation5 + $0xfa8] sm:$0x3f]
    %v545 = vld [vmem:[#allocation5 + $0xfb0] sm:$0x3f]
    %v546 = vld [vmem:[#allocation5 + $0xfb8] sm:$0x3f]
    %v547 = vld [vmem:[#allocation5 + $0xfc0] sm:$0x3f]
    %v548 = vld [vmem:[#allocation5 + $0xfc8] sm:$0x3f]
    %v549 = vld [vmem:[#allocation5 + $0xfd0] sm:$0x3f]
    %v550 = vld [vmem:[#allocation5 + $0xfd8] sm:$0x3f]
    %v551 = vld [vmem:[#allocation5 + $0xfe0] sm:$0x3f]
    %v552 = vld [vmem:[#allocation5 + $0xfe8] sm:$0x3f]
    %v553 = vld [vmem:[#allocation5 + $0xff0] sm:$0x3f]
    %v554 = vld [vmem:[#allocation5 + $0xff8] sm:$0x3f]
    %vm555 = vcmask 244736
    %v557 = vsel %vm555, %v42, 0
    %vm559 = vcmask 1045504
    %v561 = vsel %vm559, %v427, 0
    %v564 = vsel %vm559, %v428, 0
    %v567 = vsel %vm559, %v429, 0
    %v570 = vsel %vm559, %v430, 0
    %v573 = vsel %vm559, %v431, 0
    %v576 = vsel %vm559, %v432, 0
    %v579 = vsel %vm559, %v433, 0
    %v582 = vsel %vm559, %v434, 0
    %v585 = vsel %vm559, %v435, 0
    %v588 = vsel %vm559, %v436, 0
    %v591 = vsel %vm559, %v437, 0
    %v594 = vsel %vm559, %v438, 0
    %v597 = vsel %vm559, %v439, 0
    %v600 = vsel %vm559, %v440, 0
    %v603 = vsel %vm559, %v441, 0
    %v606 = vsel %vm559, %v442, 0
    %v609 = vsel %vm559, %v443, 0
    %v612 = vsel %vm559, %v444, 0
    %v615 = vsel %vm559, %v445, 0
    %v618 = vsel %vm559, %v446, 0
    %v621 = vsel %vm559, %v447, 0
    %v624 = vsel %vm559, %v448, 0
    %v627 = vsel %vm559, %v449, 0
    %v630 = vsel %vm559, %v450, 0
    %v633 = vsel %vm559, %v451, 0
    %v636 = vsel %vm559, %v452, 0
    %v639 = vsel %vm559, %v453, 0
    %v642 = vsel %vm559, %v454, 0
    %v645 = vsel %vm559, %v455, 0
    %v648 = vsel %vm559, %v456, 0
    %v651 = vsel %vm559, %v457, 0
    %v654 = vsel %vm559, %v458, 0
    %v657 = vsel %vm559, %v459, 0
    %v660 = vsel %vm559, %v460, 0
    %v663 = vsel %vm559, %v461, 0
    %v666 = vsel %vm559, %v462, 0
    %v669 = vsel %vm559, %v463, 0
    %v672 = vsel %vm559, %v464, 0
    %v675 = vsel %vm559, %v465, 0
    %v678 = vsel %vm559, %v466, 0
    %v681 = vsel %vm559, %v467, 0
    %v684 = vsel %vm559, %v468, 0
    %v687 = vsel %vm559, %v469, 0
    %v690 = vsel %vm559, %v470, 0
    %v693 = vsel %vm559, %v471, 0
    %v696 = vsel %vm559, %v472, 0
    %v699 = vsel %vm559, %v473, 0
    %v702 = vsel %vm559, %v474, 0
    %v705 = vsel %vm559, %v475, 0
    %v708 = vsel %vm559, %v476, 0
    %v711 = vsel %vm559, %v477, 0
    %v714 = vsel %vm559, %v478, 0
    %v717 = vsel %vm559, %v479, 0
    %v720 = vsel %vm559, %v480, 0
    %v723 = vsel %vm559, %v481, 0
    %v726 = vsel %vm559, %v482, 0
    %v729 = vsel %vm559, %v483, 0
    %v732 = vsel %vm559, %v484, 0
    %v735 = vsel %vm559, %v485, 0
    %v738 = vsel %vm559, %v486, 0
    %v741 = vsel %vm559, %v487, 0
    %v744 = vsel %vm559, %v488, 0
    %v747 = vsel %vm559, %v489, 0
    %v750 = vsel %vm559, %v490, 0
    %v753 = vsel %vm559, %v491, 0
    %v756 = vsel %vm559, %v492, 0
    %v759 = vsel %vm559, %v493, 0
    %v762 = vsel %vm559, %v494, 0
    %v765 = vsel %vm559, %v495, 0
    %v768 = vsel %vm559, %v496, 0
    %v771 = vsel %vm559, %v497, 0
    %v774 = vsel %vm559, %v498, 0
    %v777 = vsel %vm559, %v499, 0
    %v780 = vsel %vm559, %v500, 0
    %v783 = vsel %vm559, %v501, 0
    %v786 = vsel %vm559, %v502, 0
    %v789 = vsel %vm559, %v503, 0
    %v792 = vsel %vm559, %v504, 0
    %v795 = vsel %vm559, %v505, 0
    %v798 = vsel %vm559, %v506, 0
    %v801 = vsel %vm559, %v507, 0
    %v804 = vsel %vm559, %v508, 0
    %v807 = vsel %vm559, %v509, 0
    %v810 = vsel %vm559, %v510, 0
    %v813 = vsel %vm559, %v511, 0
    %v816 = vsel %vm559, %v512, 0
    %v819 = vsel %vm559, %v513, 0
    %v822 = vsel %vm559, %v514, 0
    %v825 = vsel %vm559, %v515, 0
    %v828 = vsel %vm559, %v516, 0
    %v831 = vsel %vm559, %v517, 0
    %v834 = vsel %vm559, %v518, 0
    %v837 = vsel %vm559, %v519, 0
    %v840 = vsel %vm559, %v520, 0
    %v843 = vsel %vm559, %v521, 0
    %v846 = vsel %vm559, %v522, 0
    %v849 = vsel %vm559, %v523, 0
    %v852 = vsel %vm559, %v524, 0
    %v855 = vsel %vm559, %v525, 0
    %v858 = vsel %vm559, %v526, 0
    %v861 = vsel %vm559, %v527, 0
    %v864 = vsel %vm559, %v528, 0
    %v867 = vsel %vm559, %v529, 0
    %v870 = vsel %vm559, %v530, 0
    %v873 = vsel %vm559, %v531, 0
    %v876 = vsel %vm559, %v532, 0
    %v879 = vsel %vm559, %v533, 0
    %v882 = vsel %vm559, %v534, 0
    %v885 = vsel %vm559, %v535, 0
    %v888 = vsel %vm559, %v536, 0
    %v891 = vsel %vm559, %v537, 0
    %v894 = vsel %vm559, %v538, 0
    %v897 = vsel %vm559, %v539, 0
    %v900 = vsel %vm559, %v540, 0
    %v903 = vsel %vm559, %v541, 0
    %v906 = vsel %vm559, %v542, 0
    %v909 = vsel %vm559, %v543, 0
    %v912 = vsel %vm559, %v544, 0
    %v915 = vsel %vm559, %v545, 0
    %v918 = vsel %vm559, %v546, 0
    %v921 = vsel %vm559, %v547, 0
    %v924 = vsel %vm559, %v548, 0
    %v927 = vsel %vm559, %v549, 0
    %v930 = vsel %vm559, %v550, 0
    %v933 = vsel %vm559, %v551, 0
    %v936 = vsel %vm559, %v552, 0
    %v939 = vsel %vm559, %v553, 0
    %v942 = vsel %vm559, %v554, 0
    %944 = vmatpush.msra.mxu0 0.0
    %945 = vmatpush.msra.mxu0 0.0
    %946 = vmatpush.msra.mxu0 0.0
    %947 = vmatpush.msra.mxu0 0.0
    %948 = vmatpush.msra.mxu0 0.0
    %949 = vmatpush.msra.mxu0 0.0
    %950 = vmatpush.msra.mxu0 0.0
    %951 = vmatpush.msra.mxu0 0.0
    %952 = vmatpush.msra.mxu0 0.0
    %953 = vmatpush.msra.mxu0 0.0
    %954 = vmatpush.msra.mxu0 0.0
    %955 = vmatpush.msra.mxu0 0.0
    %956 = vmatpush.msra.mxu0 %v561
    %957 = vmatpush.msra.mxu0 %v299
    %958 = vmatpush.msra.mxu0 %v171
    %959 = vmatpush.msra.mxu0 %v43
    %960 = vmatmul.f32.gmra.mxu0 %v557
    %v961 = vpop.f32.mrf.mxu0
    %v962 = vadd.f32 0.0, %v961
    %963 = vdwg.mxu0
    %964 = vmatpush.msra.mxu0 0.0
    %965 = vmatpush.msra.mxu0 0.0
    %966 = vmatpush.msra.mxu0 0.0
    %967 = vmatpush.msra.mxu0 0.0
    %968 = vmatpush.msra.mxu0 0.0
    %969 = vmatpush.msra.mxu0 0.0
    %970 = vmatpush.msra.mxu0 0.0
    %971 = vmatpush.msra.mxu0 0.0
    %972 = vmatpush.msra.mxu0 0.0
    %973 = vmatpush.msra.mxu0 0.0
    %974 = vmatpush.msra.mxu0 0.0
    %975 = vmatpush.msra.mxu0 0.0
    %976 = vmatpush.msra.mxu0 %v564
    %977 = vmatpush.msra.mxu0 %v300
    %978 = vmatpush.msra.mxu0 %v172
    %979 = vmatpush.msra.mxu0 %v44
    %980 = vmatmul.f32.gmra.mxu0 %v557
    %v981 = vpop.f32.mrf.mxu0
    %v982 = vadd.f32 0.0, %v981
    %983 = vdwg.mxu0
    %984 = vmatpush.msra.mxu0 0.0
    %985 = vmatpush.msra.mxu0 0.0
    %986 = vmatpush.msra.mxu0 0.0
    %987 = vmatpush.msra.mxu0 0.0
    %988 = vmatpush.msra.mxu0 0.0
    %989 = vmatpush.msra.mxu0 0.0
    %990 = vmatpush.msra.mxu0 0.0
    %991 = vmatpush.msra.mxu0 0.0
    %992 = vmatpush.msra.mxu0 0.0
    %993 = vmatpush.msra.mxu0 0.0
    %994 = vmatpush.msra.mxu0 0.0
    %995 = vmatpush.msra.mxu0 0.0
    %996 = vmatpush.msra.mxu0 %v567
    %997 = vmatpush.msra.mxu0 %v301
    %998 = vmatpush.msra.mxu0 %v173
    %999 = vmatpush.msra.mxu0 %v45
    %1000 = vmatmul.f32.gmra.mxu0 %v557
    %v1001 = vpop.f32.mrf.mxu0
    %v1002 = vadd.f32 0.0, %v1001
    %1003 = vdwg.mxu0
    %1004 = vmatpush.msra.mxu0 0.0
    %1005 = vmatpush.msra.mxu0 0.0
    %1006 = vmatpush.msra.mxu0 0.0
    %1007 = vmatpush.msra.mxu0 0.0
    %1008 = vmatpush.msra.mxu0 0.0
    %1009 = vmatpush.msra.mxu0 0.0
    %1010 = vmatpush.msra.mxu0 0.0
    %1011 = vmatpush.msra.mxu0 0.0
    %1012 = vmatpush.msra.mxu0 0.0
    %1013 = vmatpush.msra.mxu0 0.0
    %1014 = vmatpush.msra.mxu0 0.0
    %1015 = vmatpush.msra.mxu0 0.0
    %1016 = vmatpush.msra.mxu0 %v570
    %1017 = vmatpush.msra.mxu0 %v302
    %1018 = vmatpush.msra.mxu0 %v174
    %1019 = vmatpush.msra.mxu0 %v46
    %1020 = vmatmul.f32.gmra.mxu0 %v557
    %v1021 = vpop.f32.mrf.mxu0
    %v1022 = vadd.f32 0.0, %v1021
    %1023 = vdwg.mxu0
    %1024 = vmatpush.msra.mxu0 0.0
    %1025 = vmatpush.msra.mxu0 0.0
    %1026 = vmatpush.msra.mxu0 0.0
    %1027 = vmatpush.msra.mxu0 0.0
    %1028 = vmatpush.msra.mxu0 0.0
    %1029 = vmatpush.msra.mxu0 0.0
    %1030 = vmatpush.msra.mxu0 0.0
    %1031 = vmatpush.msra.mxu0 0.0
    %1032 = vmatpush.msra.mxu0 0.0
    %1033 = vmatpush.msra.mxu0 0.0
    %1034 = vmatpush.msra.mxu0 0.0
    %1035 = vmatpush.msra.mxu0 0.0
    %1036 = vmatpush.msra.mxu0 %v573
    %1037 = vmatpush.msra.mxu0 %v303
    %1038 = vmatpush.msra.mxu0 %v175
    %1039 = vmatpush.msra.mxu0 %v47
    %1040 = vmatmul.f32.gmra.mxu0 %v557
    %v1041 = vpop.f32.mrf.mxu0
    %v1042 = vadd.f32 0.0, %v1041
    %1043 = vdwg.mxu0
    %1044 = vmatpush.msra.mxu0 0.0
    %1045 = vmatpush.msra.mxu0 0.0
    %1046 = vmatpush.msra.mxu0 0.0
    %1047 = vmatpush.msra.mxu0 0.0
    %1048 = vmatpush.msra.mxu0 0.0
    %1049 = vmatpush.msra.mxu0 0.0
    %1050 = vmatpush.msra.mxu0 0.0
    %1051 = vmatpush.msra.mxu0 0.0
    %1052 = vmatpush.msra.mxu0 0.0
    %1053 = vmatpush.msra.mxu0 0.0
    %1054 = vmatpush.msra.mxu0 0.0
    %1055 = vmatpush.msra.mxu0 0.0
    %1056 = vmatpush.msra.mxu0 %v576
    %1057 = vmatpush.msra.mxu0 %v304
    %1058 = vmatpush.msra.mxu0 %v176
    %1059 = vmatpush.msra.mxu0 %v48
    %1060 = vmatmul.f32.gmra.mxu0 %v557
    %v1061 = vpop.f32.mrf.mxu0
    %v1062 = vadd.f32 0.0, %v1061
    %1063 = vdwg.mxu0
    %1064 = vmatpush.msra.mxu0 0.0
    %1065 = vmatpush.msra.mxu0 0.0
    %1066 = vmatpush.msra.mxu0 0.0
    %1067 = vmatpush.msra.mxu0 0.0
    %1068 = vmatpush.msra.mxu0 0.0
    %1069 = vmatpush.msra.mxu0 0.0
    %1070 = vmatpush.msra.mxu0 0.0
    %1071 = vmatpush.msra.mxu0 0.0
    %1072 = vmatpush.msra.mxu0 0.0
    %1073 = vmatpush.msra.mxu0 0.0
    %1074 = vmatpush.msra.mxu0 0.0
    %1075 = vmatpush.msra.mxu0 0.0
    %1076 = vmatpush.msra.mxu0 %v579
    %1077 = vmatpush.msra.mxu0 %v305
    %1078 = vmatpush.msra.mxu0 %v177
    %1079 = vmatpush.msra.mxu0 %v49
    %1080 = vmatmul.f32.gmra.mxu0 %v557
    %v1081 = vpop.f32.mrf.mxu0
    %v1082 = vadd.f32 0.0, %v1081
    %1083 = vdwg.mxu0
    %1084 = vmatpush.msra.mxu0 0.0
    %1085 = vmatpush.msra.mxu0 0.0
    %1086 = vmatpush.msra.mxu0 0.0
    %1087 = vmatpush.msra.mxu0 0.0
    %1088 = vmatpush.msra.mxu0 0.0
    %1089 = vmatpush.msra.mxu0 0.0
    %1090 = vmatpush.msra.mxu0 0.0
    %1091 = vmatpush.msra.mxu0 0.0
    %1092 = vmatpush.msra.mxu0 0.0
    %1093 = vmatpush.msra.mxu0 0.0
    %1094 = vmatpush.msra.mxu0 0.0
    %1095 = vmatpush.msra.mxu0 0.0
    %1096 = vmatpush.msra.mxu0 %v582
    %1097 = vmatpush.msra.mxu0 %v306
    %1098 = vmatpush.msra.mxu0 %v178
    %1099 = vmatpush.msra.mxu0 %v50
    %1100 = vmatmul.f32.gmra.mxu0 %v557
    %v1101 = vpop.f32.mrf.mxu0
    %v1102 = vadd.f32 0.0, %v1101
    %1103 = vdwg.mxu0
    %1104 = vmatpush.msra.mxu0 0.0
    %1105 = vmatpush.msra.mxu0 0.0
    %1106 = vmatpush.msra.mxu0 0.0
    %1107 = vmatpush.msra.mxu0 0.0
    %1108 = vmatpush.msra.mxu0 0.0
    %1109 = vmatpush.msra.mxu0 0.0
    %1110 = vmatpush.msra.mxu0 0.0
    %1111 = vmatpush.msra.mxu0 0.0
    %1112 = vmatpush.msra.mxu0 0.0
    %1113 = vmatpush.msra.mxu0 0.0
    %1114 = vmatpush.msra.mxu0 0.0
    %1115 = vmatpush.msra.mxu0 0.0
    %1116 = vmatpush.msra.mxu0 %v585
    %1117 = vmatpush.msra.mxu0 %v307
    %1118 = vmatpush.msra.mxu0 %v179
    %1119 = vmatpush.msra.mxu0 %v51
    %1120 = vmatmul.f32.gmra.mxu0 %v557
    %v1121 = vpop.f32.mrf.mxu0
    %v1122 = vadd.f32 0.0, %v1121
    %1123 = vdwg.mxu0
    %1124 = vmatpush.msra.mxu0 0.0
    %1125 = vmatpush.msra.mxu0 0.0
    %1126 = vmatpush.msra.mxu0 0.0
    %1127 = vmatpush.msra.mxu0 0.0
    %1128 = vmatpush.msra.mxu0 0.0
    %1129 = vmatpush.msra.mxu0 0.0
    %1130 = vmatpush.msra.mxu0 0.0
    %1131 = vmatpush.msra.mxu0 0.0
    %1132 = vmatpush.msra.mxu0 0.0
    %1133 = vmatpush.msra.mxu0 0.0
    %1134 = vmatpush.msra.mxu0 0.0
    %1135 = vmatpush.msra.mxu0 0.0
    %1136 = vmatpush.msra.mxu0 %v588
    %1137 = vmatpush.msra.mxu0 %v308
    %1138 = vmatpush.msra.mxu0 %v180
    %1139 = vmatpush.msra.mxu0 %v52
    %1140 = vmatmul.f32.gmra.mxu0 %v557
    %v1141 = vpop.f32.mrf.mxu0
    %v1142 = vadd.f32 0.0, %v1141
    %1143 = vdwg.mxu0
    %1144 = vmatpush.msra.mxu0 0.0
    %1145 = vmatpush.msra.mxu0 0.0
    %1146 = vmatpush.msra.mxu0 0.0
    %1147 = vmatpush.msra.mxu0 0.0
    %1148 = vmatpush.msra.mxu0 0.0
    %1149 = vmatpush.msra.mxu0 0.0
    %1150 = vmatpush.msra.mxu0 0.0
    %1151 = vmatpush.msra.mxu0 0.0
    %1152 = vmatpush.msra.mxu0 0.0
    %1153 = vmatpush.msra.mxu0 0.0
    %1154 = vmatpush.msra.mxu0 0.0
    %1155 = vmatpush.msra.mxu0 0.0
    %1156 = vmatpush.msra.mxu0 %v591
    %1157 = vmatpush.msra.mxu0 %v309
    %1158 = vmatpush.msra.mxu0 %v181
    %1159 = vmatpush.msra.mxu0 %v53
    %1160 = vmatmul.f32.gmra.mxu0 %v557
    %v1161 = vpop.f32.mrf.mxu0
    %v1162 = vadd.f32 0.0, %v1161
    %1163 = vdwg.mxu0
    %1164 = vmatpush.msra.mxu0 0.0
    %1165 = vmatpush.msra.mxu0 0.0
    %1166 = vmatpush.msra.mxu0 0.0
    %1167 = vmatpush.msra.mxu0 0.0
    %1168 = vmatpush.msra.mxu0 0.0
    %1169 = vmatpush.msra.mxu0 0.0
    %1170 = vmatpush.msra.mxu0 0.0
    %1171 = vmatpush.msra.mxu0 0.0
    %1172 = vmatpush.msra.mxu0 0.0
    %1173 = vmatpush.msra.mxu0 0.0
    %1174 = vmatpush.msra.mxu0 0.0
    %1175 = vmatpush.msra.mxu0 0.0
    %1176 = vmatpush.msra.mxu0 %v594
    %1177 = vmatpush.msra.mxu0 %v310
    %1178 = vmatpush.msra.mxu0 %v182
    %1179 = vmatpush.msra.mxu0 %v54
    %1180 = vmatmul.f32.gmra.mxu0 %v557
    %v1181 = vpop.f32.mrf.mxu0
    %v1182 = vadd.f32 0.0, %v1181
    %1183 = vdwg.mxu0
    %1184 = vmatpush.msra.mxu0 0.0
    %1185 = vmatpush.msra.mxu0 0.0
    %1186 = vmatpush.msra.mxu0 0.0
    %1187 = vmatpush.msra.mxu0 0.0
    %1188 = vmatpush.msra.mxu0 0.0
    %1189 = vmatpush.msra.mxu0 0.0
    %1190 = vmatpush.msra.mxu0 0.0
    %1191 = vmatpush.msra.mxu0 0.0
    %1192 = vmatpush.msra.mxu0 0.0
    %1193 = vmatpush.msra.mxu0 0.0
    %1194 = vmatpush.msra.mxu0 0.0
    %1195 = vmatpush.msra.mxu0 0.0
    %1196 = vmatpush.msra.mxu0 %v597
    %1197 = vmatpush.msra.mxu0 %v311
    %1198 = vmatpush.msra.mxu0 %v183
    %1199 = vmatpush.msra.mxu0 %v55
    %1200 = vmatmul.f32.gmra.mxu0 %v557
    %v1201 = vpop.f32.mrf.mxu0
    %v1202 = vadd.f32 0.0, %v1201
    %1203 = vdwg.mxu0
    %1204 = vmatpush.msra.mxu0 0.0
    %1205 = vmatpush.msra.mxu0 0.0
    %1206 = vmatpush.msra.mxu0 0.0
    %1207 = vmatpush.msra.mxu0 0.0
    %1208 = vmatpush.msra.mxu0 0.0
    %1209 = vmatpush.msra.mxu0 0.0
    %1210 = vmatpush.msra.mxu0 0.0
    %1211 = vmatpush.msra.mxu0 0.0
    %1212 = vmatpush.msra.mxu0 0.0
    %1213 = vmatpush.msra.mxu0 0.0
    %1214 = vmatpush.msra.mxu0 0.0
    %1215 = vmatpush.msra.mxu0 0.0
    %1216 = vmatpush.msra.mxu0 %v600
    %1217 = vmatpush.msra.mxu0 %v312
    %1218 = vmatpush.msra.mxu0 %v184
    %1219 = vmatpush.msra.mxu0 %v56
    %1220 = vmatmul.f32.gmra.mxu0 %v557
    %v1221 = vpop.f32.mrf.mxu0
    %v1222 = vadd.f32 0.0, %v1221
    %1223 = vdwg.mxu0
    %1224 = vmatpush.msra.mxu0 0.0
    %1225 = vmatpush.msra.mxu0 0.0
    %1226 = vmatpush.msra.mxu0 0.0
    %1227 = vmatpush.msra.mxu0 0.0
    %1228 = vmatpush.msra.mxu0 0.0
    %1229 = vmatpush.msra.mxu0 0.0
    %1230 = vmatpush.msra.mxu0 0.0
    %1231 = vmatpush.msra.mxu0 0.0
    %1232 = vmatpush.msra.mxu0 0.0
    %1233 = vmatpush.msra.mxu0 0.0
    %1234 = vmatpush.msra.mxu0 0.0
    %1235 = vmatpush.msra.mxu0 0.0
    %1236 = vmatpush.msra.mxu0 %v603
    %1237 = vmatpush.msra.mxu0 %v313
    %1238 = vmatpush.msra.mxu0 %v185
    %1239 = vmatpush.msra.mxu0 %v57
    %1240 = vmatmul.f32.gmra.mxu0 %v557
    %v1241 = vpop.f32.mrf.mxu0
    %v1242 = vadd.f32 0.0, %v1241
    %1243 = vdwg.mxu0
    %1244 = vmatpush.msra.mxu0 0.0
    %1245 = vmatpush.msra.mxu0 0.0
    %1246 = vmatpush.msra.mxu0 0.0
    %1247 = vmatpush.msra.mxu0 0.0
    %1248 = vmatpush.msra.mxu0 0.0
    %1249 = vmatpush.msra.mxu0 0.0
    %1250 = vmatpush.msra.mxu0 0.0
    %1251 = vmatpush.msra.mxu0 0.0
    %1252 = vmatpush.msra.mxu0 0.0
    %1253 = vmatpush.msra.mxu0 0.0
    %1254 = vmatpush.msra.mxu0 0.0
    %1255 = vmatpush.msra.mxu0 0.0
    %1256 = vmatpush.msra.mxu0 %v606
    %1257 = vmatpush.msra.mxu0 %v314
    %1258 = vmatpush.msra.mxu0 %v186
    %1259 = vmatpush.msra.mxu0 %v58
    %1260 = vmatmul.f32.gmra.mxu0 %v557
    %v1261 = vpop.f32.mrf.mxu0
    %v1262 = vadd.f32 0.0, %v1261
    %1263 = vdwg.mxu0
    %1264 = vmatpush.msra.mxu0 0.0
    %1265 = vmatpush.msra.mxu0 0.0
    %1266 = vmatpush.msra.mxu0 0.0
    %1267 = vmatpush.msra.mxu0 0.0
    %1268 = vmatpush.msra.mxu0 0.0
    %1269 = vmatpush.msra.mxu0 0.0
    %1270 = vmatpush.msra.mxu0 0.0
    %1271 = vmatpush.msra.mxu0 0.0
    %1272 = vmatpush.msra.mxu0 0.0
    %1273 = vmatpush.msra.mxu0 0.0
    %1274 = vmatpush.msra.mxu0 0.0
    %1275 = vmatpush.msra.mxu0 0.0
    %1276 = vmatpush.msra.mxu0 %v609
    %1277 = vmatpush.msra.mxu0 %v315
    %1278 = vmatpush.msra.mxu0 %v187
    %1279 = vmatpush.msra.mxu0 %v59
    %1280 = vmatmul.f32.gmra.mxu0 %v557
    %v1281 = vpop.f32.mrf.mxu0
    %v1282 = vadd.f32 0.0, %v1281
    %1283 = vdwg.mxu0
    %1284 = vmatpush.msra.mxu0 0.0
    %1285 = vmatpush.msra.mxu0 0.0
    %1286 = vmatpush.msra.mxu0 0.0
    %1287 = vmatpush.msra.mxu0 0.0
    %1288 = vmatpush.msra.mxu0 0.0
    %1289 = vmatpush.msra.mxu0 0.0
    %1290 = vmatpush.msra.mxu0 0.0
    %1291 = vmatpush.msra.mxu0 0.0
    %1292 = vmatpush.msra.mxu0 0.0
    %1293 = vmatpush.msra.mxu0 0.0
    %1294 = vmatpush.msra.mxu0 0.0
    %1295 = vmatpush.msra.mxu0 0.0
    %1296 = vmatpush.msra.mxu0 %v612
    %1297 = vmatpush.msra.mxu0 %v316
    %1298 = vmatpush.msra.mxu0 %v188
    %1299 = vmatpush.msra.mxu0 %v60
    %1300 = vmatmul.f32.gmra.mxu0 %v557
    %v1301 = vpop.f32.mrf.mxu0
    %v1302 = vadd.f32 0.0, %v1301
    %1303 = vdwg.mxu0
    %1304 = vmatpush.msra.mxu0 0.0
    %1305 = vmatpush.msra.mxu0 0.0
    %1306 = vmatpush.msra.mxu0 0.0
    %1307 = vmatpush.msra.mxu0 0.0
    %1308 = vmatpush.msra.mxu0 0.0
    %1309 = vmatpush.msra.mxu0 0.0
    %1310 = vmatpush.msra.mxu0 0.0
    %1311 = vmatpush.msra.mxu0 0.0
    %1312 = vmatpush.msra.mxu0 0.0
    %1313 = vmatpush.msra.mxu0 0.0
    %1314 = vmatpush.msra.mxu0 0.0
    %1315 = vmatpush.msra.mxu0 0.0
    %1316 = vmatpush.msra.mxu0 %v615
    %1317 = vmatpush.msra.mxu0 %v317
    %1318 = vmatpush.msra.mxu0 %v189
    %1319 = vmatpush.msra.mxu0 %v61
    %1320 = vmatmul.f32.gmra.mxu0 %v557
    %v1321 = vpop.f32.mrf.mxu0
    %v1322 = vadd.f32 0.0, %v1321
    %1323 = vdwg.mxu0
    %1324 = vmatpush.msra.mxu0 0.0
    %1325 = vmatpush.msra.mxu0 0.0
    %1326 = vmatpush.msra.mxu0 0.0
    %1327 = vmatpush.msra.mxu0 0.0
    %1328 = vmatpush.msra.mxu0 0.0
    %1329 = vmatpush.msra.mxu0 0.0
    %1330 = vmatpush.msra.mxu0 0.0
    %1331 = vmatpush.msra.mxu0 0.0
    %1332 = vmatpush.msra.mxu0 0.0
    %1333 = vmatpush.msra.mxu0 0.0
    %1334 = vmatpush.msra.mxu0 0.0
    %1335 = vmatpush.msra.mxu0 0.0
    %1336 = vmatpush.msra.mxu0 %v618
    %1337 = vmatpush.msra.mxu0 %v318
    %1338 = vmatpush.msra.mxu0 %v190
    %1339 = vmatpush.msra.mxu0 %v62
    %1340 = vmatmul.f32.gmra.mxu0 %v557
    %v1341 = vpop.f32.mrf.mxu0
    %v1342 = vadd.f32 0.0, %v1341
    %1343 = vdwg.mxu0
    %1344 = vmatpush.msra.mxu0 0.0
    %1345 = vmatpush.msra.mxu0 0.0
    %1346 = vmatpush.msra.mxu0 0.0
    %1347 = vmatpush.msra.mxu0 0.0
    %1348 = vmatpush.msra.mxu0 0.0
    %1349 = vmatpush.msra.mxu0 0.0
    %1350 = vmatpush.msra.mxu0 0.0
    %1351 = vmatpush.msra.mxu0 0.0
    %1352 = vmatpush.msra.mxu0 0.0
    %1353 = vmatpush.msra.mxu0 0.0
    %1354 = vmatpush.msra.mxu0 0.0
    %1355 = vmatpush.msra.mxu0 0.0
    %1356 = vmatpush.msra.mxu0 %v621
    %1357 = vmatpush.msra.mxu0 %v319
    %1358 = vmatpush.msra.mxu0 %v191
    %1359 = vmatpush.msra.mxu0 %v63
    %1360 = vmatmul.f32.gmra.mxu0 %v557
    %v1361 = vpop.f32.mrf.mxu0
    %v1362 = vadd.f32 0.0, %v1361
    %1363 = vdwg.mxu0
    %1364 = vmatpush.msra.mxu0 0.0
    %1365 = vmatpush.msra.mxu0 0.0
    %1366 = vmatpush.msra.mxu0 0.0
    %1367 = vmatpush.msra.mxu0 0.0
    %1368 = vmatpush.msra.mxu0 0.0
    %1369 = vmatpush.msra.mxu0 0.0
    %1370 = vmatpush.msra.mxu0 0.0
    %1371 = vmatpush.msra.mxu0 0.0
    %1372 = vmatpush.msra.mxu0 0.0
    %1373 = vmatpush.msra.mxu0 0.0
    %1374 = vmatpush.msra.mxu0 0.0
    %1375 = vmatpush.msra.mxu0 0.0
    %1376 = vmatpush.msra.mxu0 %v624
    %1377 = vmatpush.msra.mxu0 %v320
    %1378 = vmatpush.msra.mxu0 %v192
    %1379 = vmatpush.msra.mxu0 %v64
    %1380 = vmatmul.f32.gmra.mxu0 %v557
    %v1381 = vpop.f32.mrf.mxu0
    %v1382 = vadd.f32 0.0, %v1381
    %1383 = vdwg.mxu0
    %1384 = vmatpush.msra.mxu0 0.0
    %1385 = vmatpush.msra.mxu0 0.0
    %1386 = vmatpush.msra.mxu0 0.0
    %1387 = vmatpush.msra.mxu0 0.0
    %1388 = vmatpush.msra.mxu0 0.0
    %1389 = vmatpush.msra.mxu0 0.0
    %1390 = vmatpush.msra.mxu0 0.0
    %1391 = vmatpush.msra.mxu0 0.0
    %1392 = vmatpush.msra.mxu0 0.0
    %1393 = vmatpush.msra.mxu0 0.0
    %1394 = vmatpush.msra.mxu0 0.0
    %1395 = vmatpush.msra.mxu0 0.0
    %1396 = vmatpush.msra.mxu0 %v627
    %1397 = vmatpush.msra.mxu0 %v321
    %1398 = vmatpush.msra.mxu0 %v193
    %1399 = vmatpush.msra.mxu0 %v65
    %1400 = vmatmul.f32.gmra.mxu0 %v557
    %v1401 = vpop.f32.mrf.mxu0
    %v1402 = vadd.f32 0.0, %v1401
    %1403 = vdwg.mxu0
    %1404 = vmatpush.msra.mxu0 0.0
    %1405 = vmatpush.msra.mxu0 0.0
    %1406 = vmatpush.msra.mxu0 0.0
    %1407 = vmatpush.msra.mxu0 0.0
    %1408 = vmatpush.msra.mxu0 0.0
    %1409 = vmatpush.msra.mxu0 0.0
    %1410 = vmatpush.msra.mxu0 0.0
    %1411 = vmatpush.msra.mxu0 0.0
    %1412 = vmatpush.msra.mxu0 0.0
    %1413 = vmatpush.msra.mxu0 0.0
    %1414 = vmatpush.msra.mxu0 0.0
    %1415 = vmatpush.msra.mxu0 0.0
    %1416 = vmatpush.msra.mxu0 %v630
    %1417 = vmatpush.msra.mxu0 %v322
    %1418 = vmatpush.msra.mxu0 %v194
    %1419 = vmatpush.msra.mxu0 %v66
    %1420 = vmatmul.f32.gmra.mxu0 %v557
    %v1421 = vpop.f32.mrf.mxu0
    %v1422 = vadd.f32 0.0, %v1421
    %1423 = vdwg.mxu0
    %1424 = vmatpush.msra.mxu0 0.0
    %1425 = vmatpush.msra.mxu0 0.0
    %1426 = vmatpush.msra.mxu0 0.0
    %1427 = vmatpush.msra.mxu0 0.0
    %1428 = vmatpush.msra.mxu0 0.0
    %1429 = vmatpush.msra.mxu0 0.0
    %1430 = vmatpush.msra.mxu0 0.0
    %1431 = vmatpush.msra.mxu0 0.0
    %1432 = vmatpush.msra.mxu0 0.0
    %1433 = vmatpush.msra.mxu0 0.0
    %1434 = vmatpush.msra.mxu0 0.0
    %1435 = vmatpush.msra.mxu0 0.0
    %1436 = vmatpush.msra.mxu0 %v633
    %1437 = vmatpush.msra.mxu0 %v323
    %1438 = vmatpush.msra.mxu0 %v195
    %1439 = vmatpush.msra.mxu0 %v67
    %1440 = vmatmul.f32.gmra.mxu0 %v557
    %v1441 = vpop.f32.mrf.mxu0
    %v1442 = vadd.f32 0.0, %v1441
    %1443 = vdwg.mxu0
    %1444 = vmatpush.msra.mxu0 0.0
    %1445 = vmatpush.msra.mxu0 0.0
    %1446 = vmatpush.msra.mxu0 0.0
    %1447 = vmatpush.msra.mxu0 0.0
    %1448 = vmatpush.msra.mxu0 0.0
    %1449 = vmatpush.msra.mxu0 0.0
    %1450 = vmatpush.msra.mxu0 0.0
    %1451 = vmatpush.msra.mxu0 0.0
    %1452 = vmatpush.msra.mxu0 0.0
    %1453 = vmatpush.msra.mxu0 0.0
    %1454 = vmatpush.msra.mxu0 0.0
    %1455 = vmatpush.msra.mxu0 0.0
    %1456 = vmatpush.msra.mxu0 %v636
    %1457 = vmatpush.msra.mxu0 %v324
    %1458 = vmatpush.msra.mxu0 %v196
    %1459 = vmatpush.msra.mxu0 %v68
    %1460 = vmatmul.f32.gmra.mxu0 %v557
    %v1461 = vpop.f32.mrf.mxu0
    %v1462 = vadd.f32 0.0, %v1461
    %1463 = vdwg.mxu0
    %1464 = vmatpush.msra.mxu0 0.0
    %1465 = vmatpush.msra.mxu0 0.0
    %1466 = vmatpush.msra.mxu0 0.0
    %1467 = vmatpush.msra.mxu0 0.0
    %1468 = vmatpush.msra.mxu0 0.0
    %1469 = vmatpush.msra.mxu0 0.0
    %1470 = vmatpush.msra.mxu0 0.0
    %1471 = vmatpush.msra.mxu0 0.0
    %1472 = vmatpush.msra.mxu0 0.0
    %1473 = vmatpush.msra.mxu0 0.0
    %1474 = vmatpush.msra.mxu0 0.0
    %1475 = vmatpush.msra.mxu0 0.0
    %1476 = vmatpush.msra.mxu0 %v639
    %1477 = vmatpush.msra.mxu0 %v325
    %1478 = vmatpush.msra.mxu0 %v197
    %1479 = vmatpush.msra.mxu0 %v69
    %1480 = vmatmul.f32.gmra.mxu0 %v557
    %v1481 = vpop.f32.mrf.mxu0
    %v1482 = vadd.f32 0.0, %v1481
    %1483 = vdwg.mxu0
    %1484 = vmatpush.msra.mxu0 0.0
    %1485 = vmatpush.msra.mxu0 0.0
    %1486 = vmatpush.msra.mxu0 0.0
    %1487 = vmatpush.msra.mxu0 0.0
    %1488 = vmatpush.msra.mxu0 0.0
    %1489 = vmatpush.msra.mxu0 0.0
    %1490 = vmatpush.msra.mxu0 0.0
    %1491 = vmatpush.msra.mxu0 0.0
    %1492 = vmatpush.msra.mxu0 0.0
    %1493 = vmatpush.msra.mxu0 0.0
    %1494 = vmatpush.msra.mxu0 0.0
    %1495 = vmatpush.msra.mxu0 0.0
    %1496 = vmatpush.msra.mxu0 %v642
    %1497 = vmatpush.msra.mxu0 %v326
    %1498 = vmatpush.msra.mxu0 %v198
    %1499 = vmatpush.msra.mxu0 %v70
    %1500 = vmatmul.f32.gmra.mxu0 %v557
    %v1501 = vpop.f32.mrf.mxu0
    %v1502 = vadd.f32 0.0, %v1501
    %1503 = vdwg.mxu0
    %1504 = vmatpush.msra.mxu0 0.0
    %1505 = vmatpush.msra.mxu0 0.0
    %1506 = vmatpush.msra.mxu0 0.0
    %1507 = vmatpush.msra.mxu0 0.0
    %1508 = vmatpush.msra.mxu0 0.0
    %1509 = vmatpush.msra.mxu0 0.0
    %1510 = vmatpush.msra.mxu0 0.0
    %1511 = vmatpush.msra.mxu0 0.0
    %1512 = vmatpush.msra.mxu0 0.0
    %1513 = vmatpush.msra.mxu0 0.0
    %1514 = vmatpush.msra.mxu0 0.0
    %1515 = vmatpush.msra.mxu0 0.0
    %1516 = vmatpush.msra.mxu0 %v645
    %1517 = vmatpush.msra.mxu0 %v327
    %1518 = vmatpush.msra.mxu0 %v199
    %1519 = vmatpush.msra.mxu0 %v71
    %1520 = vmatmul.f32.gmra.mxu0 %v557
    %v1521 = vpop.f32.mrf.mxu0
    %v1522 = vadd.f32 0.0, %v1521
    %1523 = vdwg.mxu0
    %1524 = vmatpush.msra.mxu0 0.0
    %1525 = vmatpush.msra.mxu0 0.0
    %1526 = vmatpush.msra.mxu0 0.0
    %1527 = vmatpush.msra.mxu0 0.0
    %1528 = vmatpush.msra.mxu0 0.0
    %1529 = vmatpush.msra.mxu0 0.0
    %1530 = vmatpush.msra.mxu0 0.0
    %1531 = vmatpush.msra.mxu0 0.0
    %1532 = vmatpush.msra.mxu0 0.0
    %1533 = vmatpush.msra.mxu0 0.0
    %1534 = vmatpush.msra.mxu0 0.0
    %1535 = vmatpush.msra.mxu0 0.0
    %1536 = vmatpush.msra.mxu0 %v648
    %1537 = vmatpush.msra.mxu0 %v328
    %1538 = vmatpush.msra.mxu0 %v200
    %1539 = vmatpush.msra.mxu0 %v72
    %1540 = vmatmul.f32.gmra.mxu0 %v557
    %v1541 = vpop.f32.mrf.mxu0
    %v1542 = vadd.f32 0.0, %v1541
    %1543 = vdwg.mxu0
    %1544 = vmatpush.msra.mxu0 0.0
    %1545 = vmatpush.msra.mxu0 0.0
    %1546 = vmatpush.msra.mxu0 0.0
    %1547 = vmatpush.msra.mxu0 0.0
    %1548 = vmatpush.msra.mxu0 0.0
    %1549 = vmatpush.msra.mxu0 0.0
    %1550 = vmatpush.msra.mxu0 0.0
    %1551 = vmatpush.msra.mxu0 0.0
    %1552 = vmatpush.msra.mxu0 0.0
    %1553 = vmatpush.msra.mxu0 0.0
    %1554 = vmatpush.msra.mxu0 0.0
    %1555 = vmatpush.msra.mxu0 0.0
    %1556 = vmatpush.msra.mxu0 %v651
    %1557 = vmatpush.msra.mxu0 %v329
    %1558 = vmatpush.msra.mxu0 %v201
    %1559 = vmatpush.msra.mxu0 %v73
    %1560 = vmatmul.f32.gmra.mxu0 %v557
    %v1561 = vpop.f32.mrf.mxu0
    %v1562 = vadd.f32 0.0, %v1561
    %1563 = vdwg.mxu0
    %1564 = vmatpush.msra.mxu0 0.0
    %1565 = vmatpush.msra.mxu0 0.0
    %1566 = vmatpush.msra.mxu0 0.0
    %1567 = vmatpush.msra.mxu0 0.0
    %1568 = vmatpush.msra.mxu0 0.0
    %1569 = vmatpush.msra.mxu0 0.0
    %1570 = vmatpush.msra.mxu0 0.0
    %1571 = vmatpush.msra.mxu0 0.0
    %1572 = vmatpush.msra.mxu0 0.0
    %1573 = vmatpush.msra.mxu0 0.0
    %1574 = vmatpush.msra.mxu0 0.0
    %1575 = vmatpush.msra.mxu0 0.0
    %1576 = vmatpush.msra.mxu0 %v654
    %1577 = vmatpush.msra.mxu0 %v330
    %1578 = vmatpush.msra.mxu0 %v202
    %1579 = vmatpush.msra.mxu0 %v74
    %1580 = vmatmul.f32.gmra.mxu0 %v557
    %v1581 = vpop.f32.mrf.mxu0
    %v1582 = vadd.f32 0.0, %v1581
    %1583 = vdwg.mxu0
    %1584 = vmatpush.msra.mxu0 0.0
    %1585 = vmatpush.msra.mxu0 0.0
    %1586 = vmatpush.msra.mxu0 0.0
    %1587 = vmatpush.msra.mxu0 0.0
    %1588 = vmatpush.msra.mxu0 0.0
    %1589 = vmatpush.msra.mxu0 0.0
    %1590 = vmatpush.msra.mxu0 0.0
    %1591 = vmatpush.msra.mxu0 0.0
    %1592 = vmatpush.msra.mxu0 0.0
    %1593 = vmatpush.msra.mxu0 0.0
    %1594 = vmatpush.msra.mxu0 0.0
    %1595 = vmatpush.msra.mxu0 0.0
    %1596 = vmatpush.msra.mxu0 %v657
    %1597 = vmatpush.msra.mxu0 %v331
    %1598 = vmatpush.msra.mxu0 %v203
    %1599 = vmatpush.msra.mxu0 %v75
    %1600 = vmatmul.f32.gmra.mxu0 %v557
    %v1601 = vpop.f32.mrf.mxu0
    %v1602 = vadd.f32 0.0, %v1601
    %1603 = vdwg.mxu0
    %1604 = vmatpush.msra.mxu0 0.0
    %1605 = vmatpush.msra.mxu0 0.0
    %1606 = vmatpush.msra.mxu0 0.0
    %1607 = vmatpush.msra.mxu0 0.0
    %1608 = vmatpush.msra.mxu0 0.0
    %1609 = vmatpush.msra.mxu0 0.0
    %1610 = vmatpush.msra.mxu0 0.0
    %1611 = vmatpush.msra.mxu0 0.0
    %1612 = vmatpush.msra.mxu0 0.0
    %1613 = vmatpush.msra.mxu0 0.0
    %1614 = vmatpush.msra.mxu0 0.0
    %1615 = vmatpush.msra.mxu0 0.0
    %1616 = vmatpush.msra.mxu0 %v660
    %1617 = vmatpush.msra.mxu0 %v332
    %1618 = vmatpush.msra.mxu0 %v204
    %1619 = vmatpush.msra.mxu0 %v76
    %1620 = vmatmul.f32.gmra.mxu0 %v557
    %v1621 = vpop.f32.mrf.mxu0
    %v1622 = vadd.f32 0.0, %v1621
    %1623 = vdwg.mxu0
    %1624 = vmatpush.msra.mxu0 0.0
    %1625 = vmatpush.msra.mxu0 0.0
    %1626 = vmatpush.msra.mxu0 0.0
    %1627 = vmatpush.msra.mxu0 0.0
    %1628 = vmatpush.msra.mxu0 0.0
    %1629 = vmatpush.msra.mxu0 0.0
    %1630 = vmatpush.msra.mxu0 0.0
    %1631 = vmatpush.msra.mxu0 0.0
    %1632 = vmatpush.msra.mxu0 0.0
    %1633 = vmatpush.msra.mxu0 0.0
    %1634 = vmatpush.msra.mxu0 0.0
    %1635 = vmatpush.msra.mxu0 0.0
    %1636 = vmatpush.msra.mxu0 %v663
    %1637 = vmatpush.msra.mxu0 %v333
    %1638 = vmatpush.msra.mxu0 %v205
    %1639 = vmatpush.msra.mxu0 %v77
    %1640 = vmatmul.f32.gmra.mxu0 %v557
    %v1641 = vpop.f32.mrf.mxu0
    %v1642 = vadd.f32 0.0, %v1641
    %1643 = vdwg.mxu0
    %1644 = vmatpush.msra.mxu0 0.0
    %1645 = vmatpush.msra.mxu0 0.0
    %1646 = vmatpush.msra.mxu0 0.0
    %1647 = vmatpush.msra.mxu0 0.0
    %1648 = vmatpush.msra.mxu0 0.0
    %1649 = vmatpush.msra.mxu0 0.0
    %1650 = vmatpush.msra.mxu0 0.0
    %1651 = vmatpush.msra.mxu0 0.0
    %1652 = vmatpush.msra.mxu0 0.0
    %1653 = vmatpush.msra.mxu0 0.0
    %1654 = vmatpush.msra.mxu0 0.0
    %1655 = vmatpush.msra.mxu0 0.0
    %1656 = vmatpush.msra.mxu0 %v666
    %1657 = vmatpush.msra.mxu0 %v334
    %1658 = vmatpush.msra.mxu0 %v206
    %1659 = vmatpush.msra.mxu0 %v78
    %1660 = vmatmul.f32.gmra.mxu0 %v557
    %v1661 = vpop.f32.mrf.mxu0
    %v1662 = vadd.f32 0.0, %v1661
    %1663 = vdwg.mxu0
    %1664 = vmatpush.msra.mxu0 0.0
    %1665 = vmatpush.msra.mxu0 0.0
    %1666 = vmatpush.msra.mxu0 0.0
    %1667 = vmatpush.msra.mxu0 0.0
    %1668 = vmatpush.msra.mxu0 0.0
    %1669 = vmatpush.msra.mxu0 0.0
    %1670 = vmatpush.msra.mxu0 0.0
    %1671 = vmatpush.msra.mxu0 0.0
    %1672 = vmatpush.msra.mxu0 0.0
    %1673 = vmatpush.msra.mxu0 0.0
    %1674 = vmatpush.msra.mxu0 0.0
    %1675 = vmatpush.msra.mxu0 0.0
    %1676 = vmatpush.msra.mxu0 %v669
    %1677 = vmatpush.msra.mxu0 %v335
    %1678 = vmatpush.msra.mxu0 %v207
    %1679 = vmatpush.msra.mxu0 %v79
    %1680 = vmatmul.f32.gmra.mxu0 %v557
    %v1681 = vpop.f32.mrf.mxu0
    %v1682 = vadd.f32 0.0, %v1681
    %1683 = vdwg.mxu0
    %1684 = vmatpush.msra.mxu0 0.0
    %1685 = vmatpush.msra.mxu0 0.0
    %1686 = vmatpush.msra.mxu0 0.0
    %1687 = vmatpush.msra.mxu0 0.0
    %1688 = vmatpush.msra.mxu0 0.0
    %1689 = vmatpush.msra.mxu0 0.0
    %1690 = vmatpush.msra.mxu0 0.0
    %1691 = vmatpush.msra.mxu0 0.0
    %1692 = vmatpush.msra.mxu0 0.0
    %1693 = vmatpush.msra.mxu0 0.0
    %1694 = vmatpush.msra.mxu0 0.0
    %1695 = vmatpush.msra.mxu0 0.0
    %1696 = vmatpush.msra.mxu0 %v672
    %1697 = vmatpush.msra.mxu0 %v336
    %1698 = vmatpush.msra.mxu0 %v208
    %1699 = vmatpush.msra.mxu0 %v80
    %1700 = vmatmul.f32.gmra.mxu0 %v557
    %v1701 = vpop.f32.mrf.mxu0
    %v1702 = vadd.f32 0.0, %v1701
    %1703 = vdwg.mxu0
    %1704 = vmatpush.msra.mxu0 0.0
    %1705 = vmatpush.msra.mxu0 0.0
    %1706 = vmatpush.msra.mxu0 0.0
    %1707 = vmatpush.msra.mxu0 0.0
    %1708 = vmatpush.msra.mxu0 0.0
    %1709 = vmatpush.msra.mxu0 0.0
    %1710 = vmatpush.msra.mxu0 0.0
    %1711 = vmatpush.msra.mxu0 0.0
    %1712 = vmatpush.msra.mxu0 0.0
    %1713 = vmatpush.msra.mxu0 0.0
    %1714 = vmatpush.msra.mxu0 0.0
    %1715 = vmatpush.msra.mxu0 0.0
    %1716 = vmatpush.msra.mxu0 %v675
    %1717 = vmatpush.msra.mxu0 %v337
    %1718 = vmatpush.msra.mxu0 %v209
    %1719 = vmatpush.msra.mxu0 %v81
    %1720 = vmatmul.f32.gmra.mxu0 %v557
    %v1721 = vpop.f32.mrf.mxu0
    %v1722 = vadd.f32 0.0, %v1721
    %1723 = vdwg.mxu0
    %1724 = vmatpush.msra.mxu0 0.0
    %1725 = vmatpush.msra.mxu0 0.0
    %1726 = vmatpush.msra.mxu0 0.0
    %1727 = vmatpush.msra.mxu0 0.0
    %1728 = vmatpush.msra.mxu0 0.0
    %1729 = vmatpush.msra.mxu0 0.0
    %1730 = vmatpush.msra.mxu0 0.0
    %1731 = vmatpush.msra.mxu0 0.0
    %1732 = vmatpush.msra.mxu0 0.0
    %1733 = vmatpush.msra.mxu0 0.0
    %1734 = vmatpush.msra.mxu0 0.0
    %1735 = vmatpush.msra.mxu0 0.0
    %1736 = vmatpush.msra.mxu0 %v678
    %1737 = vmatpush.msra.mxu0 %v338
    %1738 = vmatpush.msra.mxu0 %v210
    %1739 = vmatpush.msra.mxu0 %v82
    %1740 = vmatmul.f32.gmra.mxu0 %v557
    %v1741 = vpop.f32.mrf.mxu0
    %v1742 = vadd.f32 0.0, %v1741
    %1743 = vdwg.mxu0
    %1744 = vmatpush.msra.mxu0 0.0
    %1745 = vmatpush.msra.mxu0 0.0
    %1746 = vmatpush.msra.mxu0 0.0
    %1747 = vmatpush.msra.mxu0 0.0
    %1748 = vmatpush.msra.mxu0 0.0
    %1749 = vmatpush.msra.mxu0 0.0
    %1750 = vmatpush.msra.mxu0 0.0
    %1751 = vmatpush.msra.mxu0 0.0
    %1752 = vmatpush.msra.mxu0 0.0
    %1753 = vmatpush.msra.mxu0 0.0
    %1754 = vmatpush.msra.mxu0 0.0
    %1755 = vmatpush.msra.mxu0 0.0
    %1756 = vmatpush.msra.mxu0 %v681
    %1757 = vmatpush.msra.mxu0 %v339
    %1758 = vmatpush.msra.mxu0 %v211
    %1759 = vmatpush.msra.mxu0 %v83
    %1760 = vmatmul.f32.gmra.mxu0 %v557
    %v1761 = vpop.f32.mrf.mxu0
    %v1762 = vadd.f32 0.0, %v1761
    %1763 = vdwg.mxu0
    %1764 = vmatpush.msra.mxu0 0.0
    %1765 = vmatpush.msra.mxu0 0.0
    %1766 = vmatpush.msra.mxu0 0.0
    %1767 = vmatpush.msra.mxu0 0.0
    %1768 = vmatpush.msra.mxu0 0.0
    %1769 = vmatpush.msra.mxu0 0.0
    %1770 = vmatpush.msra.mxu0 0.0
    %1771 = vmatpush.msra.mxu0 0.0
    %1772 = vmatpush.msra.mxu0 0.0
    %1773 = vmatpush.msra.mxu0 0.0
    %1774 = vmatpush.msra.mxu0 0.0
    %1775 = vmatpush.msra.mxu0 0.0
    %1776 = vmatpush.msra.mxu0 %v684
    %1777 = vmatpush.msra.mxu0 %v340
    %1778 = vmatpush.msra.mxu0 %v212
    %1779 = vmatpush.msra.mxu0 %v84
    %1780 = vmatmul.f32.gmra.mxu0 %v557
    %v1781 = vpop.f32.mrf.mxu0
    %v1782 = vadd.f32 0.0, %v1781
    %1783 = vdwg.mxu0
    %1784 = vmatpush.msra.mxu0 0.0
    %1785 = vmatpush.msra.mxu0 0.0
    %1786 = vmatpush.msra.mxu0 0.0
    %1787 = vmatpush.msra.mxu0 0.0
    %1788 = vmatpush.msra.mxu0 0.0
    %1789 = vmatpush.msra.mxu0 0.0
    %1790 = vmatpush.msra.mxu0 0.0
    %1791 = vmatpush.msra.mxu0 0.0
    %1792 = vmatpush.msra.mxu0 0.0
    %1793 = vmatpush.msra.mxu0 0.0
    %1794 = vmatpush.msra.mxu0 0.0
    %1795 = vmatpush.msra.mxu0 0.0
    %1796 = vmatpush.msra.mxu0 %v687
    %1797 = vmatpush.msra.mxu0 %v341
    %1798 = vmatpush.msra.mxu0 %v213
    %1799 = vmatpush.msra.mxu0 %v85
    %1800 = vmatmul.f32.gmra.mxu0 %v557
    %v1801 = vpop.f32.mrf.mxu0
    %v1802 = vadd.f32 0.0, %v1801
    %1803 = vdwg.mxu0
    %1804 = vmatpush.msra.mxu0 0.0
    %1805 = vmatpush.msra.mxu0 0.0
    %1806 = vmatpush.msra.mxu0 0.0
    %1807 = vmatpush.msra.mxu0 0.0
    %1808 = vmatpush.msra.mxu0 0.0
    %1809 = vmatpush.msra.mxu0 0.0
    %1810 = vmatpush.msra.mxu0 0.0
    %1811 = vmatpush.msra.mxu0 0.0
    %1812 = vmatpush.msra.mxu0 0.0
    %1813 = vmatpush.msra.mxu0 0.0
    %1814 = vmatpush.msra.mxu0 0.0
    %1815 = vmatpush.msra.mxu0 0.0
    %1816 = vmatpush.msra.mxu0 %v690
    %1817 = vmatpush.msra.mxu0 %v342
    %1818 = vmatpush.msra.mxu0 %v214
    %1819 = vmatpush.msra.mxu0 %v86
    %1820 = vmatmul.f32.gmra.mxu0 %v557
    %v1821 = vpop.f32.mrf.mxu0
    %v1822 = vadd.f32 0.0, %v1821
    %1823 = vdwg.mxu0
    %1824 = vmatpush.msra.mxu0 0.0
    %1825 = vmatpush.msra.mxu0 0.0
    %1826 = vmatpush.msra.mxu0 0.0
    %1827 = vmatpush.msra.mxu0 0.0
    %1828 = vmatpush.msra.mxu0 0.0
    %1829 = vmatpush.msra.mxu0 0.0
    %1830 = vmatpush.msra.mxu0 0.0
    %1831 = vmatpush.msra.mxu0 0.0
    %1832 = vmatpush.msra.mxu0 0.0
    %1833 = vmatpush.msra.mxu0 0.0
    %1834 = vmatpush.msra.mxu0 0.0
    %1835 = vmatpush.msra.mxu0 0.0
    %1836 = vmatpush.msra.mxu0 %v693
    %1837 = vmatpush.msra.mxu0 %v343
    %1838 = vmatpush.msra.mxu0 %v215
    %1839 = vmatpush.msra.mxu0 %v87
    %1840 = vmatmul.f32.gmra.mxu0 %v557
    %v1841 = vpop.f32.mrf.mxu0
    %v1842 = vadd.f32 0.0, %v1841
    %1843 = vdwg.mxu0
    %1844 = vmatpush.msra.mxu0 0.0
    %1845 = vmatpush.msra.mxu0 0.0
    %1846 = vmatpush.msra.mxu0 0.0
    %1847 = vmatpush.msra.mxu0 0.0
    %1848 = vmatpush.msra.mxu0 0.0
    %1849 = vmatpush.msra.mxu0 0.0
    %1850 = vmatpush.msra.mxu0 0.0
    %1851 = vmatpush.msra.mxu0 0.0
    %1852 = vmatpush.msra.mxu0 0.0
    %1853 = vmatpush.msra.mxu0 0.0
    %1854 = vmatpush.msra.mxu0 0.0
    %1855 = vmatpush.msra.mxu0 0.0
    %1856 = vmatpush.msra.mxu0 %v696
    %1857 = vmatpush.msra.mxu0 %v344
    %1858 = vmatpush.msra.mxu0 %v216
    %1859 = vmatpush.msra.mxu0 %v88
    %1860 = vmatmul.f32.gmra.mxu0 %v557
    %v1861 = vpop.f32.mrf.mxu0
    %v1862 = vadd.f32 0.0, %v1861
    %1863 = vdwg.mxu0
    %1864 = vmatpush.msra.mxu0 0.0
    %1865 = vmatpush.msra.mxu0 0.0
    %1866 = vmatpush.msra.mxu0 0.0
    %1867 = vmatpush.msra.mxu0 0.0
    %1868 = vmatpush.msra.mxu0 0.0
    %1869 = vmatpush.msra.mxu0 0.0
    %1870 = vmatpush.msra.mxu0 0.0
    %1871 = vmatpush.msra.mxu0 0.0
    %1872 = vmatpush.msra.mxu0 0.0
    %1873 = vmatpush.msra.mxu0 0.0
    %1874 = vmatpush.msra.mxu0 0.0
    %1875 = vmatpush.msra.mxu0 0.0
    %1876 = vmatpush.msra.mxu0 %v699
    %1877 = vmatpush.msra.mxu0 %v345
    %1878 = vmatpush.msra.mxu0 %v217
    %1879 = vmatpush.msra.mxu0 %v89
    %1880 = vmatmul.f32.gmra.mxu0 %v557
    %v1881 = vpop.f32.mrf.mxu0
    %v1882 = vadd.f32 0.0, %v1881
    %1883 = vdwg.mxu0
    %1884 = vmatpush.msra.mxu0 0.0
    %1885 = vmatpush.msra.mxu0 0.0
    %1886 = vmatpush.msra.mxu0 0.0
    %1887 = vmatpush.msra.mxu0 0.0
    %1888 = vmatpush.msra.mxu0 0.0
    %1889 = vmatpush.msra.mxu0 0.0
    %1890 = vmatpush.msra.mxu0 0.0
    %1891 = vmatpush.msra.mxu0 0.0
    %1892 = vmatpush.msra.mxu0 0.0
    %1893 = vmatpush.msra.mxu0 0.0
    %1894 = vmatpush.msra.mxu0 0.0
    %1895 = vmatpush.msra.mxu0 0.0
    %1896 = vmatpush.msra.mxu0 %v702
    %1897 = vmatpush.msra.mxu0 %v346
    %1898 = vmatpush.msra.mxu0 %v218
    %1899 = vmatpush.msra.mxu0 %v90
    %1900 = vmatmul.f32.gmra.mxu0 %v557
    %v1901 = vpop.f32.mrf.mxu0
    %v1902 = vadd.f32 0.0, %v1901
    %1903 = vdwg.mxu0
    %1904 = vmatpush.msra.mxu0 0.0
    %1905 = vmatpush.msra.mxu0 0.0
    %1906 = vmatpush.msra.mxu0 0.0
    %1907 = vmatpush.msra.mxu0 0.0
    %1908 = vmatpush.msra.mxu0 0.0
    %1909 = vmatpush.msra.mxu0 0.0
    %1910 = vmatpush.msra.mxu0 0.0
    %1911 = vmatpush.msra.mxu0 0.0
    %1912 = vmatpush.msra.mxu0 0.0
    %1913 = vmatpush.msra.mxu0 0.0
    %1914 = vmatpush.msra.mxu0 0.0
    %1915 = vmatpush.msra.mxu0 0.0
    %1916 = vmatpush.msra.mxu0 %v705
    %1917 = vmatpush.msra.mxu0 %v347
    %1918 = vmatpush.msra.mxu0 %v219
    %1919 = vmatpush.msra.mxu0 %v91
    %1920 = vmatmul.f32.gmra.mxu0 %v557
    %v1921 = vpop.f32.mrf.mxu0
    %v1922 = vadd.f32 0.0, %v1921
    %1923 = vdwg.mxu0
    %1924 = vmatpush.msra.mxu0 0.0
    %1925 = vmatpush.msra.mxu0 0.0
    %1926 = vmatpush.msra.mxu0 0.0
    %1927 = vmatpush.msra.mxu0 0.0
    %1928 = vmatpush.msra.mxu0 0.0
    %1929 = vmatpush.msra.mxu0 0.0
    %1930 = vmatpush.msra.mxu0 0.0
    %1931 = vmatpush.msra.mxu0 0.0
    %1932 = vmatpush.msra.mxu0 0.0
    %1933 = vmatpush.msra.mxu0 0.0
    %1934 = vmatpush.msra.mxu0 0.0
    %1935 = vmatpush.msra.mxu0 0.0
    %1936 = vmatpush.msra.mxu0 %v708
    %1937 = vmatpush.msra.mxu0 %v348
    %1938 = vmatpush.msra.mxu0 %v220
    %1939 = vmatpush.msra.mxu0 %v92
    %1940 = vmatmul.f32.gmra.mxu0 %v557
    %v1941 = vpop.f32.mrf.mxu0
    %v1942 = vadd.f32 0.0, %v1941
    %1943 = vdwg.mxu0
    %1944 = vmatpush.msra.mxu0 0.0
    %1945 = vmatpush.msra.mxu0 0.0
    %1946 = vmatpush.msra.mxu0 0.0
    %1947 = vmatpush.msra.mxu0 0.0
    %1948 = vmatpush.msra.mxu0 0.0
    %1949 = vmatpush.msra.mxu0 0.0
    %1950 = vmatpush.msra.mxu0 0.0
    %1951 = vmatpush.msra.mxu0 0.0
    %1952 = vmatpush.msra.mxu0 0.0
    %1953 = vmatpush.msra.mxu0 0.0
    %1954 = vmatpush.msra.mxu0 0.0
    %1955 = vmatpush.msra.mxu0 0.0
    %1956 = vmatpush.msra.mxu0 %v711
    %1957 = vmatpush.msra.mxu0 %v349
    %1958 = vmatpush.msra.mxu0 %v221
    %1959 = vmatpush.msra.mxu0 %v93
    %1960 = vmatmul.f32.gmra.mxu0 %v557
    %v1961 = vpop.f32.mrf.mxu0
    %v1962 = vadd.f32 0.0, %v1961
    %1963 = vdwg.mxu0
    %1964 = vmatpush.msra.mxu0 0.0
    %1965 = vmatpush.msra.mxu0 0.0
    %1966 = vmatpush.msra.mxu0 0.0
    %1967 = vmatpush.msra.mxu0 0.0
    %1968 = vmatpush.msra.mxu0 0.0
    %1969 = vmatpush.msra.mxu0 0.0
    %1970 = vmatpush.msra.mxu0 0.0
    %1971 = vmatpush.msra.mxu0 0.0
    %1972 = vmatpush.msra.mxu0 0.0
    %1973 = vmatpush.msra.mxu0 0.0
    %1974 = vmatpush.msra.mxu0 0.0
    %1975 = vmatpush.msra.mxu0 0.0
    %1976 = vmatpush.msra.mxu0 %v714
    %1977 = vmatpush.msra.mxu0 %v350
    %1978 = vmatpush.msra.mxu0 %v222
    %1979 = vmatpush.msra.mxu0 %v94
    %1980 = vmatmul.f32.gmra.mxu0 %v557
    %v1981 = vpop.f32.mrf.mxu0
    %v1982 = vadd.f32 0.0, %v1981
    %1983 = vdwg.mxu0
    %1984 = vmatpush.msra.mxu0 0.0
    %1985 = vmatpush.msra.mxu0 0.0
    %1986 = vmatpush.msra.mxu0 0.0
    %1987 = vmatpush.msra.mxu0 0.0
    %1988 = vmatpush.msra.mxu0 0.0
    %1989 = vmatpush.msra.mxu0 0.0
    %1990 = vmatpush.msra.mxu0 0.0
    %1991 = vmatpush.msra.mxu0 0.0
    %1992 = vmatpush.msra.mxu0 0.0
    %1993 = vmatpush.msra.mxu0 0.0
    %1994 = vmatpush.msra.mxu0 0.0
    %1995 = vmatpush.msra.mxu0 0.0
    %1996 = vmatpush.msra.mxu0 %v717
    %1997 = vmatpush.msra.mxu0 %v351
    %1998 = vmatpush.msra.mxu0 %v223
    %1999 = vmatpush.msra.mxu0 %v95
    %2000 = vmatmul.f32.gmra.mxu0 %v557
    %v2001 = vpop.f32.mrf.mxu0
    %v2002 = vadd.f32 0.0, %v2001
    %2003 = vdwg.mxu0
    %2004 = vmatpush.msra.mxu0 0.0
    %2005 = vmatpush.msra.mxu0 0.0
    %2006 = vmatpush.msra.mxu0 0.0
    %2007 = vmatpush.msra.mxu0 0.0
    %2008 = vmatpush.msra.mxu0 0.0
    %2009 = vmatpush.msra.mxu0 0.0
    %2010 = vmatpush.msra.mxu0 0.0
    %2011 = vmatpush.msra.mxu0 0.0
    %2012 = vmatpush.msra.mxu0 0.0
    %2013 = vmatpush.msra.mxu0 0.0
    %2014 = vmatpush.msra.mxu0 0.0
    %2015 = vmatpush.msra.mxu0 0.0
    %2016 = vmatpush.msra.mxu0 %v720
    %2017 = vmatpush.msra.mxu0 %v352
    %2018 = vmatpush.msra.mxu0 %v224
    %2019 = vmatpush.msra.mxu0 %v96
    %2020 = vmatmul.f32.gmra.mxu0 %v557
    %v2021 = vpop.f32.mrf.mxu0
    %v2022 = vadd.f32 0.0, %v2021
    %2023 = vdwg.mxu0
    %2024 = vmatpush.msra.mxu0 0.0
    %2025 = vmatpush.msra.mxu0 0.0
    %2026 = vmatpush.msra.mxu0 0.0
    %2027 = vmatpush.msra.mxu0 0.0
    %2028 = vmatpush.msra.mxu0 0.0
    %2029 = vmatpush.msra.mxu0 0.0
    %2030 = vmatpush.msra.mxu0 0.0
    %2031 = vmatpush.msra.mxu0 0.0
    %2032 = vmatpush.msra.mxu0 0.0
    %2033 = vmatpush.msra.mxu0 0.0
    %2034 = vmatpush.msra.mxu0 0.0
    %2035 = vmatpush.msra.mxu0 0.0
    %2036 = vmatpush.msra.mxu0 %v723
    %2037 = vmatpush.msra.mxu0 %v353
    %2038 = vmatpush.msra.mxu0 %v225
    %2039 = vmatpush.msra.mxu0 %v97
    %2040 = vmatmul.f32.gmra.mxu0 %v557
    %v2041 = vpop.f32.mrf.mxu0
    %v2042 = vadd.f32 0.0, %v2041
    %2043 = vdwg.mxu0
    %2044 = vmatpush.msra.mxu0 0.0
    %2045 = vmatpush.msra.mxu0 0.0
    %2046 = vmatpush.msra.mxu0 0.0
    %2047 = vmatpush.msra.mxu0 0.0
    %2048 = vmatpush.msra.mxu0 0.0
    %2049 = vmatpush.msra.mxu0 0.0
    %2050 = vmatpush.msra.mxu0 0.0
    %2051 = vmatpush.msra.mxu0 0.0
    %2052 = vmatpush.msra.mxu0 0.0
    %2053 = vmatpush.msra.mxu0 0.0
    %2054 = vmatpush.msra.mxu0 0.0
    %2055 = vmatpush.msra.mxu0 0.0
    %2056 = vmatpush.msra.mxu0 %v726
    %2057 = vmatpush.msra.mxu0 %v354
    %2058 = vmatpush.msra.mxu0 %v226
    %2059 = vmatpush.msra.mxu0 %v98
    %2060 = vmatmul.f32.gmra.mxu0 %v557
    %v2061 = vpop.f32.mrf.mxu0
    %v2062 = vadd.f32 0.0, %v2061
    %2063 = vdwg.mxu0
    %2064 = vmatpush.msra.mxu0 0.0
    %2065 = vmatpush.msra.mxu0 0.0
    %2066 = vmatpush.msra.mxu0 0.0
    %2067 = vmatpush.msra.mxu0 0.0
    %2068 = vmatpush.msra.mxu0 0.0
    %2069 = vmatpush.msra.mxu0 0.0
    %2070 = vmatpush.msra.mxu0 0.0
    %2071 = vmatpush.msra.mxu0 0.0
    %2072 = vmatpush.msra.mxu0 0.0
    %2073 = vmatpush.msra.mxu0 0.0
    %2074 = vmatpush.msra.mxu0 0.0
    %2075 = vmatpush.msra.mxu0 0.0
    %2076 = vmatpush.msra.mxu0 %v729
    %2077 = vmatpush.msra.mxu0 %v355
    %2078 = vmatpush.msra.mxu0 %v227
    %2079 = vmatpush.msra.mxu0 %v99
    %2080 = vmatmul.f32.gmra.mxu0 %v557
    %v2081 = vpop.f32.mrf.mxu0
    %v2082 = vadd.f32 0.0, %v2081
    %2083 = vdwg.mxu0
    %2084 = vmatpush.msra.mxu0 0.0
    %2085 = vmatpush.msra.mxu0 0.0
    %2086 = vmatpush.msra.mxu0 0.0
    %2087 = vmatpush.msra.mxu0 0.0
    %2088 = vmatpush.msra.mxu0 0.0
    %2089 = vmatpush.msra.mxu0 0.0
    %2090 = vmatpush.msra.mxu0 0.0
    %2091 = vmatpush.msra.mxu0 0.0
    %2092 = vmatpush.msra.mxu0 0.0
    %2093 = vmatpush.msra.mxu0 0.0
    %2094 = vmatpush.msra.mxu0 0.0
    %2095 = vmatpush.msra.mxu0 0.0
    %2096 = vmatpush.msra.mxu0 %v732
    %2097 = vmatpush.msra.mxu0 %v356
    %2098 = vmatpush.msra.mxu0 %v228
    %2099 = vmatpush.msra.mxu0 %v100
    %2100 = vmatmul.f32.gmra.mxu0 %v557
    %v2101 = vpop.f32.mrf.mxu0
    %v2102 = vadd.f32 0.0, %v2101
    %2103 = vdwg.mxu0
    %2104 = vmatpush.msra.mxu0 0.0
    %2105 = vmatpush.msra.mxu0 0.0
    %2106 = vmatpush.msra.mxu0 0.0
    %2107 = vmatpush.msra.mxu0 0.0
    %2108 = vmatpush.msra.mxu0 0.0
    %2109 = vmatpush.msra.mxu0 0.0
    %2110 = vmatpush.msra.mxu0 0.0
    %2111 = vmatpush.msra.mxu0 0.0
    %2112 = vmatpush.msra.mxu0 0.0
    %2113 = vmatpush.msra.mxu0 0.0
    %2114 = vmatpush.msra.mxu0 0.0
    %2115 = vmatpush.msra.mxu0 0.0
    %2116 = vmatpush.msra.mxu0 %v735
    %2117 = vmatpush.msra.mxu0 %v357
    %2118 = vmatpush.msra.mxu0 %v229
    %2119 = vmatpush.msra.mxu0 %v101
    %2120 = vmatmul.f32.gmra.mxu0 %v557
    %v2121 = vpop.f32.mrf.mxu0
    %v2122 = vadd.f32 0.0, %v2121
    %2123 = vdwg.mxu0
    %2124 = vmatpush.msra.mxu0 0.0
    %2125 = vmatpush.msra.mxu0 0.0
    %2126 = vmatpush.msra.mxu0 0.0
    %2127 = vmatpush.msra.mxu0 0.0
    %2128 = vmatpush.msra.mxu0 0.0
    %2129 = vmatpush.msra.mxu0 0.0
    %2130 = vmatpush.msra.mxu0 0.0
    %2131 = vmatpush.msra.mxu0 0.0
    %2132 = vmatpush.msra.mxu0 0.0
    %2133 = vmatpush.msra.mxu0 0.0
    %2134 = vmatpush.msra.mxu0 0.0
    %2135 = vmatpush.msra.mxu0 0.0
    %2136 = vmatpush.msra.mxu0 %v738
    %2137 = vmatpush.msra.mxu0 %v358
    %2138 = vmatpush.msra.mxu0 %v230
    %2139 = vmatpush.msra.mxu0 %v102
    %2140 = vmatmul.f32.gmra.mxu0 %v557
    %v2141 = vpop.f32.mrf.mxu0
    %v2142 = vadd.f32 0.0, %v2141
    %2143 = vdwg.mxu0
    %2144 = vmatpush.msra.mxu0 0.0
    %2145 = vmatpush.msra.mxu0 0.0
    %2146 = vmatpush.msra.mxu0 0.0
    %2147 = vmatpush.msra.mxu0 0.0
    %2148 = vmatpush.msra.mxu0 0.0
    %2149 = vmatpush.msra.mxu0 0.0
    %2150 = vmatpush.msra.mxu0 0.0
    %2151 = vmatpush.msra.mxu0 0.0
    %2152 = vmatpush.msra.mxu0 0.0
    %2153 = vmatpush.msra.mxu0 0.0
    %2154 = vmatpush.msra.mxu0 0.0
    %2155 = vmatpush.msra.mxu0 0.0
    %2156 = vmatpush.msra.mxu0 %v741
    %2157 = vmatpush.msra.mxu0 %v359
    %2158 = vmatpush.msra.mxu0 %v231
    %2159 = vmatpush.msra.mxu0 %v103
    %2160 = vmatmul.f32.gmra.mxu0 %v557
    %v2161 = vpop.f32.mrf.mxu0
    %v2162 = vadd.f32 0.0, %v2161
    %2163 = vdwg.mxu0
    %2164 = vmatpush.msra.mxu0 0.0
    %2165 = vmatpush.msra.mxu0 0.0
    %2166 = vmatpush.msra.mxu0 0.0
    %2167 = vmatpush.msra.mxu0 0.0
    %2168 = vmatpush.msra.mxu0 0.0
    %2169 = vmatpush.msra.mxu0 0.0
    %2170 = vmatpush.msra.mxu0 0.0
    %2171 = vmatpush.msra.mxu0 0.0
    %2172 = vmatpush.msra.mxu0 0.0
    %2173 = vmatpush.msra.mxu0 0.0
    %2174 = vmatpush.msra.mxu0 0.0
    %2175 = vmatpush.msra.mxu0 0.0
    %2176 = vmatpush.msra.mxu0 %v744
    %2177 = vmatpush.msra.mxu0 %v360
    %2178 = vmatpush.msra.mxu0 %v232
    %2179 = vmatpush.msra.mxu0 %v104
    %2180 = vmatmul.f32.gmra.mxu0 %v557
    %v2181 = vpop.f32.mrf.mxu0
    %v2182 = vadd.f32 0.0, %v2181
    %2183 = vdwg.mxu0
    %2184 = vmatpush.msra.mxu0 0.0
    %2185 = vmatpush.msra.mxu0 0.0
    %2186 = vmatpush.msra.mxu0 0.0
    %2187 = vmatpush.msra.mxu0 0.0
    %2188 = vmatpush.msra.mxu0 0.0
    %2189 = vmatpush.msra.mxu0 0.0
    %2190 = vmatpush.msra.mxu0 0.0
    %2191 = vmatpush.msra.mxu0 0.0
    %2192 = vmatpush.msra.mxu0 0.0
    %2193 = vmatpush.msra.mxu0 0.0
    %2194 = vmatpush.msra.mxu0 0.0
    %2195 = vmatpush.msra.mxu0 0.0
    %2196 = vmatpush.msra.mxu0 %v747
    %2197 = vmatpush.msra.mxu0 %v361
    %2198 = vmatpush.msra.mxu0 %v233
    %2199 = vmatpush.msra.mxu0 %v105
    %2200 = vmatmul.f32.gmra.mxu0 %v557
    %v2201 = vpop.f32.mrf.mxu0
    %v2202 = vadd.f32 0.0, %v2201
    %2203 = vdwg.mxu0
    %2204 = vmatpush.msra.mxu0 0.0
    %2205 = vmatpush.msra.mxu0 0.0
    %2206 = vmatpush.msra.mxu0 0.0
    %2207 = vmatpush.msra.mxu0 0.0
    %2208 = vmatpush.msra.mxu0 0.0
    %2209 = vmatpush.msra.mxu0 0.0
    %2210 = vmatpush.msra.mxu0 0.0
    %2211 = vmatpush.msra.mxu0 0.0
    %2212 = vmatpush.msra.mxu0 0.0
    %2213 = vmatpush.msra.mxu0 0.0
    %2214 = vmatpush.msra.mxu0 0.0
    %2215 = vmatpush.msra.mxu0 0.0
    %2216 = vmatpush.msra.mxu0 %v750
    %2217 = vmatpush.msra.mxu0 %v362
    %2218 = vmatpush.msra.mxu0 %v234
    %2219 = vmatpush.msra.mxu0 %v106
    %2220 = vmatmul.f32.gmra.mxu0 %v557
    %v2221 = vpop.f32.mrf.mxu0
    %v2222 = vadd.f32 0.0, %v2221
    %2223 = vdwg.mxu0
    %2224 = vmatpush.msra.mxu0 0.0
    %2225 = vmatpush.msra.mxu0 0.0
    %2226 = vmatpush.msra.mxu0 0.0
    %2227 = vmatpush.msra.mxu0 0.0
    %2228 = vmatpush.msra.mxu0 0.0
    %2229 = vmatpush.msra.mxu0 0.0
    %2230 = vmatpush.msra.mxu0 0.0
    %2231 = vmatpush.msra.mxu0 0.0
    %2232 = vmatpush.msra.mxu0 0.0
    %2233 = vmatpush.msra.mxu0 0.0
    %2234 = vmatpush.msra.mxu0 0.0
    %2235 = vmatpush.msra.mxu0 0.0
    %2236 = vmatpush.msra.mxu0 %v753
    %2237 = vmatpush.msra.mxu0 %v363
    %2238 = vmatpush.msra.mxu0 %v235
    %2239 = vmatpush.msra.mxu0 %v107
    %2240 = vmatmul.f32.gmra.mxu0 %v557
    %v2241 = vpop.f32.mrf.mxu0
    %v2242 = vadd.f32 0.0, %v2241
    %2243 = vdwg.mxu0
    %2244 = vmatpush.msra.mxu0 0.0
    %2245 = vmatpush.msra.mxu0 0.0
    %2246 = vmatpush.msra.mxu0 0.0
    %2247 = vmatpush.msra.mxu0 0.0
    %2248 = vmatpush.msra.mxu0 0.0
    %2249 = vmatpush.msra.mxu0 0.0
    %2250 = vmatpush.msra.mxu0 0.0
    %2251 = vmatpush.msra.mxu0 0.0
    %2252 = vmatpush.msra.mxu0 0.0
    %2253 = vmatpush.msra.mxu0 0.0
    %2254 = vmatpush.msra.mxu0 0.0
    %2255 = vmatpush.msra.mxu0 0.0
    %2256 = vmatpush.msra.mxu0 %v756
    %2257 = vmatpush.msra.mxu0 %v364
    %2258 = vmatpush.msra.mxu0 %v236
    %2259 = vmatpush.msra.mxu0 %v108
    %2260 = vmatmul.f32.gmra.mxu0 %v557
    %v2261 = vpop.f32.mrf.mxu0
    %v2262 = vadd.f32 0.0, %v2261
    %2263 = vdwg.mxu0
    %2264 = vmatpush.msra.mxu0 0.0
    %2265 = vmatpush.msra.mxu0 0.0
    %2266 = vmatpush.msra.mxu0 0.0
    %2267 = vmatpush.msra.mxu0 0.0
    %2268 = vmatpush.msra.mxu0 0.0
    %2269 = vmatpush.msra.mxu0 0.0
    %2270 = vmatpush.msra.mxu0 0.0
    %2271 = vmatpush.msra.mxu0 0.0
    %2272 = vmatpush.msra.mxu0 0.0
    %2273 = vmatpush.msra.mxu0 0.0
    %2274 = vmatpush.msra.mxu0 0.0
    %2275 = vmatpush.msra.mxu0 0.0
    %2276 = vmatpush.msra.mxu0 %v759
    %2277 = vmatpush.msra.mxu0 %v365
    %2278 = vmatpush.msra.mxu0 %v237
    %2279 = vmatpush.msra.mxu0 %v109
    %2280 = vmatmul.f32.gmra.mxu0 %v557
    %v2281 = vpop.f32.mrf.mxu0
    %v2282 = vadd.f32 0.0, %v2281
    %2283 = vdwg.mxu0
    %2284 = vmatpush.msra.mxu0 0.0
    %2285 = vmatpush.msra.mxu0 0.0
    %2286 = vmatpush.msra.mxu0 0.0
    %2287 = vmatpush.msra.mxu0 0.0
    %2288 = vmatpush.msra.mxu0 0.0
    %2289 = vmatpush.msra.mxu0 0.0
    %2290 = vmatpush.msra.mxu0 0.0
    %2291 = vmatpush.msra.mxu0 0.0
    %2292 = vmatpush.msra.mxu0 0.0
    %2293 = vmatpush.msra.mxu0 0.0
    %2294 = vmatpush.msra.mxu0 0.0
    %2295 = vmatpush.msra.mxu0 0.0
    %2296 = vmatpush.msra.mxu0 %v762
    %2297 = vmatpush.msra.mxu0 %v366
    %2298 = vmatpush.msra.mxu0 %v238
    %2299 = vmatpush.msra.mxu0 %v110
    %2300 = vmatmul.f32.gmra.mxu0 %v557
    %v2301 = vpop.f32.mrf.mxu0
    %v2302 = vadd.f32 0.0, %v2301
    %2303 = vdwg.mxu0
    %2304 = vmatpush.msra.mxu0 0.0
    %2305 = vmatpush.msra.mxu0 0.0
    %2306 = vmatpush.msra.mxu0 0.0
    %2307 = vmatpush.msra.mxu0 0.0
    %2308 = vmatpush.msra.mxu0 0.0
    %2309 = vmatpush.msra.mxu0 0.0
    %2310 = vmatpush.msra.mxu0 0.0
    %2311 = vmatpush.msra.mxu0 0.0
    %2312 = vmatpush.msra.mxu0 0.0
    %2313 = vmatpush.msra.mxu0 0.0
    %2314 = vmatpush.msra.mxu0 0.0
    %2315 = vmatpush.msra.mxu0 0.0
    %2316 = vmatpush.msra.mxu0 %v765
    %2317 = vmatpush.msra.mxu0 %v367
    %2318 = vmatpush.msra.mxu0 %v239
    %2319 = vmatpush.msra.mxu0 %v111
    %2320 = vmatmul.f32.gmra.mxu0 %v557
    %v2321 = vpop.f32.mrf.mxu0
    %v2322 = vadd.f32 0.0, %v2321
    %2323 = vdwg.mxu0
    %2324 = vmatpush.msra.mxu0 0.0
    %2325 = vmatpush.msra.mxu0 0.0
    %2326 = vmatpush.msra.mxu0 0.0
    %2327 = vmatpush.msra.mxu0 0.0
    %2328 = vmatpush.msra.mxu0 0.0
    %2329 = vmatpush.msra.mxu0 0.0
    %2330 = vmatpush.msra.mxu0 0.0
    %2331 = vmatpush.msra.mxu0 0.0
    %2332 = vmatpush.msra.mxu0 0.0
    %2333 = vmatpush.msra.mxu0 0.0
    %2334 = vmatpush.msra.mxu0 0.0
    %2335 = vmatpush.msra.mxu0 0.0
    %2336 = vmatpush.msra.mxu0 %v768
    %2337 = vmatpush.msra.mxu0 %v368
    %2338 = vmatpush.msra.mxu0 %v240
    %2339 = vmatpush.msra.mxu0 %v112
    %2340 = vmatmul.f32.gmra.mxu0 %v557
    %v2341 = vpop.f32.mrf.mxu0
    %v2342 = vadd.f32 0.0, %v2341
    %2343 = vdwg.mxu0
    %2344 = vmatpush.msra.mxu0 0.0
    %2345 = vmatpush.msra.mxu0 0.0
    %2346 = vmatpush.msra.mxu0 0.0
    %2347 = vmatpush.msra.mxu0 0.0
    %2348 = vmatpush.msra.mxu0 0.0
    %2349 = vmatpush.msra.mxu0 0.0
    %2350 = vmatpush.msra.mxu0 0.0
    %2351 = vmatpush.msra.mxu0 0.0
    %2352 = vmatpush.msra.mxu0 0.0
    %2353 = vmatpush.msra.mxu0 0.0
    %2354 = vmatpush.msra.mxu0 0.0
    %2355 = vmatpush.msra.mxu0 0.0
    %2356 = vmatpush.msra.mxu0 %v771
    %2357 = vmatpush.msra.mxu0 %v369
    %2358 = vmatpush.msra.mxu0 %v241
    %2359 = vmatpush.msra.mxu0 %v113
    %2360 = vmatmul.f32.gmra.mxu0 %v557
    %v2361 = vpop.f32.mrf.mxu0
    %v2362 = vadd.f32 0.0, %v2361
    %2363 = vdwg.mxu0
    %2364 = vmatpush.msra.mxu0 0.0
    %2365 = vmatpush.msra.mxu0 0.0
    %2366 = vmatpush.msra.mxu0 0.0
    %2367 = vmatpush.msra.mxu0 0.0
    %2368 = vmatpush.msra.mxu0 0.0
    %2369 = vmatpush.msra.mxu0 0.0
    %2370 = vmatpush.msra.mxu0 0.0
    %2371 = vmatpush.msra.mxu0 0.0
    %2372 = vmatpush.msra.mxu0 0.0
    %2373 = vmatpush.msra.mxu0 0.0
    %2374 = vmatpush.msra.mxu0 0.0
    %2375 = vmatpush.msra.mxu0 0.0
    %2376 = vmatpush.msra.mxu0 %v774
    %2377 = vmatpush.msra.mxu0 %v370
    %2378 = vmatpush.msra.mxu0 %v242
    %2379 = vmatpush.msra.mxu0 %v114
    %2380 = vmatmul.f32.gmra.mxu0 %v557
    %v2381 = vpop.f32.mrf.mxu0
    %v2382 = vadd.f32 0.0, %v2381
    %2383 = vdwg.mxu0
    %2384 = vmatpush.msra.mxu0 0.0
    %2385 = vmatpush.msra.mxu0 0.0
    %2386 = vmatpush.msra.mxu0 0.0
    %2387 = vmatpush.msra.mxu0 0.0
    %2388 = vmatpush.msra.mxu0 0.0
    %2389 = vmatpush.msra.mxu0 0.0
    %2390 = vmatpush.msra.mxu0 0.0
    %2391 = vmatpush.msra.mxu0 0.0
    %2392 = vmatpush.msra.mxu0 0.0
    %2393 = vmatpush.msra.mxu0 0.0
    %2394 = vmatpush.msra.mxu0 0.0
    %2395 = vmatpush.msra.mxu0 0.0
    %2396 = vmatpush.msra.mxu0 %v777
    %2397 = vmatpush.msra.mxu0 %v371
    %2398 = vmatpush.msra.mxu0 %v243
    %2399 = vmatpush.msra.mxu0 %v115
    %2400 = vmatmul.f32.gmra.mxu0 %v557
    %v2401 = vpop.f32.mrf.mxu0
    %v2402 = vadd.f32 0.0, %v2401
    %2403 = vdwg.mxu0
    %2404 = vmatpush.msra.mxu0 0.0
    %2405 = vmatpush.msra.mxu0 0.0
    %2406 = vmatpush.msra.mxu0 0.0
    %2407 = vmatpush.msra.mxu0 0.0
    %2408 = vmatpush.msra.mxu0 0.0
    %2409 = vmatpush.msra.mxu0 0.0
    %2410 = vmatpush.msra.mxu0 0.0
    %2411 = vmatpush.msra.mxu0 0.0
    %2412 = vmatpush.msra.mxu0 0.0
    %2413 = vmatpush.msra.mxu0 0.0
    %2414 = vmatpush.msra.mxu0 0.0
    %2415 = vmatpush.msra.mxu0 0.0
    %2416 = vmatpush.msra.mxu0 %v780
    %2417 = vmatpush.msra.mxu0 %v372
    %2418 = vmatpush.msra.mxu0 %v244
    %2419 = vmatpush.msra.mxu0 %v116
    %2420 = vmatmul.f32.gmra.mxu0 %v557
    %v2421 = vpop.f32.mrf.mxu0
    %v2422 = vadd.f32 0.0, %v2421
    %2423 = vdwg.mxu0
    %2424 = vmatpush.msra.mxu0 0.0
    %2425 = vmatpush.msra.mxu0 0.0
    %2426 = vmatpush.msra.mxu0 0.0
    %2427 = vmatpush.msra.mxu0 0.0
    %2428 = vmatpush.msra.mxu0 0.0
    %2429 = vmatpush.msra.mxu0 0.0
    %2430 = vmatpush.msra.mxu0 0.0
    %2431 = vmatpush.msra.mxu0 0.0
    %2432 = vmatpush.msra.mxu0 0.0
    %2433 = vmatpush.msra.mxu0 0.0
    %2434 = vmatpush.msra.mxu0 0.0
    %2435 = vmatpush.msra.mxu0 0.0
    %2436 = vmatpush.msra.mxu0 %v783
    %2437 = vmatpush.msra.mxu0 %v373
    %2438 = vmatpush.msra.mxu0 %v245
    %2439 = vmatpush.msra.mxu0 %v117
    %2440 = vmatmul.f32.gmra.mxu0 %v557
    %v2441 = vpop.f32.mrf.mxu0
    %v2442 = vadd.f32 0.0, %v2441
    %2443 = vdwg.mxu0
    %2444 = vmatpush.msra.mxu0 0.0
    %2445 = vmatpush.msra.mxu0 0.0
    %2446 = vmatpush.msra.mxu0 0.0
    %2447 = vmatpush.msra.mxu0 0.0
    %2448 = vmatpush.msra.mxu0 0.0
    %2449 = vmatpush.msra.mxu0 0.0
    %2450 = vmatpush.msra.mxu0 0.0
    %2451 = vmatpush.msra.mxu0 0.0
    %2452 = vmatpush.msra.mxu0 0.0
    %2453 = vmatpush.msra.mxu0 0.0
    %2454 = vmatpush.msra.mxu0 0.0
    %2455 = vmatpush.msra.mxu0 0.0
    %2456 = vmatpush.msra.mxu0 %v786
    %2457 = vmatpush.msra.mxu0 %v374
    %2458 = vmatpush.msra.mxu0 %v246
    %2459 = vmatpush.msra.mxu0 %v118
    %2460 = vmatmul.f32.gmra.mxu0 %v557
    %v2461 = vpop.f32.mrf.mxu0
    %v2462 = vadd.f32 0.0, %v2461
    %2463 = vdwg.mxu0
    %2464 = vmatpush.msra.mxu0 0.0
    %2465 = vmatpush.msra.mxu0 0.0
    %2466 = vmatpush.msra.mxu0 0.0
    %2467 = vmatpush.msra.mxu0 0.0
    %2468 = vmatpush.msra.mxu0 0.0
    %2469 = vmatpush.msra.mxu0 0.0
    %2470 = vmatpush.msra.mxu0 0.0
    %2471 = vmatpush.msra.mxu0 0.0
    %2472 = vmatpush.msra.mxu0 0.0
    %2473 = vmatpush.msra.mxu0 0.0
    %2474 = vmatpush.msra.mxu0 0.0
    %2475 = vmatpush.msra.mxu0 0.0
    %2476 = vmatpush.msra.mxu0 %v789
    %2477 = vmatpush.msra.mxu0 %v375
    %2478 = vmatpush.msra.mxu0 %v247
    %2479 = vmatpush.msra.mxu0 %v119
    %2480 = vmatmul.f32.gmra.mxu0 %v557
    %v2481 = vpop.f32.mrf.mxu0
    %v2482 = vadd.f32 0.0, %v2481
    %2483 = vdwg.mxu0
    %2484 = vmatpush.msra.mxu0 0.0
    %2485 = vmatpush.msra.mxu0 0.0
    %2486 = vmatpush.msra.mxu0 0.0
    %2487 = vmatpush.msra.mxu0 0.0
    %2488 = vmatpush.msra.mxu0 0.0
    %2489 = vmatpush.msra.mxu0 0.0
    %2490 = vmatpush.msra.mxu0 0.0
    %2491 = vmatpush.msra.mxu0 0.0
    %2492 = vmatpush.msra.mxu0 0.0
    %2493 = vmatpush.msra.mxu0 0.0
    %2494 = vmatpush.msra.mxu0 0.0
    %2495 = vmatpush.msra.mxu0 0.0
    %2496 = vmatpush.msra.mxu0 %v792
    %2497 = vmatpush.msra.mxu0 %v376
    %2498 = vmatpush.msra.mxu0 %v248
    %2499 = vmatpush.msra.mxu0 %v120
    %2500 = vmatmul.f32.gmra.mxu0 %v557
    %v2501 = vpop.f32.mrf.mxu0
    %v2502 = vadd.f32 0.0, %v2501
    %2503 = vdwg.mxu0
    %2504 = vmatpush.msra.mxu0 0.0
    %2505 = vmatpush.msra.mxu0 0.0
    %2506 = vmatpush.msra.mxu0 0.0
    %2507 = vmatpush.msra.mxu0 0.0
    %2508 = vmatpush.msra.mxu0 0.0
    %2509 = vmatpush.msra.mxu0 0.0
    %2510 = vmatpush.msra.mxu0 0.0
    %2511 = vmatpush.msra.mxu0 0.0
    %2512 = vmatpush.msra.mxu0 0.0
    %2513 = vmatpush.msra.mxu0 0.0
    %2514 = vmatpush.msra.mxu0 0.0
    %2515 = vmatpush.msra.mxu0 0.0
    %2516 = vmatpush.msra.mxu0 %v795
    %2517 = vmatpush.msra.mxu0 %v377
    %2518 = vmatpush.msra.mxu0 %v249
    %2519 = vmatpush.msra.mxu0 %v121
    %2520 = vmatmul.f32.gmra.mxu0 %v557
    %v2521 = vpop.f32.mrf.mxu0
    %v2522 = vadd.f32 0.0, %v2521
    %2523 = vdwg.mxu0
    %2524 = vmatpush.msra.mxu0 0.0
    %2525 = vmatpush.msra.mxu0 0.0
    %2526 = vmatpush.msra.mxu0 0.0
    %2527 = vmatpush.msra.mxu0 0.0
    %2528 = vmatpush.msra.mxu0 0.0
    %2529 = vmatpush.msra.mxu0 0.0
    %2530 = vmatpush.msra.mxu0 0.0
    %2531 = vmatpush.msra.mxu0 0.0
    %2532 = vmatpush.msra.mxu0 0.0
    %2533 = vmatpush.msra.mxu0 0.0
    %2534 = vmatpush.msra.mxu0 0.0
    %2535 = vmatpush.msra.mxu0 0.0
    %2536 = vmatpush.msra.mxu0 %v798
    %2537 = vmatpush.msra.mxu0 %v378
    %2538 = vmatpush.msra.mxu0 %v250
    %2539 = vmatpush.msra.mxu0 %v122
    %2540 = vmatmul.f32.gmra.mxu0 %v557
    %v2541 = vpop.f32.mrf.mxu0
    %v2542 = vadd.f32 0.0, %v2541
    %2543 = vdwg.mxu0
    %2544 = vmatpush.msra.mxu0 0.0
    %2545 = vmatpush.msra.mxu0 0.0
    %2546 = vmatpush.msra.mxu0 0.0
    %2547 = vmatpush.msra.mxu0 0.0
    %2548 = vmatpush.msra.mxu0 0.0
    %2549 = vmatpush.msra.mxu0 0.0
    %2550 = vmatpush.msra.mxu0 0.0
    %2551 = vmatpush.msra.mxu0 0.0
    %2552 = vmatpush.msra.mxu0 0.0
    %2553 = vmatpush.msra.mxu0 0.0
    %2554 = vmatpush.msra.mxu0 0.0
    %2555 = vmatpush.msra.mxu0 0.0
    %2556 = vmatpush.msra.mxu0 %v801
    %2557 = vmatpush.msra.mxu0 %v379
    %2558 = vmatpush.msra.mxu0 %v251
    %2559 = vmatpush.msra.mxu0 %v123
    %2560 = vmatmul.f32.gmra.mxu0 %v557
    %v2561 = vpop.f32.mrf.mxu0
    %v2562 = vadd.f32 0.0, %v2561
    %2563 = vdwg.mxu0
    %2564 = vmatpush.msra.mxu0 0.0
    %2565 = vmatpush.msra.mxu0 0.0
    %2566 = vmatpush.msra.mxu0 0.0
    %2567 = vmatpush.msra.mxu0 0.0
    %2568 = vmatpush.msra.mxu0 0.0
    %2569 = vmatpush.msra.mxu0 0.0
    %2570 = vmatpush.msra.mxu0 0.0
    %2571 = vmatpush.msra.mxu0 0.0
    %2572 = vmatpush.msra.mxu0 0.0
    %2573 = vmatpush.msra.mxu0 0.0
    %2574 = vmatpush.msra.mxu0 0.0
    %2575 = vmatpush.msra.mxu0 0.0
    %2576 = vmatpush.msra.mxu0 %v804
    %2577 = vmatpush.msra.mxu0 %v380
    %2578 = vmatpush.msra.mxu0 %v252
    %2579 = vmatpush.msra.mxu0 %v124
    %2580 = vmatmul.f32.gmra.mxu0 %v557
    %v2581 = vpop.f32.mrf.mxu0
    %v2582 = vadd.f32 0.0, %v2581
    %2583 = vdwg.mxu0
    %2584 = vmatpush.msra.mxu0 0.0
    %2585 = vmatpush.msra.mxu0 0.0
    %2586 = vmatpush.msra.mxu0 0.0
    %2587 = vmatpush.msra.mxu0 0.0
    %2588 = vmatpush.msra.mxu0 0.0
    %2589 = vmatpush.msra.mxu0 0.0
    %2590 = vmatpush.msra.mxu0 0.0
    %2591 = vmatpush.msra.mxu0 0.0
    %2592 = vmatpush.msra.mxu0 0.0
    %2593 = vmatpush.msra.mxu0 0.0
    %2594 = vmatpush.msra.mxu0 0.0
    %2595 = vmatpush.msra.mxu0 0.0
    %2596 = vmatpush.msra.mxu0 %v807
    %2597 = vmatpush.msra.mxu0 %v381
    %2598 = vmatpush.msra.mxu0 %v253
    %2599 = vmatpush.msra.mxu0 %v125
    %2600 = vmatmul.f32.gmra.mxu0 %v557
    %v2601 = vpop.f32.mrf.mxu0
    %v2602 = vadd.f32 0.0, %v2601
    %2603 = vdwg.mxu0
    %2604 = vmatpush.msra.mxu0 0.0
    %2605 = vmatpush.msra.mxu0 0.0
    %2606 = vmatpush.msra.mxu0 0.0
    %2607 = vmatpush.msra.mxu0 0.0
    %2608 = vmatpush.msra.mxu0 0.0
    %2609 = vmatpush.msra.mxu0 0.0
    %2610 = vmatpush.msra.mxu0 0.0
    %2611 = vmatpush.msra.mxu0 0.0
    %2612 = vmatpush.msra.mxu0 0.0
    %2613 = vmatpush.msra.mxu0 0.0
    %2614 = vmatpush.msra.mxu0 0.0
    %2615 = vmatpush.msra.mxu0 0.0
    %2616 = vmatpush.msra.mxu0 %v810
    %2617 = vmatpush.msra.mxu0 %v382
    %2618 = vmatpush.msra.mxu0 %v254
    %2619 = vmatpush.msra.mxu0 %v126
    %2620 = vmatmul.f32.gmra.mxu0 %v557
    %v2621 = vpop.f32.mrf.mxu0
    %v2622 = vadd.f32 0.0, %v2621
    %2623 = vdwg.mxu0
    %2624 = vmatpush.msra.mxu0 0.0
    %2625 = vmatpush.msra.mxu0 0.0
    %2626 = vmatpush.msra.mxu0 0.0
    %2627 = vmatpush.msra.mxu0 0.0
    %2628 = vmatpush.msra.mxu0 0.0
    %2629 = vmatpush.msra.mxu0 0.0
    %2630 = vmatpush.msra.mxu0 0.0
    %2631 = vmatpush.msra.mxu0 0.0
    %2632 = vmatpush.msra.mxu0 0.0
    %2633 = vmatpush.msra.mxu0 0.0
    %2634 = vmatpush.msra.mxu0 0.0
    %2635 = vmatpush.msra.mxu0 0.0
    %2636 = vmatpush.msra.mxu0 %v813
    %2637 = vmatpush.msra.mxu0 %v383
    %2638 = vmatpush.msra.mxu0 %v255
    %2639 = vmatpush.msra.mxu0 %v127
    %2640 = vmatmul.f32.gmra.mxu0 %v557
    %v2641 = vpop.f32.mrf.mxu0
    %v2642 = vadd.f32 0.0, %v2641
    %2643 = vdwg.mxu0
    %2644 = vmatpush.msra.mxu0 0.0
    %2645 = vmatpush.msra.mxu0 0.0
    %2646 = vmatpush.msra.mxu0 0.0
    %2647 = vmatpush.msra.mxu0 0.0
    %2648 = vmatpush.msra.mxu0 0.0
    %2649 = vmatpush.msra.mxu0 0.0
    %2650 = vmatpush.msra.mxu0 0.0
    %2651 = vmatpush.msra.mxu0 0.0
    %2652 = vmatpush.msra.mxu0 0.0
    %2653 = vmatpush.msra.mxu0 0.0
    %2654 = vmatpush.msra.mxu0 0.0
    %2655 = vmatpush.msra.mxu0 0.0
    %2656 = vmatpush.msra.mxu0 %v816
    %2657 = vmatpush.msra.mxu0 %v384
    %2658 = vmatpush.msra.mxu0 %v256
    %2659 = vmatpush.msra.mxu0 %v128
    %2660 = vmatmul.f32.gmra.mxu0 %v557
    %v2661 = vpop.f32.mrf.mxu0
    %v2662 = vadd.f32 0.0, %v2661
    %2663 = vdwg.mxu0
    %2664 = vmatpush.msra.mxu0 0.0
    %2665 = vmatpush.msra.mxu0 0.0
    %2666 = vmatpush.msra.mxu0 0.0
    %2667 = vmatpush.msra.mxu0 0.0
    %2668 = vmatpush.msra.mxu0 0.0
    %2669 = vmatpush.msra.mxu0 0.0
    %2670 = vmatpush.msra.mxu0 0.0
    %2671 = vmatpush.msra.mxu0 0.0
    %2672 = vmatpush.msra.mxu0 0.0
    %2673 = vmatpush.msra.mxu0 0.0
    %2674 = vmatpush.msra.mxu0 0.0
    %2675 = vmatpush.msra.mxu0 0.0
    %2676 = vmatpush.msra.mxu0 %v819
    %2677 = vmatpush.msra.mxu0 %v385
    %2678 = vmatpush.msra.mxu0 %v257
    %2679 = vmatpush.msra.mxu0 %v129
    %2680 = vmatmul.f32.gmra.mxu0 %v557
    %v2681 = vpop.f32.mrf.mxu0
    %v2682 = vadd.f32 0.0, %v2681
    %2683 = vdwg.mxu0
    %2684 = vmatpush.msra.mxu0 0.0
    %2685 = vmatpush.msra.mxu0 0.0
    %2686 = vmatpush.msra.mxu0 0.0
    %2687 = vmatpush.msra.mxu0 0.0
    %2688 = vmatpush.msra.mxu0 0.0
    %2689 = vmatpush.msra.mxu0 0.0
    %2690 = vmatpush.msra.mxu0 0.0
    %2691 = vmatpush.msra.mxu0 0.0
    %2692 = vmatpush.msra.mxu0 0.0
    %2693 = vmatpush.msra.mxu0 0.0
    %2694 = vmatpush.msra.mxu0 0.0
    %2695 = vmatpush.msra.mxu0 0.0
    %2696 = vmatpush.msra.mxu0 %v822
    %2697 = vmatpush.msra.mxu0 %v386
    %2698 = vmatpush.msra.mxu0 %v258
    %2699 = vmatpush.msra.mxu0 %v130
    %2700 = vmatmul.f32.gmra.mxu0 %v557
    %v2701 = vpop.f32.mrf.mxu0
    %v2702 = vadd.f32 0.0, %v2701
    %2703 = vdwg.mxu0
    %2704 = vmatpush.msra.mxu0 0.0
    %2705 = vmatpush.msra.mxu0 0.0
    %2706 = vmatpush.msra.mxu0 0.0
    %2707 = vmatpush.msra.mxu0 0.0
    %2708 = vmatpush.msra.mxu0 0.0
    %2709 = vmatpush.msra.mxu0 0.0
    %2710 = vmatpush.msra.mxu0 0.0
    %2711 = vmatpush.msra.mxu0 0.0
    %2712 = vmatpush.msra.mxu0 0.0
    %2713 = vmatpush.msra.mxu0 0.0
    %2714 = vmatpush.msra.mxu0 0.0
    %2715 = vmatpush.msra.mxu0 0.0
    %2716 = vmatpush.msra.mxu0 %v825
    %2717 = vmatpush.msra.mxu0 %v387
    %2718 = vmatpush.msra.mxu0 %v259
    %2719 = vmatpush.msra.mxu0 %v131
    %2720 = vmatmul.f32.gmra.mxu0 %v557
    %v2721 = vpop.f32.mrf.mxu0
    %v2722 = vadd.f32 0.0, %v2721
    %2723 = vdwg.mxu0
    %2724 = vmatpush.msra.mxu0 0.0
    %2725 = vmatpush.msra.mxu0 0.0
    %2726 = vmatpush.msra.mxu0 0.0
    %2727 = vmatpush.msra.mxu0 0.0
    %2728 = vmatpush.msra.mxu0 0.0
    %2729 = vmatpush.msra.mxu0 0.0
    %2730 = vmatpush.msra.mxu0 0.0
    %2731 = vmatpush.msra.mxu0 0.0
    %2732 = vmatpush.msra.mxu0 0.0
    %2733 = vmatpush.msra.mxu0 0.0
    %2734 = vmatpush.msra.mxu0 0.0
    %2735 = vmatpush.msra.mxu0 0.0
    %2736 = vmatpush.msra.mxu0 %v828
    %2737 = vmatpush.msra.mxu0 %v388
    %2738 = vmatpush.msra.mxu0 %v260
    %2739 = vmatpush.msra.mxu0 %v132
    %2740 = vmatmul.f32.gmra.mxu0 %v557
    %v2741 = vpop.f32.mrf.mxu0
    %v2742 = vadd.f32 0.0, %v2741
    %2743 = vdwg.mxu0
    %2744 = vmatpush.msra.mxu0 0.0
    %2745 = vmatpush.msra.mxu0 0.0
    %2746 = vmatpush.msra.mxu0 0.0
    %2747 = vmatpush.msra.mxu0 0.0
    %2748 = vmatpush.msra.mxu0 0.0
    %2749 = vmatpush.msra.mxu0 0.0
    %2750 = vmatpush.msra.mxu0 0.0
    %2751 = vmatpush.msra.mxu0 0.0
    %2752 = vmatpush.msra.mxu0 0.0
    %2753 = vmatpush.msra.mxu0 0.0
    %2754 = vmatpush.msra.mxu0 0.0
    %2755 = vmatpush.msra.mxu0 0.0
    %2756 = vmatpush.msra.mxu0 %v831
    %2757 = vmatpush.msra.mxu0 %v389
    %2758 = vmatpush.msra.mxu0 %v261
    %2759 = vmatpush.msra.mxu0 %v133
    %2760 = vmatmul.f32.gmra.mxu0 %v557
    %v2761 = vpop.f32.mrf.mxu0
    %v2762 = vadd.f32 0.0, %v2761
    %2763 = vdwg.mxu0
    %2764 = vmatpush.msra.mxu0 0.0
    %2765 = vmatpush.msra.mxu0 0.0
    %2766 = vmatpush.msra.mxu0 0.0
    %2767 = vmatpush.msra.mxu0 0.0
    %2768 = vmatpush.msra.mxu0 0.0
    %2769 = vmatpush.msra.mxu0 0.0
    %2770 = vmatpush.msra.mxu0 0.0
    %2771 = vmatpush.msra.mxu0 0.0
    %2772 = vmatpush.msra.mxu0 0.0
    %2773 = vmatpush.msra.mxu0 0.0
    %2774 = vmatpush.msra.mxu0 0.0
    %2775 = vmatpush.msra.mxu0 0.0
    %2776 = vmatpush.msra.mxu0 %v834
    %2777 = vmatpush.msra.mxu0 %v390
    %2778 = vmatpush.msra.mxu0 %v262
    %2779 = vmatpush.msra.mxu0 %v134
    %2780 = vmatmul.f32.gmra.mxu0 %v557
    %v2781 = vpop.f32.mrf.mxu0
    %v2782 = vadd.f32 0.0, %v2781
    %2783 = vdwg.mxu0
    %2784 = vmatpush.msra.mxu0 0.0
    %2785 = vmatpush.msra.mxu0 0.0
    %2786 = vmatpush.msra.mxu0 0.0
    %2787 = vmatpush.msra.mxu0 0.0
    %2788 = vmatpush.msra.mxu0 0.0
    %2789 = vmatpush.msra.mxu0 0.0
    %2790 = vmatpush.msra.mxu0 0.0
    %2791 = vmatpush.msra.mxu0 0.0
    %2792 = vmatpush.msra.mxu0 0.0
    %2793 = vmatpush.msra.mxu0 0.0
    %2794 = vmatpush.msra.mxu0 0.0
    %2795 = vmatpush.msra.mxu0 0.0
    %2796 = vmatpush.msra.mxu0 %v837
    %2797 = vmatpush.msra.mxu0 %v391
    %2798 = vmatpush.msra.mxu0 %v263
    %2799 = vmatpush.msra.mxu0 %v135
    %2800 = vmatmul.f32.gmra.mxu0 %v557
    %v2801 = vpop.f32.mrf.mxu0
    %v2802 = vadd.f32 0.0, %v2801
    %2803 = vdwg.mxu0
    %2804 = vmatpush.msra.mxu0 0.0
    %2805 = vmatpush.msra.mxu0 0.0
    %2806 = vmatpush.msra.mxu0 0.0
    %2807 = vmatpush.msra.mxu0 0.0
    %2808 = vmatpush.msra.mxu0 0.0
    %2809 = vmatpush.msra.mxu0 0.0
    %2810 = vmatpush.msra.mxu0 0.0
    %2811 = vmatpush.msra.mxu0 0.0
    %2812 = vmatpush.msra.mxu0 0.0
    %2813 = vmatpush.msra.mxu0 0.0
    %2814 = vmatpush.msra.mxu0 0.0
    %2815 = vmatpush.msra.mxu0 0.0
    %2816 = vmatpush.msra.mxu0 %v840
    %2817 = vmatpush.msra.mxu0 %v392
    %2818 = vmatpush.msra.mxu0 %v264
    %2819 = vmatpush.msra.mxu0 %v136
    %2820 = vmatmul.f32.gmra.mxu0 %v557
    %v2821 = vpop.f32.mrf.mxu0
    %v2822 = vadd.f32 0.0, %v2821
    %2823 = vdwg.mxu0
    %2824 = vmatpush.msra.mxu0 0.0
    %2825 = vmatpush.msra.mxu0 0.0
    %2826 = vmatpush.msra.mxu0 0.0
    %2827 = vmatpush.msra.mxu0 0.0
    %2828 = vmatpush.msra.mxu0 0.0
    %2829 = vmatpush.msra.mxu0 0.0
    %2830 = vmatpush.msra.mxu0 0.0
    %2831 = vmatpush.msra.mxu0 0.0
    %2832 = vmatpush.msra.mxu0 0.0
    %2833 = vmatpush.msra.mxu0 0.0
    %2834 = vmatpush.msra.mxu0 0.0
    %2835 = vmatpush.msra.mxu0 0.0
    %2836 = vmatpush.msra.mxu0 %v843
    %2837 = vmatpush.msra.mxu0 %v393
    %2838 = vmatpush.msra.mxu0 %v265
    %2839 = vmatpush.msra.mxu0 %v137
    %2840 = vmatmul.f32.gmra.mxu0 %v557
    %v2841 = vpop.f32.mrf.mxu0
    %v2842 = vadd.f32 0.0, %v2841
    %2843 = vdwg.mxu0
    %2844 = vmatpush.msra.mxu0 0.0
    %2845 = vmatpush.msra.mxu0 0.0
    %2846 = vmatpush.msra.mxu0 0.0
    %2847 = vmatpush.msra.mxu0 0.0
    %2848 = vmatpush.msra.mxu0 0.0
    %2849 = vmatpush.msra.mxu0 0.0
    %2850 = vmatpush.msra.mxu0 0.0
    %2851 = vmatpush.msra.mxu0 0.0
    %2852 = vmatpush.msra.mxu0 0.0
    %2853 = vmatpush.msra.mxu0 0.0
    %2854 = vmatpush.msra.mxu0 0.0
    %2855 = vmatpush.msra.mxu0 0.0
    %2856 = vmatpush.msra.mxu0 %v846
    %2857 = vmatpush.msra.mxu0 %v394
    %2858 = vmatpush.msra.mxu0 %v266
    %2859 = vmatpush.msra.mxu0 %v138
    %2860 = vmatmul.f32.gmra.mxu0 %v557
    %v2861 = vpop.f32.mrf.mxu0
    %v2862 = vadd.f32 0.0, %v2861
    %2863 = vdwg.mxu0
    %2864 = vmatpush.msra.mxu0 0.0
    %2865 = vmatpush.msra.mxu0 0.0
    %2866 = vmatpush.msra.mxu0 0.0
    %2867 = vmatpush.msra.mxu0 0.0
    %2868 = vmatpush.msra.mxu0 0.0
    %2869 = vmatpush.msra.mxu0 0.0
    %2870 = vmatpush.msra.mxu0 0.0
    %2871 = vmatpush.msra.mxu0 0.0
    %2872 = vmatpush.msra.mxu0 0.0
    %2873 = vmatpush.msra.mxu0 0.0
    %2874 = vmatpush.msra.mxu0 0.0
    %2875 = vmatpush.msra.mxu0 0.0
    %2876 = vmatpush.msra.mxu0 %v849
    %2877 = vmatpush.msra.mxu0 %v395
    %2878 = vmatpush.msra.mxu0 %v267
    %2879 = vmatpush.msra.mxu0 %v139
    %2880 = vmatmul.f32.gmra.mxu0 %v557
    %v2881 = vpop.f32.mrf.mxu0
    %v2882 = vadd.f32 0.0, %v2881
    %2883 = vdwg.mxu0
    %2884 = vmatpush.msra.mxu0 0.0
    %2885 = vmatpush.msra.mxu0 0.0
    %2886 = vmatpush.msra.mxu0 0.0
    %2887 = vmatpush.msra.mxu0 0.0
    %2888 = vmatpush.msra.mxu0 0.0
    %2889 = vmatpush.msra.mxu0 0.0
    %2890 = vmatpush.msra.mxu0 0.0
    %2891 = vmatpush.msra.mxu0 0.0
    %2892 = vmatpush.msra.mxu0 0.0
    %2893 = vmatpush.msra.mxu0 0.0
    %2894 = vmatpush.msra.mxu0 0.0
    %2895 = vmatpush.msra.mxu0 0.0
    %2896 = vmatpush.msra.mxu0 %v852
    %2897 = vmatpush.msra.mxu0 %v396
    %2898 = vmatpush.msra.mxu0 %v268
    %2899 = vmatpush.msra.mxu0 %v140
    %2900 = vmatmul.f32.gmra.mxu0 %v557
    %v2901 = vpop.f32.mrf.mxu0
    %v2902 = vadd.f32 0.0, %v2901
    %2903 = vdwg.mxu0
    %2904 = vmatpush.msra.mxu0 0.0
    %2905 = vmatpush.msra.mxu0 0.0
    %2906 = vmatpush.msra.mxu0 0.0
    %2907 = vmatpush.msra.mxu0 0.0
    %2908 = vmatpush.msra.mxu0 0.0
    %2909 = vmatpush.msra.mxu0 0.0
    %2910 = vmatpush.msra.mxu0 0.0
    %2911 = vmatpush.msra.mxu0 0.0
    %2912 = vmatpush.msra.mxu0 0.0
    %2913 = vmatpush.msra.mxu0 0.0
    %2914 = vmatpush.msra.mxu0 0.0
    %2915 = vmatpush.msra.mxu0 0.0
    %2916 = vmatpush.msra.mxu0 %v855
    %2917 = vmatpush.msra.mxu0 %v397
    %2918 = vmatpush.msra.mxu0 %v269
    %2919 = vmatpush.msra.mxu0 %v141
    %2920 = vmatmul.f32.gmra.mxu0 %v557
    %v2921 = vpop.f32.mrf.mxu0
    %v2922 = vadd.f32 0.0, %v2921
    %2923 = vdwg.mxu0
    %2924 = vmatpush.msra.mxu0 0.0
    %2925 = vmatpush.msra.mxu0 0.0
    %2926 = vmatpush.msra.mxu0 0.0
    %2927 = vmatpush.msra.mxu0 0.0
    %2928 = vmatpush.msra.mxu0 0.0
    %2929 = vmatpush.msra.mxu0 0.0
    %2930 = vmatpush.msra.mxu0 0.0
    %2931 = vmatpush.msra.mxu0 0.0
    %2932 = vmatpush.msra.mxu0 0.0
    %2933 = vmatpush.msra.mxu0 0.0
    %2934 = vmatpush.msra.mxu0 0.0
    %2935 = vmatpush.msra.mxu0 0.0
    %2936 = vmatpush.msra.mxu0 %v858
    %2937 = vmatpush.msra.mxu0 %v398
    %2938 = vmatpush.msra.mxu0 %v270
    %2939 = vmatpush.msra.mxu0 %v142
    %2940 = vmatmul.f32.gmra.mxu0 %v557
    %v2941 = vpop.f32.mrf.mxu0
    %v2942 = vadd.f32 0.0, %v2941
    %2943 = vdwg.mxu0
    %2944 = vmatpush.msra.mxu0 0.0
    %2945 = vmatpush.msra.mxu0 0.0
    %2946 = vmatpush.msra.mxu0 0.0
    %2947 = vmatpush.msra.mxu0 0.0
    %2948 = vmatpush.msra.mxu0 0.0
    %2949 = vmatpush.msra.mxu0 0.0
    %2950 = vmatpush.msra.mxu0 0.0
    %2951 = vmatpush.msra.mxu0 0.0
    %2952 = vmatpush.msra.mxu0 0.0
    %2953 = vmatpush.msra.mxu0 0.0
    %2954 = vmatpush.msra.mxu0 0.0
    %2955 = vmatpush.msra.mxu0 0.0
    %2956 = vmatpush.msra.mxu0 %v861
    %2957 = vmatpush.msra.mxu0 %v399
    %2958 = vmatpush.msra.mxu0 %v271
    %2959 = vmatpush.msra.mxu0 %v143
    %2960 = vmatmul.f32.gmra.mxu0 %v557
    %v2961 = vpop.f32.mrf.mxu0
    %v2962 = vadd.f32 0.0, %v2961
    %2963 = vdwg.mxu0
    %2964 = vmatpush.msra.mxu0 0.0
    %2965 = vmatpush.msra.mxu0 0.0
    %2966 = vmatpush.msra.mxu0 0.0
    %2967 = vmatpush.msra.mxu0 0.0
    %2968 = vmatpush.msra.mxu0 0.0
    %2969 = vmatpush.msra.mxu0 0.0
    %2970 = vmatpush.msra.mxu0 0.0
    %2971 = vmatpush.msra.mxu0 0.0
    %2972 = vmatpush.msra.mxu0 0.0
    %2973 = vmatpush.msra.mxu0 0.0
    %2974 = vmatpush.msra.mxu0 0.0
    %2975 = vmatpush.msra.mxu0 0.0
    %2976 = vmatpush.msra.mxu0 %v864
    %2977 = vmatpush.msra.mxu0 %v400
    %2978 = vmatpush.msra.mxu0 %v272
    %2979 = vmatpush.msra.mxu0 %v144
    %2980 = vmatmul.f32.gmra.mxu0 %v557
    %v2981 = vpop.f32.mrf.mxu0
    %v2982 = vadd.f32 0.0, %v2981
    %2983 = vdwg.mxu0
    %2984 = vmatpush.msra.mxu0 0.0
    %2985 = vmatpush.msra.mxu0 0.0
    %2986 = vmatpush.msra.mxu0 0.0
    %2987 = vmatpush.msra.mxu0 0.0
    %2988 = vmatpush.msra.mxu0 0.0
    %2989 = vmatpush.msra.mxu0 0.0
    %2990 = vmatpush.msra.mxu0 0.0
    %2991 = vmatpush.msra.mxu0 0.0
    %2992 = vmatpush.msra.mxu0 0.0
    %2993 = vmatpush.msra.mxu0 0.0
    %2994 = vmatpush.msra.mxu0 0.0
    %2995 = vmatpush.msra.mxu0 0.0
    %2996 = vmatpush.msra.mxu0 %v867
    %2997 = vmatpush.msra.mxu0 %v401
    %2998 = vmatpush.msra.mxu0 %v273
    %2999 = vmatpush.msra.mxu0 %v145
    %3000 = vmatmul.f32.gmra.mxu0 %v557
    %v3001 = vpop.f32.mrf.mxu0
    %v3002 = vadd.f32 0.0, %v3001
    %3003 = vdwg.mxu0
    %3004 = vmatpush.msra.mxu0 0.0
    %3005 = vmatpush.msra.mxu0 0.0
    %3006 = vmatpush.msra.mxu0 0.0
    %3007 = vmatpush.msra.mxu0 0.0
    %3008 = vmatpush.msra.mxu0 0.0
    %3009 = vmatpush.msra.mxu0 0.0
    %3010 = vmatpush.msra.mxu0 0.0
    %3011 = vmatpush.msra.mxu0 0.0
    %3012 = vmatpush.msra.mxu0 0.0
    %3013 = vmatpush.msra.mxu0 0.0
    %3014 = vmatpush.msra.mxu0 0.0
    %3015 = vmatpush.msra.mxu0 0.0
    %3016 = vmatpush.msra.mxu0 %v870
    %3017 = vmatpush.msra.mxu0 %v402
    %3018 = vmatpush.msra.mxu0 %v274
    %3019 = vmatpush.msra.mxu0 %v146
    %3020 = vmatmul.f32.gmra.mxu0 %v557
    %v3021 = vpop.f32.mrf.mxu0
    %v3022 = vadd.f32 0.0, %v3021
    %3023 = vdwg.mxu0
    %3024 = vmatpush.msra.mxu0 0.0
    %3025 = vmatpush.msra.mxu0 0.0
    %3026 = vmatpush.msra.mxu0 0.0
    %3027 = vmatpush.msra.mxu0 0.0
    %3028 = vmatpush.msra.mxu0 0.0
    %3029 = vmatpush.msra.mxu0 0.0
    %3030 = vmatpush.msra.mxu0 0.0
    %3031 = vmatpush.msra.mxu0 0.0
    %3032 = vmatpush.msra.mxu0 0.0
    %3033 = vmatpush.msra.mxu0 0.0
    %3034 = vmatpush.msra.mxu0 0.0
    %3035 = vmatpush.msra.mxu0 0.0
    %3036 = vmatpush.msra.mxu0 %v873
    %3037 = vmatpush.msra.mxu0 %v403
    %3038 = vmatpush.msra.mxu0 %v275
    %3039 = vmatpush.msra.mxu0 %v147
    %3040 = vmatmul.f32.gmra.mxu0 %v557
    %v3041 = vpop.f32.mrf.mxu0
    %v3042 = vadd.f32 0.0, %v3041
    %3043 = vdwg.mxu0
    %3044 = vmatpush.msra.mxu0 0.0
    %3045 = vmatpush.msra.mxu0 0.0
    %3046 = vmatpush.msra.mxu0 0.0
    %3047 = vmatpush.msra.mxu0 0.0
    %3048 = vmatpush.msra.mxu0 0.0
    %3049 = vmatpush.msra.mxu0 0.0
    %3050 = vmatpush.msra.mxu0 0.0
    %3051 = vmatpush.msra.mxu0 0.0
    %3052 = vmatpush.msra.mxu0 0.0
    %3053 = vmatpush.msra.mxu0 0.0
    %3054 = vmatpush.msra.mxu0 0.0
    %3055 = vmatpush.msra.mxu0 0.0
    %3056 = vmatpush.msra.mxu0 %v876
    %3057 = vmatpush.msra.mxu0 %v404
    %3058 = vmatpush.msra.mxu0 %v276
    %3059 = vmatpush.msra.mxu0 %v148
    %3060 = vmatmul.f32.gmra.mxu0 %v557
    %v3061 = vpop.f32.mrf.mxu0
    %v3062 = vadd.f32 0.0, %v3061
    %3063 = vdwg.mxu0
    %3064 = vmatpush.msra.mxu0 0.0
    %3065 = vmatpush.msra.mxu0 0.0
    %3066 = vmatpush.msra.mxu0 0.0
    %3067 = vmatpush.msra.mxu0 0.0
    %3068 = vmatpush.msra.mxu0 0.0
    %3069 = vmatpush.msra.mxu0 0.0
    %3070 = vmatpush.msra.mxu0 0.0
    %3071 = vmatpush.msra.mxu0 0.0
    %3072 = vmatpush.msra.mxu0 0.0
    %3073 = vmatpush.msra.mxu0 0.0
    %3074 = vmatpush.msra.mxu0 0.0
    %3075 = vmatpush.msra.mxu0 0.0
    %3076 = vmatpush.msra.mxu0 %v879
    %3077 = vmatpush.msra.mxu0 %v405
    %3078 = vmatpush.msra.mxu0 %v277
    %3079 = vmatpush.msra.mxu0 %v149
    %3080 = vmatmul.f32.gmra.mxu0 %v557
    %v3081 = vpop.f32.mrf.mxu0
    %v3082 = vadd.f32 0.0, %v3081
    %3083 = vdwg.mxu0
    %3084 = vmatpush.msra.mxu0 0.0
    %3085 = vmatpush.msra.mxu0 0.0
    %3086 = vmatpush.msra.mxu0 0.0
    %3087 = vmatpush.msra.mxu0 0.0
    %3088 = vmatpush.msra.mxu0 0.0
    %3089 = vmatpush.msra.mxu0 0.0
    %3090 = vmatpush.msra.mxu0 0.0
    %3091 = vmatpush.msra.mxu0 0.0
    %3092 = vmatpush.msra.mxu0 0.0
    %3093 = vmatpush.msra.mxu0 0.0
    %3094 = vmatpush.msra.mxu0 0.0
    %3095 = vmatpush.msra.mxu0 0.0
    %3096 = vmatpush.msra.mxu0 %v882
    %3097 = vmatpush.msra.mxu0 %v406
    %3098 = vmatpush.msra.mxu0 %v278
    %3099 = vmatpush.msra.mxu0 %v150
    %3100 = vmatmul.f32.gmra.mxu0 %v557
    %v3101 = vpop.f32.mrf.mxu0
    %v3102 = vadd.f32 0.0, %v3101
    %3103 = vdwg.mxu0
    %3104 = vmatpush.msra.mxu0 0.0
    %3105 = vmatpush.msra.mxu0 0.0
    %3106 = vmatpush.msra.mxu0 0.0
    %3107 = vmatpush.msra.mxu0 0.0
    %3108 = vmatpush.msra.mxu0 0.0
    %3109 = vmatpush.msra.mxu0 0.0
    %3110 = vmatpush.msra.mxu0 0.0
    %3111 = vmatpush.msra.mxu0 0.0
    %3112 = vmatpush.msra.mxu0 0.0
    %3113 = vmatpush.msra.mxu0 0.0
    %3114 = vmatpush.msra.mxu0 0.0
    %3115 = vmatpush.msra.mxu0 0.0
    %3116 = vmatpush.msra.mxu0 %v885
    %3117 = vmatpush.msra.mxu0 %v407
    %3118 = vmatpush.msra.mxu0 %v279
    %3119 = vmatpush.msra.mxu0 %v151
    %3120 = vmatmul.f32.gmra.mxu0 %v557
    %v3121 = vpop.f32.mrf.mxu0
    %v3122 = vadd.f32 0.0, %v3121
    %3123 = vdwg.mxu0
    %3124 = vmatpush.msra.mxu0 0.0
    %3125 = vmatpush.msra.mxu0 0.0
    %3126 = vmatpush.msra.mxu0 0.0
    %3127 = vmatpush.msra.mxu0 0.0
    %3128 = vmatpush.msra.mxu0 0.0
    %3129 = vmatpush.msra.mxu0 0.0
    %3130 = vmatpush.msra.mxu0 0.0
    %3131 = vmatpush.msra.mxu0 0.0
    %3132 = vmatpush.msra.mxu0 0.0
    %3133 = vmatpush.msra.mxu0 0.0
    %3134 = vmatpush.msra.mxu0 0.0
    %3135 = vmatpush.msra.mxu0 0.0
    %3136 = vmatpush.msra.mxu0 %v888
    %3137 = vmatpush.msra.mxu0 %v408
    %3138 = vmatpush.msra.mxu0 %v280
    %3139 = vmatpush.msra.mxu0 %v152
    %3140 = vmatmul.f32.gmra.mxu0 %v557
    %v3141 = vpop.f32.mrf.mxu0
    %v3142 = vadd.f32 0.0, %v3141
    %3143 = vdwg.mxu0
    %3144 = vmatpush.msra.mxu0 0.0
    %3145 = vmatpush.msra.mxu0 0.0
    %3146 = vmatpush.msra.mxu0 0.0
    %3147 = vmatpush.msra.mxu0 0.0
    %3148 = vmatpush.msra.mxu0 0.0
    %3149 = vmatpush.msra.mxu0 0.0
    %3150 = vmatpush.msra.mxu0 0.0
    %3151 = vmatpush.msra.mxu0 0.0
    %3152 = vmatpush.msra.mxu0 0.0
    %3153 = vmatpush.msra.mxu0 0.0
    %3154 = vmatpush.msra.mxu0 0.0
    %3155 = vmatpush.msra.mxu0 0.0
    %3156 = vmatpush.msra.mxu0 %v891
    %3157 = vmatpush.msra.mxu0 %v409
    %3158 = vmatpush.msra.mxu0 %v281
    %3159 = vmatpush.msra.mxu0 %v153
    %3160 = vmatmul.f32.gmra.mxu0 %v557
    %v3161 = vpop.f32.mrf.mxu0
    %v3162 = vadd.f32 0.0, %v3161
    %3163 = vdwg.mxu0
    %3164 = vmatpush.msra.mxu0 0.0
    %3165 = vmatpush.msra.mxu0 0.0
    %3166 = vmatpush.msra.mxu0 0.0
    %3167 = vmatpush.msra.mxu0 0.0
    %3168 = vmatpush.msra.mxu0 0.0
    %3169 = vmatpush.msra.mxu0 0.0
    %3170 = vmatpush.msra.mxu0 0.0
    %3171 = vmatpush.msra.mxu0 0.0
    %3172 = vmatpush.msra.mxu0 0.0
    %3173 = vmatpush.msra.mxu0 0.0
    %3174 = vmatpush.msra.mxu0 0.0
    %3175 = vmatpush.msra.mxu0 0.0
    %3176 = vmatpush.msra.mxu0 %v894
    %3177 = vmatpush.msra.mxu0 %v410
    %3178 = vmatpush.msra.mxu0 %v282
    %3179 = vmatpush.msra.mxu0 %v154
    %3180 = vmatmul.f32.gmra.mxu0 %v557
    %v3181 = vpop.f32.mrf.mxu0
    %v3182 = vadd.f32 0.0, %v3181
    %3183 = vdwg.mxu0
    %3184 = vmatpush.msra.mxu0 0.0
    %3185 = vmatpush.msra.mxu0 0.0
    %3186 = vmatpush.msra.mxu0 0.0
    %3187 = vmatpush.msra.mxu0 0.0
    %3188 = vmatpush.msra.mxu0 0.0
    %3189 = vmatpush.msra.mxu0 0.0
    %3190 = vmatpush.msra.mxu0 0.0
    %3191 = vmatpush.msra.mxu0 0.0
    %3192 = vmatpush.msra.mxu0 0.0
    %3193 = vmatpush.msra.mxu0 0.0
    %3194 = vmatpush.msra.mxu0 0.0
    %3195 = vmatpush.msra.mxu0 0.0
    %3196 = vmatpush.msra.mxu0 %v897
    %3197 = vmatpush.msra.mxu0 %v411
    %3198 = vmatpush.msra.mxu0 %v283
    %3199 = vmatpush.msra.mxu0 %v155
    %3200 = vmatmul.f32.gmra.mxu0 %v557
    %v3201 = vpop.f32.mrf.mxu0
    %v3202 = vadd.f32 0.0, %v3201
    %3203 = vdwg.mxu0
    %3204 = vmatpush.msra.mxu0 0.0
    %3205 = vmatpush.msra.mxu0 0.0
    %3206 = vmatpush.msra.mxu0 0.0
    %3207 = vmatpush.msra.mxu0 0.0
    %3208 = vmatpush.msra.mxu0 0.0
    %3209 = vmatpush.msra.mxu0 0.0
    %3210 = vmatpush.msra.mxu0 0.0
    %3211 = vmatpush.msra.mxu0 0.0
    %3212 = vmatpush.msra.mxu0 0.0
    %3213 = vmatpush.msra.mxu0 0.0
    %3214 = vmatpush.msra.mxu0 0.0
    %3215 = vmatpush.msra.mxu0 0.0
    %3216 = vmatpush.msra.mxu0 %v900
    %3217 = vmatpush.msra.mxu0 %v412
    %3218 = vmatpush.msra.mxu0 %v284
    %3219 = vmatpush.msra.mxu0 %v156
    %3220 = vmatmul.f32.gmra.mxu0 %v557
    %v3221 = vpop.f32.mrf.mxu0
    %v3222 = vadd.f32 0.0, %v3221
    %3223 = vdwg.mxu0
    %3224 = vmatpush.msra.mxu0 0.0
    %3225 = vmatpush.msra.mxu0 0.0
    %3226 = vmatpush.msra.mxu0 0.0
    %3227 = vmatpush.msra.mxu0 0.0
    %3228 = vmatpush.msra.mxu0 0.0
    %3229 = vmatpush.msra.mxu0 0.0
    %3230 = vmatpush.msra.mxu0 0.0
    %3231 = vmatpush.msra.mxu0 0.0
    %3232 = vmatpush.msra.mxu0 0.0
    %3233 = vmatpush.msra.mxu0 0.0
    %3234 = vmatpush.msra.mxu0 0.0
    %3235 = vmatpush.msra.mxu0 0.0
    %3236 = vmatpush.msra.mxu0 %v903
    %3237 = vmatpush.msra.mxu0 %v413
    %3238 = vmatpush.msra.mxu0 %v285
    %3239 = vmatpush.msra.mxu0 %v157
    %3240 = vmatmul.f32.gmra.mxu0 %v557
    %v3241 = vpop.f32.mrf.mxu0
    %v3242 = vadd.f32 0.0, %v3241
    %3243 = vdwg.mxu0
    %3244 = vmatpush.msra.mxu0 0.0
    %3245 = vmatpush.msra.mxu0 0.0
    %3246 = vmatpush.msra.mxu0 0.0
    %3247 = vmatpush.msra.mxu0 0.0
    %3248 = vmatpush.msra.mxu0 0.0
    %3249 = vmatpush.msra.mxu0 0.0
    %3250 = vmatpush.msra.mxu0 0.0
    %3251 = vmatpush.msra.mxu0 0.0
    %3252 = vmatpush.msra.mxu0 0.0
    %3253 = vmatpush.msra.mxu0 0.0
    %3254 = vmatpush.msra.mxu0 0.0
    %3255 = vmatpush.msra.mxu0 0.0
    %3256 = vmatpush.msra.mxu0 %v906
    %3257 = vmatpush.msra.mxu0 %v414
    %3258 = vmatpush.msra.mxu0 %v286
    %3259 = vmatpush.msra.mxu0 %v158
    %3260 = vmatmul.f32.gmra.mxu0 %v557
    %v3261 = vpop.f32.mrf.mxu0
    %v3262 = vadd.f32 0.0, %v3261
    %3263 = vdwg.mxu0
    %3264 = vmatpush.msra.mxu0 0.0
    %3265 = vmatpush.msra.mxu0 0.0
    %3266 = vmatpush.msra.mxu0 0.0
    %3267 = vmatpush.msra.mxu0 0.0
    %3268 = vmatpush.msra.mxu0 0.0
    %3269 = vmatpush.msra.mxu0 0.0
    %3270 = vmatpush.msra.mxu0 0.0
    %3271 = vmatpush.msra.mxu0 0.0
    %3272 = vmatpush.msra.mxu0 0.0
    %3273 = vmatpush.msra.mxu0 0.0
    %3274 = vmatpush.msra.mxu0 0.0
    %3275 = vmatpush.msra.mxu0 0.0
    %3276 = vmatpush.msra.mxu0 %v909
    %3277 = vmatpush.msra.mxu0 %v415
    %3278 = vmatpush.msra.mxu0 %v287
    %3279 = vmatpush.msra.mxu0 %v159
    %3280 = vmatmul.f32.gmra.mxu0 %v557
    %v3281 = vpop.f32.mrf.mxu0
    %v3282 = vadd.f32 0.0, %v3281
    %3283 = vdwg.mxu0
    %3284 = vmatpush.msra.mxu0 0.0
    %3285 = vmatpush.msra.mxu0 0.0
    %3286 = vmatpush.msra.mxu0 0.0
    %3287 = vmatpush.msra.mxu0 0.0
    %3288 = vmatpush.msra.mxu0 0.0
    %3289 = vmatpush.msra.mxu0 0.0
    %3290 = vmatpush.msra.mxu0 0.0
    %3291 = vmatpush.msra.mxu0 0.0
    %3292 = vmatpush.msra.mxu0 0.0
    %3293 = vmatpush.msra.mxu0 0.0
    %3294 = vmatpush.msra.mxu0 0.0
    %3295 = vmatpush.msra.mxu0 0.0
    %3296 = vmatpush.msra.mxu0 %v912
    %3297 = vmatpush.msra.mxu0 %v416
    %3298 = vmatpush.msra.mxu0 %v288
    %3299 = vmatpush.msra.mxu0 %v160
    %3300 = vmatmul.f32.gmra.mxu0 %v557
    %v3301 = vpop.f32.mrf.mxu0
    %v3302 = vadd.f32 0.0, %v3301
    %3303 = vdwg.mxu0
    %3304 = vmatpush.msra.mxu0 0.0
    %3305 = vmatpush.msra.mxu0 0.0
    %3306 = vmatpush.msra.mxu0 0.0
    %3307 = vmatpush.msra.mxu0 0.0
    %3308 = vmatpush.msra.mxu0 0.0
    %3309 = vmatpush.msra.mxu0 0.0
    %3310 = vmatpush.msra.mxu0 0.0
    %3311 = vmatpush.msra.mxu0 0.0
    %3312 = vmatpush.msra.mxu0 0.0
    %3313 = vmatpush.msra.mxu0 0.0
    %3314 = vmatpush.msra.mxu0 0.0
    %3315 = vmatpush.msra.mxu0 0.0
    %3316 = vmatpush.msra.mxu0 %v915
    %3317 = vmatpush.msra.mxu0 %v417
    %3318 = vmatpush.msra.mxu0 %v289
    %3319 = vmatpush.msra.mxu0 %v161
    %3320 = vmatmul.f32.gmra.mxu0 %v557
    %v3321 = vpop.f32.mrf.mxu0
    %v3322 = vadd.f32 0.0, %v3321
    %3323 = vdwg.mxu0
    %3324 = vmatpush.msra.mxu0 0.0
    %3325 = vmatpush.msra.mxu0 0.0
    %3326 = vmatpush.msra.mxu0 0.0
    %3327 = vmatpush.msra.mxu0 0.0
    %3328 = vmatpush.msra.mxu0 0.0
    %3329 = vmatpush.msra.mxu0 0.0
    %3330 = vmatpush.msra.mxu0 0.0
    %3331 = vmatpush.msra.mxu0 0.0
    %3332 = vmatpush.msra.mxu0 0.0
    %3333 = vmatpush.msra.mxu0 0.0
    %3334 = vmatpush.msra.mxu0 0.0
    %3335 = vmatpush.msra.mxu0 0.0
    %3336 = vmatpush.msra.mxu0 %v918
    %3337 = vmatpush.msra.mxu0 %v418
    %3338 = vmatpush.msra.mxu0 %v290
    %3339 = vmatpush.msra.mxu0 %v162
    %3340 = vmatmul.f32.gmra.mxu0 %v557
    %v3341 = vpop.f32.mrf.mxu0
    %v3342 = vadd.f32 0.0, %v3341
    %3343 = vdwg.mxu0
    %3344 = vmatpush.msra.mxu0 0.0
    %3345 = vmatpush.msra.mxu0 0.0
    %3346 = vmatpush.msra.mxu0 0.0
    %3347 = vmatpush.msra.mxu0 0.0
    %3348 = vmatpush.msra.mxu0 0.0
    %3349 = vmatpush.msra.mxu0 0.0
    %3350 = vmatpush.msra.mxu0 0.0
    %3351 = vmatpush.msra.mxu0 0.0
    %3352 = vmatpush.msra.mxu0 0.0
    %3353 = vmatpush.msra.mxu0 0.0
    %3354 = vmatpush.msra.mxu0 0.0
    %3355 = vmatpush.msra.mxu0 0.0
    %3356 = vmatpush.msra.mxu0 %v921
    %3357 = vmatpush.msra.mxu0 %v419
    %3358 = vmatpush.msra.mxu0 %v291
    %3359 = vmatpush.msra.mxu0 %v163
    %3360 = vmatmul.f32.gmra.mxu0 %v557
    %v3361 = vpop.f32.mrf.mxu0
    %v3362 = vadd.f32 0.0, %v3361
    %3363 = vdwg.mxu0
    %3364 = vmatpush.msra.mxu0 0.0
    %3365 = vmatpush.msra.mxu0 0.0
    %3366 = vmatpush.msra.mxu0 0.0
    %3367 = vmatpush.msra.mxu0 0.0
    %3368 = vmatpush.msra.mxu0 0.0
    %3369 = vmatpush.msra.mxu0 0.0
    %3370 = vmatpush.msra.mxu0 0.0
    %3371 = vmatpush.msra.mxu0 0.0
    %3372 = vmatpush.msra.mxu0 0.0
    %3373 = vmatpush.msra.mxu0 0.0
    %3374 = vmatpush.msra.mxu0 0.0
    %3375 = vmatpush.msra.mxu0 0.0
    %3376 = vmatpush.msra.mxu0 %v924
    %3377 = vmatpush.msra.mxu0 %v420
    %3378 = vmatpush.msra.mxu0 %v292
    %3379 = vmatpush.msra.mxu0 %v164
    %3380 = vmatmul.f32.gmra.mxu0 %v557
    %v3381 = vpop.f32.mrf.mxu0
    %v3382 = vadd.f32 0.0, %v3381
    %3383 = vdwg.mxu0
    %3384 = vmatpush.msra.mxu0 0.0
    %3385 = vmatpush.msra.mxu0 0.0
    %3386 = vmatpush.msra.mxu0 0.0
    %3387 = vmatpush.msra.mxu0 0.0
    %3388 = vmatpush.msra.mxu0 0.0
    %3389 = vmatpush.msra.mxu0 0.0
    %3390 = vmatpush.msra.mxu0 0.0
    %3391 = vmatpush.msra.mxu0 0.0
    %3392 = vmatpush.msra.mxu0 0.0
    %3393 = vmatpush.msra.mxu0 0.0
    %3394 = vmatpush.msra.mxu0 0.0
    %3395 = vmatpush.msra.mxu0 0.0
    %3396 = vmatpush.msra.mxu0 %v927
    %3397 = vmatpush.msra.mxu0 %v421
    %3398 = vmatpush.msra.mxu0 %v293
    %3399 = vmatpush.msra.mxu0 %v165
    %3400 = vmatmul.f32.gmra.mxu0 %v557
    %v3401 = vpop.f32.mrf.mxu0
    %v3402 = vadd.f32 0.0, %v3401
    %3403 = vdwg.mxu0
    %3404 = vmatpush.msra.mxu0 0.0
    %3405 = vmatpush.msra.mxu0 0.0
    %3406 = vmatpush.msra.mxu0 0.0
    %3407 = vmatpush.msra.mxu0 0.0
    %3408 = vmatpush.msra.mxu0 0.0
    %3409 = vmatpush.msra.mxu0 0.0
    %3410 = vmatpush.msra.mxu0 0.0
    %3411 = vmatpush.msra.mxu0 0.0
    %3412 = vmatpush.msra.mxu0 0.0
    %3413 = vmatpush.msra.mxu0 0.0
    %3414 = vmatpush.msra.mxu0 0.0
    %3415 = vmatpush.msra.mxu0 0.0
    %3416 = vmatpush.msra.mxu0 %v930
    %3417 = vmatpush.msra.mxu0 %v422
    %3418 = vmatpush.msra.mxu0 %v294
    %3419 = vmatpush.msra.mxu0 %v166
    %3420 = vmatmul.f32.gmra.mxu0 %v557
    %v3421 = vpop.f32.mrf.mxu0
    %v3422 = vadd.f32 0.0, %v3421
    %3423 = vdwg.mxu0
    %3424 = vmatpush.msra.mxu0 0.0
    %3425 = vmatpush.msra.mxu0 0.0
    %3426 = vmatpush.msra.mxu0 0.0
    %3427 = vmatpush.msra.mxu0 0.0
    %3428 = vmatpush.msra.mxu0 0.0
    %3429 = vmatpush.msra.mxu0 0.0
    %3430 = vmatpush.msra.mxu0 0.0
    %3431 = vmatpush.msra.mxu0 0.0
    %3432 = vmatpush.msra.mxu0 0.0
    %3433 = vmatpush.msra.mxu0 0.0
    %3434 = vmatpush.msra.mxu0 0.0
    %3435 = vmatpush.msra.mxu0 0.0
    %3436 = vmatpush.msra.mxu0 %v933
    %3437 = vmatpush.msra.mxu0 %v423
    %3438 = vmatpush.msra.mxu0 %v295
    %3439 = vmatpush.msra.mxu0 %v167
    %3440 = vmatmul.f32.gmra.mxu0 %v557
    %v3441 = vpop.f32.mrf.mxu0
    %v3442 = vadd.f32 0.0, %v3441
    %3443 = vdwg.mxu0
    %3444 = vmatpush.msra.mxu0 0.0
    %3445 = vmatpush.msra.mxu0 0.0
    %3446 = vmatpush.msra.mxu0 0.0
    %3447 = vmatpush.msra.mxu0 0.0
    %3448 = vmatpush.msra.mxu0 0.0
    %3449 = vmatpush.msra.mxu0 0.0
    %3450 = vmatpush.msra.mxu0 0.0
    %3451 = vmatpush.msra.mxu0 0.0
    %3452 = vmatpush.msra.mxu0 0.0
    %3453 = vmatpush.msra.mxu0 0.0
    %3454 = vmatpush.msra.mxu0 0.0
    %3455 = vmatpush.msra.mxu0 0.0
    %3456 = vmatpush.msra.mxu0 %v936
    %3457 = vmatpush.msra.mxu0 %v424
    %3458 = vmatpush.msra.mxu0 %v296
    %3459 = vmatpush.msra.mxu0 %v168
    %3460 = vmatmul.f32.gmra.mxu0 %v557
    %v3461 = vpop.f32.mrf.mxu0
    %v3462 = vadd.f32 0.0, %v3461
    %3463 = vdwg.mxu0
    %3464 = vmatpush.msra.mxu0 0.0
    %3465 = vmatpush.msra.mxu0 0.0
    %3466 = vmatpush.msra.mxu0 0.0
    %3467 = vmatpush.msra.mxu0 0.0
    %3468 = vmatpush.msra.mxu0 0.0
    %3469 = vmatpush.msra.mxu0 0.0
    %3470 = vmatpush.msra.mxu0 0.0
    %3471 = vmatpush.msra.mxu0 0.0
    %3472 = vmatpush.msra.mxu0 0.0
    %3473 = vmatpush.msra.mxu0 0.0
    %3474 = vmatpush.msra.mxu0 0.0
    %3475 = vmatpush.msra.mxu0 0.0
    %3476 = vmatpush.msra.mxu0 %v939
    %3477 = vmatpush.msra.mxu0 %v425
    %3478 = vmatpush.msra.mxu0 %v297
    %3479 = vmatpush.msra.mxu0 %v169
    %3480 = vmatmul.f32.gmra.mxu0 %v557
    %v3481 = vpop.f32.mrf.mxu0
    %v3482 = vadd.f32 0.0, %v3481
    %3483 = vdwg.mxu0
    %3484 = vmatpush.msra.mxu0 0.0
    %3485 = vmatpush.msra.mxu0 0.0
    %3486 = vmatpush.msra.mxu0 0.0
    %3487 = vmatpush.msra.mxu0 0.0
    %3488 = vmatpush.msra.mxu0 0.0
    %3489 = vmatpush.msra.mxu0 0.0
    %3490 = vmatpush.msra.mxu0 0.0
    %3491 = vmatpush.msra.mxu0 0.0
    %3492 = vmatpush.msra.mxu0 0.0
    %3493 = vmatpush.msra.mxu0 0.0
    %3494 = vmatpush.msra.mxu0 0.0
    %3495 = vmatpush.msra.mxu0 0.0
    %3496 = vmatpush.msra.mxu0 %v942
    %3497 = vmatpush.msra.mxu0 %v426
    %3498 = vmatpush.msra.mxu0 %v298
    %3499 = vmatpush.msra.mxu0 %v170
    %3500 = vmatmul.f32.gmra.mxu0 %v557
    %v3501 = vpop.f32.mrf.mxu0
    %v3502 = vadd.f32 0.0, %v3501
    %3503 = vdwg.mxu0
    %v3504 = vpack.c.bf16 %v982, %v962
    %v3505 = vpack.c.bf16 %v1022, %v1002
    %v3506 = vpack.c.bf16 %v1062, %v1042
    %v3507 = vpack.c.bf16 %v1102, %v1082
    %v3508 = vpack.c.bf16 %v1142, %v1122
    %v3509 = vpack.c.bf16 %v1182, %v1162
    %v3510 = vpack.c.bf16 %v1222, %v1202
    %v3511 = vpack.c.bf16 %v1262, %v1242
    %v3512 = vpack.c.bf16 %v1302, %v1282
    %v3513 = vpack.c.bf16 %v1342, %v1322
    %v3514 = vpack.c.bf16 %v1382, %v1362
    %v3515 = vpack.c.bf16 %v1422, %v1402
    %v3516 = vpack.c.bf16 %v1462, %v1442
    %v3517 = vpack.c.bf16 %v1502, %v1482
    %v3518 = vpack.c.bf16 %v1542, %v1522
    %v3519 = vpack.c.bf16 %v1582, %v1562
    %v3520 = vpack.c.bf16 %v1622, %v1602
    %v3521 = vpack.c.bf16 %v1662, %v1642
    %v3522 = vpack.c.bf16 %v1702, %v1682
    %v3523 = vpack.c.bf16 %v1742, %v1722
    %v3524 = vpack.c.bf16 %v1782, %v1762
    %v3525 = vpack.c.bf16 %v1822, %v1802
    %v3526 = vpack.c.bf16 %v1862, %v1842
    %v3527 = vpack.c.bf16 %v1902, %v1882
    %v3528 = vpack.c.bf16 %v1942, %v1922
    %v3529 = vpack.c.bf16 %v1982, %v1962
    %v3530 = vpack.c.bf16 %v2022, %v2002
    %v3531 = vpack.c.bf16 %v2062, %v2042
    %v3532 = vpack.c.bf16 %v2102, %v2082
    %v3533 = vpack.c.bf16 %v2142, %v2122
    %v3534 = vpack.c.bf16 %v2182, %v2162
    %v3535 = vpack.c.bf16 %v2222, %v2202
    %v3536 = vpack.c.bf16 %v2262, %v2242
    %v3537 = vpack.c.bf16 %v2302, %v2282
    %v3538 = vpack.c.bf16 %v2342, %v2322
    %v3539 = vpack.c.bf16 %v2382, %v2362
    %v3540 = vpack.c.bf16 %v2422, %v2402
    %v3541 = vpack.c.bf16 %v2462, %v2442
    %v3542 = vpack.c.bf16 %v2502, %v2482
    %v3543 = vpack.c.bf16 %v2542, %v2522
    %v3544 = vpack.c.bf16 %v2582, %v2562
    %v3545 = vpack.c.bf16 %v2622, %v2602
    %v3546 = vpack.c.bf16 %v2662, %v2642
    %v3547 = vpack.c.bf16 %v2702, %v2682
    %v3548 = vpack.c.bf16 %v2742, %v2722
    %v3549 = vpack.c.bf16 %v2782, %v2762
    %v3550 = vpack.c.bf16 %v2822, %v2802
    %v3551 = vpack.c.bf16 %v2862, %v2842
    %v3552 = vpack.c.bf16 %v2902, %v2882
    %v3553 = vpack.c.bf16 %v2942, %v2922
    %v3554 = vpack.c.bf16 %v2982, %v2962
    %v3555 = vpack.c.bf16 %v3022, %v3002
    %v3556 = vpack.c.bf16 %v3062, %v3042
    %v3557 = vpack.c.bf16 %v3102, %v3082
    %v3558 = vpack.c.bf16 %v3142, %v3122
    %v3559 = vpack.c.bf16 %v3182, %v3162
    %v3560 = vpack.c.bf16 %v3222, %v3202
    %v3561 = vpack.c.bf16 %v3262, %v3242
    %v3562 = vpack.c.bf16 %v3302, %v3282
    %v3563 = vpack.c.bf16 %v3342, %v3322
    %v3564 = vpack.c.bf16 %v3382, %v3362
    %v3565 = vpack.c.bf16 %v3422, %v3402
    %v3566 = vpack.c.bf16 %v3462, %v3442
    %v3567 = vpack.c.bf16 %v3502, %v3482
    %v3632 = vrot.slane %v3504, 2
    %v3633 = vrot.slane %v3505, 4
    %v3634 = vrot.slane %v3505, 6
    %v3635 = vrot.slane %v3506, 2
    %v3636 = vrot.slane %v3507, 4
    %v3637 = vrot.slane %v3507, 6
    %v3638 = vrot.slane %v3508, 2
    %v3639 = vrot.slane %v3509, 4
    %v3640 = vrot.slane %v3509, 6
    %v3641 = vrot.slane %v3510, 2
    %v3642 = vrot.slane %v3511, 4
    %v3643 = vrot.slane %v3511, 6
    %v3644 = vrot.slane %v3512, 2
    %v3645 = vrot.slane %v3513, 4
    %v3646 = vrot.slane %v3513, 6
    %v3647 = vrot.slane %v3514, 2
    %v3648 = vrot.slane %v3515, 4
    %v3649 = vrot.slane %v3515, 6
    %v3650 = vrot.slane %v3516, 2
    %v3651 = vrot.slane %v3517, 4
    %v3652 = vrot.slane %v3517, 6
    %v3653 = vrot.slane %v3518, 2
    %v3654 = vrot.slane %v3519, 4
    %v3655 = vrot.slane %v3519, 6
    %v3656 = vrot.slane %v3520, 2
    %v3657 = vrot.slane %v3521, 4
    %v3658 = vrot.slane %v3521, 6
    %v3659 = vrot.slane %v3522, 2
    %v3660 = vrot.slane %v3523, 4
    %v3661 = vrot.slane %v3523, 6
    %v3662 = vrot.slane %v3524, 2
    %v3663 = vrot.slane %v3525, 4
    %v3664 = vrot.slane %v3525, 6
    %v3665 = vrot.slane %v3526, 2
    %v3666 = vrot.slane %v3527, 4
    %v3667 = vrot.slane %v3527, 6
    %v3668 = vrot.slane %v3528, 2
    %v3669 = vrot.slane %v3529, 4
    %v3670 = vrot.slane %v3529, 6
    %v3671 = vrot.slane %v3530, 2
    %v3672 = vrot.slane %v3531, 4
    %v3673 = vrot.slane %v3531, 6
    %v3674 = vrot.slane %v3532, 2
    %v3675 = vrot.slane %v3533, 4
    %v3676 = vrot.slane %v3533, 6
    %v3677 = vrot.slane %v3534, 2
    %v3678 = vrot.slane %v3535, 4
    %v3679 = vrot.slane %v3535, 6
    %v3680 = vrot.slane %v3536, 2
    %v3681 = vrot.slane %v3537, 4
    %v3682 = vrot.slane %v3537, 6
    %v3683 = vrot.slane %v3538, 2
    %v3684 = vrot.slane %v3539, 4
    %v3685 = vrot.slane %v3539, 6
    %v3686 = vrot.slane %v3540, 2
    %v3687 = vrot.slane %v3541, 4
    %v3688 = vrot.slane %v3541, 6
    %v3689 = vrot.slane %v3542, 2
    %v3690 = vrot.slane %v3543, 4
    %v3691 = vrot.slane %v3543, 6
    %v3692 = vrot.slane %v3544, 2
    %v3693 = vrot.slane %v3545, 4
    %v3694 = vrot.slane %v3545, 6
    %v3695 = vrot.slane %v3546, 2
    %v3696 = vrot.slane %v3547, 4
    %v3697 = vrot.slane %v3547, 6
    %v3698 = vrot.slane %v3548, 2
    %v3699 = vrot.slane %v3549, 4
    %v3700 = vrot.slane %v3549, 6
    %v3701 = vrot.slane %v3550, 2
    %v3702 = vrot.slane %v3551, 4
    %v3703 = vrot.slane %v3551, 6
    %v3704 = vrot.slane %v3552, 2
    %v3705 = vrot.slane %v3553, 4
    %v3706 = vrot.slane %v3553, 6
    %v3707 = vrot.slane %v3554, 2
    %v3708 = vrot.slane %v3555, 4
    %v3709 = vrot.slane %v3555, 6
    %v3710 = vrot.slane %v3556, 2
    %v3711 = vrot.slane %v3557, 4
    %v3712 = vrot.slane %v3557, 6
    %v3713 = vrot.slane %v3558, 2
    %v3714 = vrot.slane %v3559, 4
    %v3715 = vrot.slane %v3559, 6
    %v3716 = vrot.slane %v3560, 2
    %v3717 = vrot.slane %v3561, 4
    %v3718 = vrot.slane %v3561, 6
    %v3719 = vrot.slane %v3562, 2
    %v3720 = vrot.slane %v3563, 4
    %v3721 = vrot.slane %v3563, 6
    %v3722 = vrot.slane %v3564, 2
    %v3723 = vrot.slane %v3565, 4
    %v3724 = vrot.slane %v3565, 6
    %v3725 = vrot.slane %v3566, 2
    %v3726 = vrot.slane %v3567, 4
    %v3727 = vrot.slane %v3567, 6
    %vm3728 = vcmask 1041408
    %v3731 = vsel %vm3728, %v3504, %v3632
    %vm3732 = vcmask 1045508
    %v3735 = vsel %vm3732, %v3633, %v3634
    %vm3736 = vcmask 1043456
    %v3737 = vsel %vm3736, %v3731, %v3735
    %v3740 = vsel %vm3728, %v3506, %v3635
    %v3743 = vsel %vm3732, %v3636, %v3637
    %v3744 = vsel %vm3736, %v3740, %v3743
    %v3747 = vsel %vm3728, %v3508, %v3638
    %v3750 = vsel %vm3732, %v3639, %v3640
    %v3751 = vsel %vm3736, %v3747, %v3750
    %v3754 = vsel %vm3728, %v3510, %v3641
    %v3757 = vsel %vm3732, %v3642, %v3643
    %v3758 = vsel %vm3736, %v3754, %v3757
    %v3761 = vsel %vm3728, %v3512, %v3644
    %v3764 = vsel %vm3732, %v3645, %v3646
    %v3765 = vsel %vm3736, %v3761, %v3764
    %v3768 = vsel %vm3728, %v3514, %v3647
    %v3771 = vsel %vm3732, %v3648, %v3649
    %v3772 = vsel %vm3736, %v3768, %v3771
    %v3775 = vsel %vm3728, %v3516, %v3650
    %v3778 = vsel %vm3732, %v3651, %v3652
    %v3779 = vsel %vm3736, %v3775, %v3778
    %v3782 = vsel %vm3728, %v3518, %v3653
    %v3785 = vsel %vm3732, %v3654, %v3655
    %v3786 = vsel %vm3736, %v3782, %v3785
    %v3789 = vsel %vm3728, %v3520, %v3656
    %v3792 = vsel %vm3732, %v3657, %v3658
    %v3793 = vsel %vm3736, %v3789, %v3792
    %v3796 = vsel %vm3728, %v3522, %v3659
    %v3799 = vsel %vm3732, %v3660, %v3661
    %v3800 = vsel %vm3736, %v3796, %v3799
    %v3803 = vsel %vm3728, %v3524, %v3662
    %v3806 = vsel %vm3732, %v3663, %v3664
    %v3807 = vsel %vm3736, %v3803, %v3806
    %v3810 = vsel %vm3728, %v3526, %v3665
    %v3813 = vsel %vm3732, %v3666, %v3667
    %v3814 = vsel %vm3736, %v3810, %v3813
    %v3817 = vsel %vm3728, %v3528, %v3668
    %v3820 = vsel %vm3732, %v3669, %v3670
    %v3821 = vsel %vm3736, %v3817, %v3820
    %v3824 = vsel %vm3728, %v3530, %v3671
    %v3827 = vsel %vm3732, %v3672, %v3673
    %v3828 = vsel %vm3736, %v3824, %v3827
    %v3831 = vsel %vm3728, %v3532, %v3674
    %v3834 = vsel %vm3732, %v3675, %v3676
    %v3835 = vsel %vm3736, %v3831, %v3834
    %v3838 = vsel %vm3728, %v3534, %v3677
    %v3841 = vsel %vm3732, %v3678, %v3679
    %v3842 = vsel %vm3736, %v3838, %v3841
    %v3845 = vsel %vm3728, %v3536, %v3680
    %v3848 = vsel %vm3732, %v3681, %v3682
    %v3849 = vsel %vm3736, %v3845, %v3848
    %v3852 = vsel %vm3728, %v3538, %v3683
    %v3855 = vsel %vm3732, %v3684, %v3685
    %v3856 = vsel %vm3736, %v3852, %v3855
    %v3859 = vsel %vm3728, %v3540, %v3686
    %v3862 = vsel %vm3732, %v3687, %v3688
    %v3863 = vsel %vm3736, %v3859, %v3862
    %v3866 = vsel %vm3728, %v3542, %v3689
    %v3869 = vsel %vm3732, %v3690, %v3691
    %v3870 = vsel %vm3736, %v3866, %v3869
    %v3873 = vsel %vm3728, %v3544, %v3692
    %v3876 = vsel %vm3732, %v3693, %v3694
    %v3877 = vsel %vm3736, %v3873, %v3876
    %v3880 = vsel %vm3728, %v3546, %v3695
    %v3883 = vsel %vm3732, %v3696, %v3697
    %v3884 = vsel %vm3736, %v3880, %v3883
    %v3887 = vsel %vm3728, %v3548, %v3698
    %v3890 = vsel %vm3732, %v3699, %v3700
    %v3891 = vsel %vm3736, %v3887, %v3890
    %v3894 = vsel %vm3728, %v3550, %v3701
    %v3897 = vsel %vm3732, %v3702, %v3703
    %v3898 = vsel %vm3736, %v3894, %v3897
    %v3901 = vsel %vm3728, %v3552, %v3704
    %v3904 = vsel %vm3732, %v3705, %v3706
    %v3905 = vsel %vm3736, %v3901, %v3904
    %v3908 = vsel %vm3728, %v3554, %v3707
    %v3911 = vsel %vm3732, %v3708, %v3709
    %v3912 = vsel %vm3736, %v3908, %v3911
    %v3915 = vsel %vm3728, %v3556, %v3710
    %v3918 = vsel %vm3732, %v3711, %v3712
    %v3919 = vsel %vm3736, %v3915, %v3918
    %v3922 = vsel %vm3728, %v3558, %v3713
    %v3925 = vsel %vm3732, %v3714, %v3715
    %v3926 = vsel %vm3736, %v3922, %v3925
    %v3929 = vsel %vm3728, %v3560, %v3716
    %v3932 = vsel %vm3732, %v3717, %v3718
    %v3933 = vsel %vm3736, %v3929, %v3932
    %v3936 = vsel %vm3728, %v3562, %v3719
    %v3939 = vsel %vm3732, %v3720, %v3721
    %v3940 = vsel %vm3736, %v3936, %v3939
    %v3943 = vsel %vm3728, %v3564, %v3722
    %v3946 = vsel %vm3732, %v3723, %v3724
    %v3947 = vsel %vm3736, %v3943, %v3946
    %v3950 = vsel %vm3728, %v3566, %v3725
    %v3953 = vsel %vm3732, %v3726, %v3727
    %v3954 = vsel %vm3736, %v3950, %v3953
    %vm3987 = vcmask 1041408
    %vm3988 = vsmask.f32 1280
    %vm3989 = vmand %vm3987, %vm3988
    %vm3990 = vcmask 1043458
    %vm3991 = vsmask.f32 3328
    %vm3992 = vmand %vm3990, %vm3991
    %vm3993 = vmor %vm3992, %vm3989
    %vm3994 = vcmask 1045508
    %vm3995 = vsmask.f32 5376
    %vm3996 = vmand %vm3994, %vm3995
    %vm3997 = vmor %vm3996, %vm3993
    %vm3998 = vcmask 1047558
    %vm3999 = vsmask.f32 7424
    %vm4000 = vmand %vm3998, %vm3999
    %vm4001 = vmor %vm4000, %vm3997
    %v4002 = vld [vmem:[#allocation7] sm:$0xff]
    %v4003 = vsel %vm4001, %v3737, %v4002
    %4004 = vst [vmem:[#allocation7] sm:$0xff] %v4003
    %v4005 = vld [vmem:[#allocation7 + $0x8] sm:$0xff]
    %v4006 = vsel %vm4001, %v3744, %v4005
    %4007 = vst [vmem:[#allocation7 + $0x8] sm:$0xff] %v4006
    %v4008 = vld [vmem:[#allocation7 + $0x10] sm:$0xff]
    %v4009 = vsel %vm4001, %v3751, %v4008
    %4010 = vst [vmem:[#allocation7 + $0x10] sm:$0xff] %v4009
    %v4011 = vld [vmem:[#allocation7 + $0x18] sm:$0xff]
    %v4012 = vsel %vm4001, %v3758, %v4011
    %4013 = vst [vmem:[#allocation7 + $0x18] sm:$0xff] %v4012
    %v4014 = vld [vmem:[#allocation7 + $0x20] sm:$0xff]
    %v4015 = vsel %vm4001, %v3765, %v4014
    %4016 = vst [vmem:[#allocation7 + $0x20] sm:$0xff] %v4015
    %v4017 = vld [vmem:[#allocation7 + $0x28] sm:$0xff]
    %v4018 = vsel %vm4001, %v3772, %v4017
    %4019 = vst [vmem:[#allocation7 + $0x28] sm:$0xff] %v4018
    %v4020 = vld [vmem:[#allocation7 + $0x30] sm:$0xff]
    %v4021 = vsel %vm4001, %v3779, %v4020
    %4022 = vst [vmem:[#allocation7 + $0x30] sm:$0xff] %v4021
    %v4023 = vld [vmem:[#allocation7 + $0x38] sm:$0xff]
    %v4024 = vsel %vm4001, %v3786, %v4023
    %4025 = vst [vmem:[#allocation7 + $0x38] sm:$0xff] %v4024
    %v4026 = vld [vmem:[#allocation7 + $0x40] sm:$0xff]
    %v4027 = vsel %vm4001, %v3793, %v4026
    %4028 = vst [vmem:[#allocation7 + $0x40] sm:$0xff] %v4027
    %v4029 = vld [vmem:[#allocation7 + $0x48] sm:$0xff]
    %v4030 = vsel %vm4001, %v3800, %v4029
    %4031 = vst [vmem:[#allocation7 + $0x48] sm:$0xff] %v4030
    %v4032 = vld [vmem:[#allocation7 + $0x50] sm:$0xff]
    %v4033 = vsel %vm4001, %v3807, %v4032
    %4034 = vst [vmem:[#allocation7 + $0x50] sm:$0xff] %v4033
    %v4035 = vld [vmem:[#allocation7 + $0x58] sm:$0xff]
    %v4036 = vsel %vm4001, %v3814, %v4035
    %4037 = vst [vmem:[#allocation7 + $0x58] sm:$0xff] %v4036
    %v4038 = vld [vmem:[#allocation7 + $0x60] sm:$0xff]
    %v4039 = vsel %vm4001, %v3821, %v4038
    %4040 = vst [vmem:[#allocation7 + $0x60] sm:$0xff] %v4039
    %v4041 = vld [vmem:[#allocation7 + $0x68] sm:$0xff]
    %v4042 = vsel %vm4001, %v3828, %v4041
    %4043 = vst [vmem:[#allocation7 + $0x68] sm:$0xff] %v4042
    %v4044 = vld [vmem:[#allocation7 + $0x70] sm:$0xff]
    %v4045 = vsel %vm4001, %v3835, %v4044
    %4046 = vst [vmem:[#allocation7 + $0x70] sm:$0xff] %v4045
    %v4047 = vld [vmem:[#allocation7 + $0x78] sm:$0xff]
    %v4048 = vsel %vm4001, %v3842, %v4047
    %4049 = vst [vmem:[#allocation7 + $0x78] sm:$0xff] %v4048
    %v4050 = vld [vmem:[#allocation7 + $0x80] sm:$0xff]
    %v4051 = vsel %vm4001, %v3849, %v4050
    %4052 = vst [vmem:[#allocation7 + $0x80] sm:$0xff] %v4051
    %v4053 = vld [vmem:[#allocation7 + $0x88] sm:$0xff]
    %v4054 = vsel %vm4001, %v3856, %v4053
    %4055 = vst [vmem:[#allocation7 + $0x88] sm:$0xff] %v4054
    %v4056 = vld [vmem:[#allocation7 + $0x90] sm:$0xff]
    %v4057 = vsel %vm4001, %v3863, %v4056
    %4058 = vst [vmem:[#allocation7 + $0x90] sm:$0xff] %v4057
    %v4059 = vld [vmem:[#allocation7 + $0x98] sm:$0xff]
    %v4060 = vsel %vm4001, %v3870, %v4059
    %4061 = vst [vmem:[#allocation7 + $0x98] sm:$0xff] %v4060
    %v4062 = vld [vmem:[#allocation7 + $0xa0] sm:$0xff]
    %v4063 = vsel %vm4001, %v3877, %v4062
    %4064 = vst [vmem:[#allocation7 + $0xa0] sm:$0xff] %v4063
    %v4065 = vld [vmem:[#allocation7 + $0xa8] sm:$0xff]
    %v4066 = vsel %vm4001, %v3884, %v4065
    %4067 = vst [vmem:[#allocation7 + $0xa8] sm:$0xff] %v4066
    %v4068 = vld [vmem:[#allocation7 + $0xb0] sm:$0xff]
    %v4069 = vsel %vm4001, %v3891, %v4068
    %4070 = vst [vmem:[#allocation7 + $0xb0] sm:$0xff] %v4069
    %v4071 = vld [vmem:[#allocation7 + $0xb8] sm:$0xff]
    %v4072 = vsel %vm4001, %v3898, %v4071
    %4073 = vst [vmem:[#allocation7 + $0xb8] sm:$0xff] %v4072
    %v4074 = vld [vmem:[#allocation7 + $0xc0] sm:$0xff]
    %v4075 = vsel %vm4001, %v3905, %v4074
    %4076 = vst [vmem:[#allocation7 + $0xc0] sm:$0xff] %v4075
    %v4077 = vld [vmem:[#allocation7 + $0xc8] sm:$0xff]
    %v4078 = vsel %vm4001, %v3912, %v4077
    %4079 = vst [vmem:[#allocation7 + $0xc8] sm:$0xff] %v4078
    %v4080 = vld [vmem:[#allocation7 + $0xd0] sm:$0xff]
    %v4081 = vsel %vm4001, %v3919, %v4080
    %4082 = vst [vmem:[#allocation7 + $0xd0] sm:$0xff] %v4081
    %v4083 = vld [vmem:[#allocation7 + $0xd8] sm:$0xff]
    %v4084 = vsel %vm4001, %v3926, %v4083
    %4085 = vst [vmem:[#allocation7 + $0xd8] sm:$0xff] %v4084
    %v4086 = vld [vmem:[#allocation7 + $0xe0] sm:$0xff]
    %v4087 = vsel %vm4001, %v3933, %v4086
    %4088 = vst [vmem:[#allocation7 + $0xe0] sm:$0xff] %v4087
    %v4089 = vld [vmem:[#allocation7 + $0xe8] sm:$0xff]
    %v4090 = vsel %vm4001, %v3940, %v4089
    %4091 = vst [vmem:[#allocation7 + $0xe8] sm:$0xff] %v4090
    %v4092 = vld [vmem:[#allocation7 + $0xf0] sm:$0xff]
    %v4093 = vsel %vm4001, %v3947, %v4092
    %4094 = vst [vmem:[#allocation7 + $0xf0] sm:$0xff] %v4093
    %v4095 = vld [vmem:[#allocation7 + $0xf8] sm:$0xff]
    %v4096 = vsel %vm4001, %v3954, %v4095
    %4097 = vst [vmem:[#allocation7 + $0xf8] sm:$0xff] %v4096
    // Predicated region
    $region18: #{tpu_custom_call.1} parent=1 // pred_check
      _
    $region19: #{tpu_custom_call.1} parent=1 // pred_check_branch
      %4099 = sbr.rel (0) target = $region21
    $region20: #{tpu_custom_call.1} parent=1 // pred_region
      %4101 = vsyncadd [#allocation4], 0
      %s4103 = sshll.u32 [#allocation7], 4
      %s4104 = int_to_ptr.vmem [resolvable:$true] %s4103
      %s4105 = sshll.u32 %s2, 4
      %s4106 = int_to_ptr.hbm [resolvable:$true] %s4105
      %4108 = dma.vmem_to_hbm [thread:$0]  %s4104, 4096, %s4106, [#allocation4]
    $region21: #{tpu_custom_call.1} parent=1 // pred_fallthru
      _
    // Predicated region
    $region22: #{tpu_custom_call.1} parent=1 // pred_check
      _
    $region23: #{tpu_custom_call.1} parent=1 // pred_check_branch
      %4110 = sbr.rel (0) target = $region25
    $region24: #{tpu_custom_call.1} parent=1 // pred_region
      %4112 = dma.done [#allocation4], 4096
    $region25: #{tpu_custom_call.1} parent=1 // pred_fallthru
      _
    %4113 = vsyncpa [#allocation3], 1
    %4114 = vsyncpa [#allocation6], 1
    %4115 = vsyncpa [#allocation4], 1

</llo_original>
